<compile_context>
chip_gen: v7x
topology: tpu7x:2x2x1
jax: 0.10.0
libtpu: 0.0.40
codegen_flags: <defaults>
</compile_context>

<pallas_src>
import jax
import jax.numpy as jnp
from jax.experimental import pallas as pl
from jax.experimental.pallas import tpu as pltpu

_LANE = 128


def _round_up(n, m):
    return ((n + m - 1) // m) * m


def _tensorcores_per_device():
    """Best-effort TensorCore count per JAX device (grid 'parallel' sharding targets)."""
    try:
        kind = jax.devices()[0].device_kind.lower()
    except Exception:
        return 1
    if "lite" in kind or "v5e" in kind or "v6e" in kind or "v6" in kind:
        return 1          # v5e / v6e: single TensorCore per chip
    if "v7" in kind or "v4" in kind or "v5p" in kind:
        return 2          # v7x: 2 TCs per chip; v4/v5p megacore also benefit
    return 1


def _default_weight_dtype():
    """bf16 on chips with bf16 VPU/EUP (v6e/v7x); f32 otherwise (v5e)."""
    try:
        kind = jax.devices()[0].device_kind.lower()
    except Exception:
        return jnp.float32
    if "v6" in kind or "v7" in kind:
        return jnp.bfloat16
    return jnp.float32


def _resident_spec(shape):
    """BlockSpec for a weight/bias resident in VMEM across the whole grid.

    Constant block index => no re-DMA; single-buffer it when the installed Pallas
    supports pipeline_mode (double buffering a constant-index block only wastes VMEM).
    """
    index_map = lambda i: (0,) * len(shape)
    buffered = getattr(pl, "Buffered", None)
    if buffered is not None:
        try:
            return pl.BlockSpec(shape, index_map, pipeline_mode=buffered(1))
        except TypeError:
            pass  # older BlockSpec signature without pipeline_mode
    return pl.BlockSpec(shape, index_map)


def _make_mlp_kernel(approx_sigmoid):
    def kernel(x_ref,
               w1_ref, b1_ref,
               w2_ref, b2_ref,
               w3_ref, b3_ref,
               w4_ref, b4_ref,
               w5_ref, b5_ref,
               o_ref):
        def hidden_layer(h, w_ref, b_ref):
            # MXU matmul with f32 accumulation; bias add + ReLU on the VPU.
            z = jnp.dot(h.astype(w_ref.dtype), w_ref[...],
                        preferred_element_type=jnp.float32) + b_ref[...]
            return jnp.maximum(z, 0.0)

        h = x_ref[...]
        h = hidden_layer(h, w1_ref, b1_ref)   # fc1 + ReLU (dropout1 = identity in eval)
        h = hidden_layer(h, w2_ref, b2_ref)   # fc2 + ReLU (dropout2 = identity)
        h = hidden_layer(h, w3_ref, b3_ref)   # fc3 + ReLU (dropout3 = identity)
        h = hidden_layer(h, w4_ref, b4_ref)   # fc4 + ReLU (bottleneck, dropout4 = identity)

        # fc5 + sigmoid (padded to a lane-dense 128-wide output slab)
        z = jnp.dot(h.astype(w5_ref.dtype), w5_ref[...],
                    preferred_element_type=jnp.float32) + b5_ref[...]
        if approx_sigmoid:
            # exp already runs on the EUP; approx reciprocal moves the divide there too.
            sig = pl.reciprocal(1.0 + jnp.exp(-z), approx=True)
        else:
            sig = 1.0 / (1.0 + jnp.exp(-z))
        o_ref[...] = sig.astype(o_ref.dtype)

    return kernel


def build_mimenet_forward(params, *, block_m=1024, weight_dtype=None,
                          approx_sigmoid=False, out_dtype=jnp.float32, jit=True):
    """Pad & cache the weights ONCE and return forward(x) -> (batch, output_size).

    params : list of (W, b) with W: (in_features, out_features), b: (1, out_features)
             (i.e. torch nn.Linear weights transposed).
    """
    w_dtype = weight_dtype if weight_dtype is not None else _default_weight_dtype()

    in_features = params[0][0].shape[0]
    out_features = params[-1][0].shape[1]
    dims = [in_features] + [w.shape[1] for w, _ in params]
    pdims = [_round_up(d, _LANE) for d in dims]

    # ---- pad every weight/bias ONCE (hoisted out of the per-call path).
    weight_args, weight_specs = [], []
    for li, (w, b) in enumerate(params):
        pw = jnp.zeros((pdims[li], pdims[li + 1]), w_dtype)
        pw = pw.at[: w.shape[0], : w.shape[1]].set(w.astype(w_dtype))
        pb = jnp.zeros((1, pdims[li + 1]), jnp.float32)   # bias stays f32 (added to f32 acc)
        pb = pb.at[:, : b.shape[1]].set(b.astype(jnp.float32))
        weight_args += [pw, pb]
        weight_specs += [_resident_spec(pw.shape), _resident_spec(pb.shape)]
    weight_args = [jax.device_put(a) for a in weight_args]

    sublane = 16 if w_dtype == jnp.bfloat16 else 8   # bf16 packs 16 rows per vreg
    num_tc = _tensorcores_per_device()
    out_p = pdims[-1]                                 # lane-dense output slab width (>=128)
    kernel = _make_mlp_kernel(approx_sigmoid)

    def forward(x):
        batch = x.shape[0]
        assert x.shape[1] == in_features, "input feature dim mismatch"

        # Batch tile selection (static per trace):
        #  * 1 TensorCore (v5e/v6e): one big tile over the whole padded batch; the grid
        #    is a sequential loop, so splitting only adds ~0.35us/step of overhead.
        #  * >=2 TCs (v7x): at least num_tc tiles so the "parallel" axis shards work.
        if num_tc > 1:
            tile_target = _round_up(-(-batch // num_tc), sublane)
        else:
            tile_target = _round_up(batch, sublane)
        bm = max(sublane, min(block_m, tile_target))
        bm = _round_up(bm, sublane)
        padded_batch = _round_up(batch, bm)
        grid = (padded_batch // bm,)

        # Only the input pad remains on the per-call path (weights are pre-padded).
        xp = jnp.zeros((padded_batch, pdims[0]), w_dtype)
        xp = xp.at[:batch, :in_features].set(x.astype(w_dtype))

        out_padded = pl.pallas_call(
            kernel,
            out_shape=jax.ShapeDtypeStruct((padded_batch, out_p), out_dtype),
            grid=grid,
            in_specs=[pl.BlockSpec((bm, pdims[0]), lambda i: (i, 0))] + weight_specs,
            out_specs=pl.BlockSpec((bm, out_p), lambda i: (i, 0)),
            compiler_params=pltpu.CompilerParams(
                dimension_semantics=("parallel",),
                # Explicit scoped-VMEM budget: resident weights + double-buffered x/out
                # tiles are ~2-3 MiB even at block_m=1024; 32 MiB leaves headroom and
                # stays inside v7x's 64 MiB physical VMEM.
                vmem_limit_bytes=32 * 1024 * 1024,
            ),
        )(xp, *weight_args)

        return out_padded[:batch, :out_features]

    return jax.jit(forward) if jit else forward


def mimenet_forward(x, params, **kwargs):
    """One-shot convenience wrapper (prefer build_mimenet_forward for repeated calls)."""
    return build_mimenet_forward(params, jit=False, **kwargs)(x)


def init_params(key, input_size, hidden_size_factor, bottleneck, output_size):
    """Deterministic init mimicking torch.nn.Linear (U[-1/sqrt(fan_in), +1/sqrt(fan_in)])."""
    hidden = hidden_size_factor * input_size
    bn = int(hidden * bottleneck)
    layer_dims = [(input_size, hidden),
                  (hidden, hidden),
                  (hidden, hidden),
                  (hidden, bn),
                  (bn, output_size)]
    params = []
    for (fan_in, fan_out) in layer_dims:
        key, kw, kb = jax.random.split(key, 3)
        bound = 1.0 / jnp.sqrt(fan_in)
        w = jax.random.uniform(kw, (fan_in, fan_out), jnp.float32, -bound, bound)
        b = jax.random.uniform(kb, (1, fan_out), jnp.float32, -bound, bound)
        params.append((w, b))
    return params


def reference_forward(x, params):
    h = x
    for i, (w, b) in enumerate(params):
        h = h @ w + b
        if i < len(params) - 1:
            h = jnp.maximum(h, 0.0)
        else:
            h = jax.nn.sigmoid(h)
    return h


if __name__ == "__main__":
    # Shapes consistent with the module's constructor:
    #   MIMENetEnsemble(input_size=32, hidden_size_factor=4, bottleneck=0.5, output_size=1)
    input_size = 32
    hidden_size_factor = 4
    bottleneck = 0.5
    output_size = 1
    batch = 500   # deliberately ragged to exercise the batch-padding path

    key = jax.random.PRNGKey(0)
    key, kx = jax.random.split(key)
    x = jax.random.normal(kx, (batch, input_size), jnp.float32)
    params = init_params(key, input_size, hidden_size_factor, bottleneck, output_size)

    ref = reference_forward(x, params)

    # Exact (f32) path: weights padded & cached once at build time, forward jitted.
    fwd_f32 = build_mimenet_forward(params, weight_dtype=jnp.float32)
    out = jax.block_until_ready(fwd_f32(x))
    assert out.shape == (batch, output_size)
    assert jnp.allclose(out, ref, atol=1e-5, rtol=1e-5), "f32 kernel mismatch vs reference"

    # Second call reuses the cached padded weights and compiled executable.
    out2 = jax.block_until_ready(fwd_f32(x))
    assert jnp.allclose(out2, ref, atol=1e-5, rtol=1e-5)

    # v6e/v7x fast path: bf16 weights/activations (f32 MXU accumulation), EUP approx
    # sigmoid, and a bf16 lane-dense output slab (halves padded-output write-back).
    fwd_bf16 = build_mimenet_forward(params, weight_dtype=jnp.bfloat16,
                                     approx_sigmoid=True, out_dtype=jnp.bfloat16)
    out_bf16 = jax.block_until_ready(fwd_bf16(x))
    assert out_bf16.shape == (batch, output_size)
    assert jnp.allclose(out_bf16.astype(jnp.float32), ref, atol=5e-2, rtol=5e-2), \
        "bf16 kernel mismatch vs reference"

    print("KERNEL_OK")
</pallas_src>

<mosaic_0001>
module attributes {stable_mosaic.version = 11 : i64} {
  func.func @kernel(%arg0: i32, %arg1: memref<504x128xf32, #tpu.memory_space<vmem>>, %arg2: memref<128x128xf32, #tpu.memory_space<vmem>>, %arg3: memref<1x128xf32, #tpu.memory_space<vmem>>, %arg4: memref<128x128xf32, #tpu.memory_space<vmem>>, %arg5: memref<1x128xf32, #tpu.memory_space<vmem>>, %arg6: memref<128x128xf32, #tpu.memory_space<vmem>>, %arg7: memref<1x128xf32, #tpu.memory_space<vmem>>, %arg8: memref<128x128xf32, #tpu.memory_space<vmem>>, %arg9: memref<1x128xf32, #tpu.memory_space<vmem>>, %arg10: memref<128x128xf32, #tpu.memory_space<vmem>>, %arg11: memref<1x128xf32, #tpu.memory_space<vmem>>, %arg12: memref<504x128xf32, #tpu.memory_space<vmem>>) attributes {dimension_semantics = [#tpu.dimension_semantics<parallel>], iteration_bounds = array<i64: 1>, scalar_prefetch = 0 : i64, scratch_operands = 0 : i64, tpu.core_type = #tpu.core_type<tc>, window_params = [{transform_indices = @transform_0, window_bounds = array<i64: 504, 128>}, {pipeline_mode = #tpu.pipeline_mode<synchronous>, transform_indices = @transform_1, window_bounds = array<i64: 128, 128>}, {pipeline_mode = #tpu.pipeline_mode<synchronous>, transform_indices = @transform_2, window_bounds = array<i64: 1, 128>}, {pipeline_mode = #tpu.pipeline_mode<synchronous>, transform_indices = @transform_3, window_bounds = array<i64: 128, 128>}, {pipeline_mode = #tpu.pipeline_mode<synchronous>, transform_indices = @transform_4, window_bounds = array<i64: 1, 128>}, {pipeline_mode = #tpu.pipeline_mode<synchronous>, transform_indices = @transform_5, window_bounds = array<i64: 128, 128>}, {pipeline_mode = #tpu.pipeline_mode<synchronous>, transform_indices = @transform_6, window_bounds = array<i64: 1, 128>}, {pipeline_mode = #tpu.pipeline_mode<synchronous>, transform_indices = @transform_7, window_bounds = array<i64: 128, 128>}, {pipeline_mode = #tpu.pipeline_mode<synchronous>, transform_indices = @transform_8, window_bounds = array<i64: 1, 128>}, {pipeline_mode = #tpu.pipeline_mode<synchronous>, transform_indices = @transform_9, window_bounds = array<i64: 128, 128>}, {pipeline_mode = #tpu.pipeline_mode<synchronous>, transform_indices = @transform_10, window_bounds = array<i64: 1, 128>}, {transform_indices = @transform_11, window_bounds = array<i64: 504, 128>}]} {
    %c0 = arith.constant 0 : index
    %c0_0 = arith.constant 0 : index
    %0 = vector.load %arg1[%c0, %c0_0] : memref<504x128xf32, #tpu.memory_space<vmem>>, vector<504x128xf32>
    %c0_1 = arith.constant 0 : index
    %c0_2 = arith.constant 0 : index
    %1 = vector.load %arg2[%c0_1, %c0_2] : memref<128x128xf32, #tpu.memory_space<vmem>>, vector<128x128xf32>
    %cst = arith.constant dense<0.000000e+00> : vector<504x128xf32>
    %2 = tpu.matmul %0, %1, %cst {dimension_numbers = #tpu.dot_dimension_numbers<[1], [0], [0], [1], [0, 0, 1, 1], [], []>} : vector<504x128xf32>, vector<128x128xf32>, vector<504x128xf32> -> vector<504x128xf32>
    %c0_3 = arith.constant 0 : index
    %c0_4 = arith.constant 0 : index
    %3 = vector.load %arg3[%c0_3, %c0_4] : memref<1x128xf32, #tpu.memory_space<vmem>>, vector<1x128xf32>
    %4 = vector.broadcast %3 : vector<1x128xf32> to vector<504x128xf32>
    %5 = arith.addf %2, %4 : vector<504x128xf32>
    %cst_5 = arith.constant 0.000000e+00 : f32
    %6 = vector.broadcast %cst_5 : f32 to vector<504x128xf32>
    %7 = arith.maximumf %5, %6 : vector<504x128xf32>
    %c0_6 = arith.constant 0 : index
    %c0_7 = arith.constant 0 : index
    %8 = vector.load %arg4[%c0_6, %c0_7] : memref<128x128xf32, #tpu.memory_space<vmem>>, vector<128x128xf32>
    %cst_8 = arith.constant dense<0.000000e+00> : vector<504x128xf32>
    %9 = tpu.matmul %7, %8, %cst_8 {dimension_numbers = #tpu.dot_dimension_numbers<[1], [0], [0], [1], [0, 0, 1, 1], [], []>} : vector<504x128xf32>, vector<128x128xf32>, vector<504x128xf32> -> vector<504x128xf32>
    %c0_9 = arith.constant 0 : index
    %c0_10 = arith.constant 0 : index
    %10 = vector.load %arg5[%c0_9, %c0_10] : memref<1x128xf32, #tpu.memory_space<vmem>>, vector<1x128xf32>
    %11 = vector.broadcast %10 : vector<1x128xf32> to vector<504x128xf32>
    %12 = arith.addf %9, %11 : vector<504x128xf32>
    %cst_11 = arith.constant 0.000000e+00 : f32
    %13 = vector.broadcast %cst_11 : f32 to vector<504x128xf32>
    %14 = arith.maximumf %12, %13 : vector<504x128xf32>
    %c0_12 = arith.constant 0 : index
    %c0_13 = arith.constant 0 : index
    %15 = vector.load %arg6[%c0_12, %c0_13] : memref<128x128xf32, #tpu.memory_space<vmem>>, vector<128x128xf32>
    %cst_14 = arith.constant dense<0.000000e+00> : vector<504x128xf32>
    %16 = tpu.matmul %14, %15, %cst_14 {dimension_numbers = #tpu.dot_dimension_numbers<[1], [0], [0], [1], [0, 0, 1, 1], [], []>} : vector<504x128xf32>, vector<128x128xf32>, vector<504x128xf32> -> vector<504x128xf32>
    %c0_15 = arith.constant 0 : index
    %c0_16 = arith.constant 0 : index
    %17 = vector.load %arg7[%c0_15, %c0_16] : memref<1x128xf32, #tpu.memory_space<vmem>>, vector<1x128xf32>
    %18 = vector.broadcast %17 : vector<1x128xf32> to vector<504x128xf32>
    %19 = arith.addf %16, %18 : vector<504x128xf32>
    %cst_17 = arith.constant 0.000000e+00 : f32
    %20 = vector.broadcast %cst_17 : f32 to vector<504x128xf32>
    %21 = arith.maximumf %19, %20 : vector<504x128xf32>
    %c0_18 = arith.constant 0 : index
    %c0_19 = arith.constant 0 : index
    %22 = vector.load %arg8[%c0_18, %c0_19] : memref<128x128xf32, #tpu.memory_space<vmem>>, vector<128x128xf32>
    %cst_20 = arith.constant dense<0.000000e+00> : vector<504x128xf32>
    %23 = tpu.matmul %21, %22, %cst_20 {dimension_numbers = #tpu.dot_dimension_numbers<[1], [0], [0], [1], [0, 0, 1, 1], [], []>} : vector<504x128xf32>, vector<128x128xf32>, vector<504x128xf32> -> vector<504x128xf32>
    %c0_21 = arith.constant 0 : index
    %c0_22 = arith.constant 0 : index
    %24 = vector.load %arg9[%c0_21, %c0_22] : memref<1x128xf32, #tpu.memory_space<vmem>>, vector<1x128xf32>
    %25 = vector.broadcast %24 : vector<1x128xf32> to vector<504x128xf32>
    %26 = arith.addf %23, %25 : vector<504x128xf32>
    %cst_23 = arith.constant 0.000000e+00 : f32
    %27 = vector.broadcast %cst_23 : f32 to vector<504x128xf32>
    %28 = arith.maximumf %26, %27 : vector<504x128xf32>
    %c0_24 = arith.constant 0 : index
    %c0_25 = arith.constant 0 : index
    %29 = vector.load %arg10[%c0_24, %c0_25] : memref<128x128xf32, #tpu.memory_space<vmem>>, vector<128x128xf32>
    %cst_26 = arith.constant dense<0.000000e+00> : vector<504x128xf32>
    %30 = tpu.matmul %28, %29, %cst_26 {dimension_numbers = #tpu.dot_dimension_numbers<[1], [0], [0], [1], [0, 0, 1, 1], [], []>} : vector<504x128xf32>, vector<128x128xf32>, vector<504x128xf32> -> vector<504x128xf32>
    %c0_27 = arith.constant 0 : index
    %c0_28 = arith.constant 0 : index
    %31 = vector.load %arg11[%c0_27, %c0_28] : memref<1x128xf32, #tpu.memory_space<vmem>>, vector<1x128xf32>
    %32 = vector.broadcast %31 : vector<1x128xf32> to vector<504x128xf32>
    %33 = arith.addf %30, %32 : vector<504x128xf32>
    %cst_29 = arith.constant 0.000000e+00 : f32
    %34 = vector.broadcast %cst_29 : f32 to vector<504x128xf32>
    %35 = arith.subf %34, %33 : vector<504x128xf32>
    %36 = math.exp %35 : vector<504x128xf32>
    %cst_30 = arith.constant 1.000000e+00 : f32
    %37 = vector.broadcast %cst_30 : f32 to vector<504x128xf32>
    %38 = arith.addf %37, %36 : vector<504x128xf32>
    %cst_31 = arith.constant 1.000000e+00 : f32
    %39 = vector.broadcast %cst_31 : f32 to vector<504x128xf32>
    %40 = arith.divf %39, %38 : vector<504x128xf32>
    %c0_32 = arith.constant 0 : index
    %c0_33 = arith.constant 0 : index
    %41 = vector.load %arg12[%c0_32, %c0_33] : memref<504x128xf32, #tpu.memory_space<vmem>>, vector<504x128xf32>
    tpu.vector_store %arg12[%c0_32, %c0_33], %40 {strides = array<i32>} : memref<504x128xf32, #tpu.memory_space<vmem>>, vector<504x128xf32>,
    return
  }
  func.func @transform_0(%arg0: i32) -> (i32, i32) {
    %c0_i32 = arith.constant 0 : i32
    %c0_i32_0 = arith.constant 0 : i32
    return %arg0, %c0_i32 : i32, i32
  }
  func.func @transform_1(%arg0: i32) -> (i32, i32) {
    %c0_i32 = arith.constant 0 : i32
    %c0_i32_0 = arith.constant 0 : i32
    %c0_i32_1 = arith.constant 0 : i32
    return %c0_i32, %c0_i32_0 : i32, i32
  }
  func.func @transform_2(%arg0: i32) -> (i32, i32) {
    %c0_i32 = arith.constant 0 : i32
    %c0_i32_0 = arith.constant 0 : i32
    %c0_i32_1 = arith.constant 0 : i32
    return %c0_i32, %c0_i32_0 : i32, i32
  }
  func.func @transform_3(%arg0: i32) -> (i32, i32) {
    %c0_i32 = arith.constant 0 : i32
    %c0_i32_0 = arith.constant 0 : i32
    %c0_i32_1 = arith.constant 0 : i32
    return %c0_i32, %c0_i32_0 : i32, i32
  }
  func.func @transform_4(%arg0: i32) -> (i32, i32) {
    %c0_i32 = arith.constant 0 : i32
    %c0_i32_0 = arith.constant 0 : i32
    %c0_i32_1 = arith.constant 0 : i32
    return %c0_i32, %c0_i32_0 : i32, i32
  }
  func.func @transform_5(%arg0: i32) -> (i32, i32) {
    %c0_i32 = arith.constant 0 : i32
    %c0_i32_0 = arith.constant 0 : i32
    %c0_i32_1 = arith.constant 0 : i32
    return %c0_i32, %c0_i32_0 : i32, i32
  }
  func.func @transform_6(%arg0: i32) -> (i32, i32) {
    %c0_i32 = arith.constant 0 : i32
    %c0_i32_0 = arith.constant 0 : i32
    %c0_i32_1 = arith.constant 0 : i32
    return %c0_i32, %c0_i32_0 : i32, i32
  }
  func.func @transform_7(%arg0: i32) -> (i32, i32) {
    %c0_i32 = arith.constant 0 : i32
    %c0_i32_0 = arith.constant 0 : i32
    %c0_i32_1 = arith.constant 0 : i32
    return %c0_i32, %c0_i32_0 : i32, i32
  }
  func.func @transform_8(%arg0: i32) -> (i32, i32) {
    %c0_i32 = arith.constant 0 : i32
    %c0_i32_0 = arith.constant 0 : i32
    %c0_i32_1 = arith.constant 0 : i32
    return %c0_i32, %c0_i32_0 : i32, i32
  }
  func.func @transform_9(%arg0: i32) -> (i32, i32) {
    %c0_i32 = arith.constant 0 : i32
    %c0_i32_0 = arith.constant 0 : i32
    %c0_i32_1 = arith.constant 0 : i32
    return %c0_i32, %c0_i32_0 : i32, i32
  }
  func.func @transform_10(%arg0: i32) -> (i32, i32) {
    %c0_i32 = arith.constant 0 : i32
    %c0_i32_0 = arith.constant 0 : i32
    %c0_i32_1 = arith.constant 0 : i32
    return %c0_i32, %c0_i32_0 : i32, i32
  }
  func.func @transform_11(%arg0: i32) -> (i32, i32) {
    %c0_i32 = arith.constant 0 : i32
    %c0_i32_0 = arith.constant 0 : i32
    return %arg0, %c0_i32 : i32, i32
  }
}

</mosaic_0001>

<llo_original>
// kernel: forward.1
$region0: #{forward.1}
  #allocation0 [shape = 'u32[]', space=smem, size = 0x4, offset = 0x4, fixed_abs, tag = 'smem constant byte address 0x4 - core index']
  #allocation1 [shape = 'u32[144,128]{1,0:T(1,128)}', space=vmem, size = 0x12000, scoped, tag = 'internal scratch']
  %s0 = inlined_call_operand.vmem [shape: f32[504,128], index: 0, kind: input, shape index: {}]
  %s1 = inlined_call_operand.vmem [shape: f32[128,128], index: 1, kind: input, shape index: {}]
  %s2 = inlined_call_operand.vmem [shape: f32[1,128], index: 2, kind: input, shape index: {}]
  %s3 = inlined_call_operand.vmem [shape: f32[128,128], index: 3, kind: input, shape index: {}]
  %s4 = inlined_call_operand.vmem [shape: f32[1,128], index: 4, kind: input, shape index: {}]
  %s5 = inlined_call_operand.vmem [shape: f32[128,128], index: 5, kind: input, shape index: {}]
  %s6 = inlined_call_operand.vmem [shape: f32[1,128], index: 6, kind: input, shape index: {}]
  %s7 = inlined_call_operand.vmem [shape: f32[128,128], index: 7, kind: input, shape index: {}]
  %s8 = inlined_call_operand.vmem [shape: f32[1,128], index: 8, kind: input, shape index: {}]
  %s9 = inlined_call_operand.vmem [shape: f32[128,128], index: 9, kind: input, shape index: {}]
  %s10 = inlined_call_operand.vmem [shape: f32[1,128], index: 10, kind: input, shape index: {}]
  %s11 = inlined_call_operand.vmem [shape: f32[504,128], index: 11, kind: output, shape index: {}]
  %s12 = sld [smem:[#allocation0]]
  $region54: #{forward.1} parent=0
    _
  %s14 = ssub.s32 1, %s12
  %s15 = scalar_select 0, %s14, %s12
  // Predicated region
  $region2: #{forward.1} parent=0 // pred_check
    _
  $region3: #{forward.1} parent=0 // pred_check_branch
    %17 = sbr.rel (0) target = $region5
  $region4: #{forward.1} parent=0 // pred_region
    _
  $region5: #{forward.1} parent=0 // pred_fallthru
    _
  // Predicated region
  $region6: #{forward.1} parent=0 // pred_check
    _
  $region7: #{forward.1} parent=0 // pred_check_branch
    %19 = sbr.rel (0) target = $region9
  $region8: #{forward.1} parent=0 // pred_region
    _
  $region9: #{forward.1} parent=0 // pred_fallthru
    _
  // Predicated region
  $region10: #{forward.1} parent=0 // pred_check
    _
  $region11: #{forward.1} parent=0 // pred_check_branch
    %21 = sbr.rel (0) target = $region13
  $region12: #{forward.1} parent=0 // pred_region
    _
  $region13: #{forward.1} parent=0 // pred_fallthru
    _
  // Predicated region
  $region14: #{forward.1} parent=0 // pred_check
    _
  $region15: #{forward.1} parent=0 // pred_check_branch
    %23 = sbr.rel (0) target = $region17
  $region16: #{forward.1} parent=0 // pred_region
    _
  $region17: #{forward.1} parent=0 // pred_fallthru
    _
  // Predicated region
  $region18: #{forward.1} parent=0 // pred_check
    _
  $region19: #{forward.1} parent=0 // pred_check_branch
    %25 = sbr.rel (0) target = $region21
  $region20: #{forward.1} parent=0 // pred_region
    _
  $region21: #{forward.1} parent=0 // pred_fallthru
    _
  // Predicated region
  $region22: #{forward.1} parent=0 // pred_check
    _
  $region23: #{forward.1} parent=0 // pred_check_branch
    %27 = sbr.rel (0) target = $region25
  $region24: #{forward.1} parent=0 // pred_region
    _
  $region25: #{forward.1} parent=0 // pred_fallthru
    _
  // Predicated region
  $region26: #{forward.1} parent=0 // pred_check
    _
  $region27: #{forward.1} parent=0 // pred_check_branch
    %29 = sbr.rel (0) target = $region29
  $region28: #{forward.1} parent=0 // pred_region
    _
  $region29: #{forward.1} parent=0 // pred_fallthru
    _
  // Predicated region
  $region30: #{forward.1} parent=0 // pred_check
    _
  $region31: #{forward.1} parent=0 // pred_check_branch
    %31 = sbr.rel (0) target = $region33
  $region32: #{forward.1} parent=0 // pred_region
    _
  $region33: #{forward.1} parent=0 // pred_fallthru
    _
  // Predicated region
  $region34: #{forward.1} parent=0 // pred_check
    _
  $region35: #{forward.1} parent=0 // pred_check_branch
    %33 = sbr.rel (0) target = $region37
  $region36: #{forward.1} parent=0 // pred_region
    _
  $region37: #{forward.1} parent=0 // pred_fallthru
    _
  // Predicated region
  $region38: #{forward.1} parent=0 // pred_check
    _
  $region39: #{forward.1} parent=0 // pred_check_branch
    %35 = sbr.rel (0) target = $region41
  $region40: #{forward.1} parent=0 // pred_region
    _
  $region41: #{forward.1} parent=0 // pred_fallthru
    _
  // Predicated region
  $region42: #{forward.1} parent=0 // pred_check
    _
  $region43: #{forward.1} parent=0 // pred_check_branch
    %37 = sbr.rel (0) target = $region45
  $region44: #{forward.1} parent=0 // pred_region
    _
  $region45: #{forward.1} parent=0 // pred_fallthru
    _
  %v38 = vld [vmem:[%s0] sm:$0xff]
  %v39 = vld [vmem:[%s0 + $0x8] sm:$0xff]
  %v40 = vld [vmem:[%s0 + $0x10] sm:$0xff]
  %v41 = vld [vmem:[%s0 + $0x18] sm:$0xff]
  %v42 = vld [vmem:[%s0 + $0x20] sm:$0xff]
  %v43 = vld [vmem:[%s0 + $0x28] sm:$0xff]
  %v44 = vld [vmem:[%s0 + $0x30] sm:$0xff]
  %v45 = vld [vmem:[%s0 + $0x38] sm:$0xff]
  %v46 = vld [vmem:[%s0 + $0x40] sm:$0xff]
  %v47 = vld [vmem:[%s0 + $0x48] sm:$0xff]
  %v48 = vld [vmem:[%s0 + $0x50] sm:$0xff]
  %v49 = vld [vmem:[%s0 + $0x58] sm:$0xff]
  %v50 = vld [vmem:[%s0 + $0x60] sm:$0xff]
  %v51 = vld [vmem:[%s0 + $0x68] sm:$0xff]
  %v52 = vld [vmem:[%s0 + $0x70] sm:$0xff]
  %v53 = vld [vmem:[%s0 + $0x78] sm:$0xff]
  %v54 = vld [vmem:[%s0 + $0x80] sm:$0xff]
  %v55 = vld [vmem:[%s0 + $0x88] sm:$0xff]
  %v56 = vld [vmem:[%s0 + $0x90] sm:$0xff]
  %v57 = vld [vmem:[%s0 + $0x98] sm:$0xff]
  %v58 = vld [vmem:[%s0 + $0xa0] sm:$0xff]
  %v59 = vld [vmem:[%s0 + $0xa8] sm:$0xff]
  %v60 = vld [vmem:[%s0 + $0xb0] sm:$0xff]
  %v61 = vld [vmem:[%s0 + $0xb8] sm:$0xff]
  %v62 = vld [vmem:[%s0 + $0xc0] sm:$0xff]
  %v63 = vld [vmem:[%s0 + $0xc8] sm:$0xff]
  %v64 = vld [vmem:[%s0 + $0xd0] sm:$0xff]
  %v65 = vld [vmem:[%s0 + $0xd8] sm:$0xff]
  %v66 = vld [vmem:[%s0 + $0xe0] sm:$0xff]
  %v67 = vld [vmem:[%s0 + $0xe8] sm:$0xff]
  %v68 = vld [vmem:[%s0 + $0xf0] sm:$0xff]
  %v69 = vld [vmem:[%s0 + $0xf8] sm:$0xff]
  %v70 = vld [vmem:[%s0 + $0x100] sm:$0xff]
  %v71 = vld [vmem:[%s0 + $0x108] sm:$0xff]
  %v72 = vld [vmem:[%s0 + $0x110] sm:$0xff]
  %v73 = vld [vmem:[%s0 + $0x118] sm:$0xff]
  %v74 = vld [vmem:[%s0 + $0x120] sm:$0xff]
  %v75 = vld [vmem:[%s0 + $0x128] sm:$0xff]
  %v76 = vld [vmem:[%s0 + $0x130] sm:$0xff]
  %v77 = vld [vmem:[%s0 + $0x138] sm:$0xff]
  %v78 = vld [vmem:[%s0 + $0x140] sm:$0xff]
  %v79 = vld [vmem:[%s0 + $0x148] sm:$0xff]
  %v80 = vld [vmem:[%s0 + $0x150] sm:$0xff]
  %v81 = vld [vmem:[%s0 + $0x158] sm:$0xff]
  %v82 = vld [vmem:[%s0 + $0x160] sm:$0xff]
  %v83 = vld [vmem:[%s0 + $0x168] sm:$0xff]
  %v84 = vld [vmem:[%s0 + $0x170] sm:$0xff]
  %v85 = vld [vmem:[%s0 + $0x178] sm:$0xff]
  %v86 = vld [vmem:[%s0 + $0x180] sm:$0xff]
  %v87 = vld [vmem:[%s0 + $0x188] sm:$0xff]
  %v88 = vld [vmem:[%s0 + $0x190] sm:$0xff]
  %v89 = vld [vmem:[%s0 + $0x198] sm:$0xff]
  %v90 = vld [vmem:[%s0 + $0x1a0] sm:$0xff]
  %v91 = vld [vmem:[%s0 + $0x1a8] sm:$0xff]
  %v92 = vld [vmem:[%s0 + $0x1b0] sm:$0xff]
  %v93 = vld [vmem:[%s0 + $0x1b8] sm:$0xff]
  %v94 = vld [vmem:[%s0 + $0x1c0] sm:$0xff]
  %v95 = vld [vmem:[%s0 + $0x1c8] sm:$0xff]
  %v96 = vld [vmem:[%s0 + $0x1d0] sm:$0xff]
  %v97 = vld [vmem:[%s0 + $0x1d8] sm:$0xff]
  %v98 = vld [vmem:[%s0 + $0x1e0] sm:$0xff]
  %v99 = vld [vmem:[%s0 + $0x1e8] sm:$0xff]
  %v100 = vld [vmem:[%s0 + $0x1f0] sm:$0xff]
  %v101 = vld [vmem:[%s1] sm:$0xff]
  %v102 = vld [vmem:[%s1 + $0x8] sm:$0xff]
  %v103 = vld [vmem:[%s1 + $0x10] sm:$0xff]
  %v104 = vld [vmem:[%s1 + $0x18] sm:$0xff]
  %v105 = vld [vmem:[%s1 + $0x20] sm:$0xff]
  %v106 = vld [vmem:[%s1 + $0x28] sm:$0xff]
  %v107 = vld [vmem:[%s1 + $0x30] sm:$0xff]
  %v108 = vld [vmem:[%s1 + $0x38] sm:$0xff]
  %v109 = vld [vmem:[%s1 + $0x40] sm:$0xff]
  %v110 = vld [vmem:[%s1 + $0x48] sm:$0xff]
  %v111 = vld [vmem:[%s1 + $0x50] sm:$0xff]
  %v112 = vld [vmem:[%s1 + $0x58] sm:$0xff]
  %v113 = vld [vmem:[%s1 + $0x60] sm:$0xff]
  %v114 = vld [vmem:[%s1 + $0x68] sm:$0xff]
  %v115 = vld [vmem:[%s1 + $0x70] sm:$0xff]
  %v116 = vld [vmem:[%s1 + $0x78] sm:$0xff]
  %v117 = vld [vmem:[%s2] sm:$0x1]
  %v119 = vlaneseq
  %v120 = vshrl.u32 %v119, 7
  %v121 = vsub.s32 0, %v120
  %v122 = vrot.slane %v117, %v121
  %124 = vmatprep.subr.mxu0 0.0
  %125 = vmatpush1.msra.mxu0 %v101
  %126 = vmatprep.subr.mxu0 0.0
  %127 = vmatpush1.msra.mxu0 %v102
  %128 = vmatprep.subr.mxu0 0.0
  %129 = vmatpush1.msra.mxu0 %v103
  %130 = vmatprep.subr.mxu0 0.0
  %131 = vmatpush1.msra.mxu0 %v104
  %132 = vmatprep.subr.mxu0 0.0
  %133 = vmatpush1.msra.mxu0 %v105
  %134 = vmatprep.subr.mxu0 0.0
  %135 = vmatpush1.msra.mxu0 %v106
  %136 = vmatprep.subr.mxu0 0.0
  %137 = vmatpush1.msra.mxu0 %v107
  %138 = vmatprep.subr.mxu0 0.0
  %139 = vmatpush1.msra.mxu0 %v108
  %140 = vmatprep.subr.mxu0 0.0
  %141 = vmatpush1.msra.mxu0 %v109
  %142 = vmatprep.subr.mxu0 0.0
  %143 = vmatpush1.msra.mxu0 %v110
  %144 = vmatprep.subr.mxu0 0.0
  %145 = vmatpush1.msra.mxu0 %v111
  %146 = vmatprep.subr.mxu0 0.0
  %147 = vmatpush1.msra.mxu0 %v112
  %148 = vmatprep.subr.mxu0 0.0
  %149 = vmatpush1.msra.mxu0 %v113
  %150 = vmatprep.subr.mxu0 0.0
  %151 = vmatpush1.msra.mxu0 %v114
  %152 = vmatprep.subr.mxu0 0.0
  %153 = vmatpush1.msra.mxu0 %v115
  %154 = vmatprep.subr.mxu0 0.0
  %155 = vmatpush1.msra.mxu0 %v116
  %156 = vmatprep.subr.mxu0 0.0
  %157 = vmatpush1.msra.mxu0 0.0
  %158 = vmatprep.subr.mxu0 0.0
  %159 = vmatpush1.msra.mxu0 0.0
  %160 = vmatprep.subr.mxu0 0.0
  %161 = vmatpush1.msra.mxu0 0.0
  %162 = vmatprep.subr.mxu0 0.0
  %163 = vmatpush1.msra.mxu0 0.0
  %164 = vmatprep.subr.mxu0 0.0
  %165 = vmatpush1.msra.mxu0 0.0
  %166 = vmatprep.subr.mxu0 0.0
  %167 = vmatpush1.msra.mxu0 0.0
  %168 = vmatprep.subr.mxu0 0.0
  %169 = vmatpush1.msra.mxu0 0.0
  %170 = vmatprep.subr.mxu0 0.0
  %171 = vmatpush1.msra.mxu0 0.0
  %172 = vmatprep.subr.mxu0 0.0
  %173 = vmatpush1.msra.mxu0 0.0
  %174 = vmatprep.subr.mxu0 0.0
  %175 = vmatpush1.msra.mxu0 0.0
  %176 = vmatprep.subr.mxu0 0.0
  %177 = vmatpush1.msra.mxu0 0.0
  %178 = vmatprep.subr.mxu0 0.0
  %179 = vmatpush1.msra.mxu0 0.0
  %180 = vmatprep.subr.mxu0 0.0
  %181 = vmatpush1.msra.mxu0 0.0
  %182 = vmatprep.subr.mxu0 0.0
  %183 = vmatpush1.msra.mxu0 0.0
  %184 = vmatprep.subr.mxu0 0.0
  %185 = vmatpush1.msra.mxu0 0.0
  %186 = vmatprep.subr.mxu0 0.0
  %187 = vmatpush1.msra.mxu0 0.0
  %188 = vmatprep.mubr.f32.mxu0 0.0
  %189 = vmatmul.mubr.f32.gmra.mrb[0].mxu0 %v38
  %v190 = vpop.f32.mrb[0].mxu0
  %v191 = vadd.f32 %v122, %v190
  %v192 = vpop.f32.mrb[0].mxu0
  %193 = vmatprep.mubr.f32.mxu0 0.0
  %194 = vmatmul.mubr.f32.gmra.mrb[0].mxu0 %v39
  %v195 = vpop.f32.mrb[0].mxu0
  %v196 = vadd.f32 %v122, %v195
  %v197 = vpop.f32.mrb[0].mxu0
  %198 = vmatprep.mubr.f32.mxu0 0.0
  %199 = vmatmul.mubr.f32.gmra.mrb[0].mxu0 %v40
  %v200 = vpop.f32.mrb[0].mxu0
  %v201 = vadd.f32 %v122, %v200
  %v202 = vpop.f32.mrb[0].mxu0
  %203 = vmatprep.mubr.f32.mxu0 0.0
  %204 = vmatmul.mubr.f32.gmra.mrb[0].mxu0 %v41
  %v205 = vpop.f32.mrb[0].mxu0
  %v206 = vadd.f32 %v122, %v205
  %v207 = vpop.f32.mrb[0].mxu0
  %208 = vmatprep.mubr.f32.mxu0 0.0
  %209 = vmatmul.mubr.f32.gmra.mrb[0].mxu0 %v42
  %v210 = vpop.f32.mrb[0].mxu0
  %v211 = vadd.f32 %v122, %v210
  %v212 = vpop.f32.mrb[0].mxu0
  %213 = vmatprep.mubr.f32.mxu0 0.0
  %214 = vmatmul.mubr.f32.gmra.mrb[0].mxu0 %v43
  %v215 = vpop.f32.mrb[0].mxu0
  %v216 = vadd.f32 %v122, %v215
  %v217 = vpop.f32.mrb[0].mxu0
  %218 = vmatprep.mubr.f32.mxu0 0.0
  %219 = vmatmul.mubr.f32.gmra.mrb[0].mxu0 %v44
  %v220 = vpop.f32.mrb[0].mxu0
  %v221 = vadd.f32 %v122, %v220
  %v222 = vpop.f32.mrb[0].mxu0
  %223 = vmatprep.mubr.f32.mxu0 0.0
  %224 = vmatmul.mubr.f32.gmra.mrb[0].mxu0 %v45
  %v225 = vpop.f32.mrb[0].mxu0
  %v226 = vadd.f32 %v122, %v225
  %v227 = vpop.f32.mrb[0].mxu0
  %228 = vmatprep.mubr.f32.mxu0 0.0
  %229 = vmatmul.mubr.f32.gmra.mrb[0].mxu0 %v46
  %v230 = vpop.f32.mrb[0].mxu0
  %v231 = vadd.f32 %v122, %v230
  %v232 = vpop.f32.mrb[0].mxu0
  %233 = vmatprep.mubr.f32.mxu0 0.0
  %234 = vmatmul.mubr.f32.gmra.mrb[0].mxu0 %v47
  %v235 = vpop.f32.mrb[0].mxu0
  %v236 = vadd.f32 %v122, %v235
  %v237 = vpop.f32.mrb[0].mxu0
  %238 = vmatprep.mubr.f32.mxu0 0.0
  %239 = vmatmul.mubr.f32.gmra.mrb[0].mxu0 %v48
  %v240 = vpop.f32.mrb[0].mxu0
  %v241 = vadd.f32 %v122, %v240
  %v242 = vpop.f32.mrb[0].mxu0
  %243 = vmatprep.mubr.f32.mxu0 0.0
  %244 = vmatmul.mubr.f32.gmra.mrb[0].mxu0 %v49
  %v245 = vpop.f32.mrb[0].mxu0
  %v246 = vadd.f32 %v122, %v245
  %v247 = vpop.f32.mrb[0].mxu0
  %248 = vmatprep.mubr.f32.mxu0 0.0
  %249 = vmatmul.mubr.f32.gmra.mrb[0].mxu0 %v50
  %v250 = vpop.f32.mrb[0].mxu0
  %v251 = vadd.f32 %v122, %v250
  %v252 = vpop.f32.mrb[0].mxu0
  %253 = vmatprep.mubr.f32.mxu0 0.0
  %254 = vmatmul.mubr.f32.gmra.mrb[0].mxu0 %v51
  %v255 = vpop.f32.mrb[0].mxu0
  %v256 = vadd.f32 %v122, %v255
  %v257 = vpop.f32.mrb[0].mxu0
  %258 = vmatprep.mubr.f32.mxu0 0.0
  %259 = vmatmul.mubr.f32.gmra.mrb[0].mxu0 %v52
  %v260 = vpop.f32.mrb[0].mxu0
  %v261 = vadd.f32 %v122, %v260
  %v262 = vpop.f32.mrb[0].mxu0
  %263 = vmatprep.mubr.f32.mxu0 0.0
  %264 = vmatmul.mubr.f32.gmra.mrb[0].mxu0 %v53
  %v265 = vpop.f32.mrb[0].mxu0
  %v266 = vadd.f32 %v122, %v265
  %v267 = vpop.f32.mrb[0].mxu0
  %268 = vmatprep.mubr.f32.mxu0 0.0
  %269 = vmatmul.mubr.f32.gmra.mrb[0].mxu0 %v54
  %v270 = vpop.f32.mrb[0].mxu0
  %v271 = vadd.f32 %v122, %v270
  %v272 = vpop.f32.mrb[0].mxu0
  %273 = vmatprep.mubr.f32.mxu0 0.0
  %274 = vmatmul.mubr.f32.gmra.mrb[0].mxu0 %v55
  %v275 = vpop.f32.mrb[0].mxu0
  %v276 = vadd.f32 %v122, %v275
  %v277 = vpop.f32.mrb[0].mxu0
  %278 = vmatprep.mubr.f32.mxu0 0.0
  %279 = vmatmul.mubr.f32.gmra.mrb[0].mxu0 %v56
  %v280 = vpop.f32.mrb[0].mxu0
  %v281 = vadd.f32 %v122, %v280
  %v282 = vpop.f32.mrb[0].mxu0
  %283 = vmatprep.mubr.f32.mxu0 0.0
  %284 = vmatmul.mubr.f32.gmra.mrb[0].mxu0 %v57
  %v285 = vpop.f32.mrb[0].mxu0
  %v286 = vadd.f32 %v122, %v285
  %v287 = vpop.f32.mrb[0].mxu0
  %288 = vmatprep.mubr.f32.mxu0 0.0
  %289 = vmatmul.mubr.f32.gmra.mrb[0].mxu0 %v58
  %v290 = vpop.f32.mrb[0].mxu0
  %v291 = vadd.f32 %v122, %v290
  %v292 = vpop.f32.mrb[0].mxu0
  %293 = vmatprep.mubr.f32.mxu0 0.0
  %294 = vmatmul.mubr.f32.gmra.mrb[0].mxu0 %v59
  %v295 = vpop.f32.mrb[0].mxu0
  %v296 = vadd.f32 %v122, %v295
  %v297 = vpop.f32.mrb[0].mxu0
  %298 = vmatprep.mubr.f32.mxu0 0.0
  %299 = vmatmul.mubr.f32.gmra.mrb[0].mxu0 %v60
  %v300 = vpop.f32.mrb[0].mxu0
  %v301 = vadd.f32 %v122, %v300
  %v302 = vpop.f32.mrb[0].mxu0
  %303 = vmatprep.mubr.f32.mxu0 0.0
  %304 = vmatmul.mubr.f32.gmra.mrb[0].mxu0 %v61
  %v305 = vpop.f32.mrb[0].mxu0
  %v306 = vadd.f32 %v122, %v305
  %v307 = vpop.f32.mrb[0].mxu0
  %308 = vmatprep.mubr.f32.mxu0 0.0
  %309 = vmatmul.mubr.f32.gmra.mrb[0].mxu0 %v62
  %v310 = vpop.f32.mrb[0].mxu0
  %v311 = vadd.f32 %v122, %v310
  %v312 = vpop.f32.mrb[0].mxu0
  %313 = vmatprep.mubr.f32.mxu0 0.0
  %314 = vmatmul.mubr.f32.gmra.mrb[0].mxu0 %v63
  %v315 = vpop.f32.mrb[0].mxu0
  %v316 = vadd.f32 %v122, %v315
  %v317 = vpop.f32.mrb[0].mxu0
  %318 = vmatprep.mubr.f32.mxu0 0.0
  %319 = vmatmul.mubr.f32.gmra.mrb[0].mxu0 %v64
  %v320 = vpop.f32.mrb[0].mxu0
  %v321 = vadd.f32 %v122, %v320
  %v322 = vpop.f32.mrb[0].mxu0
  %323 = vmatprep.mubr.f32.mxu0 0.0
  %324 = vmatmul.mubr.f32.gmra.mrb[0].mxu0 %v65
  %v325 = vpop.f32.mrb[0].mxu0
  %v326 = vadd.f32 %v122, %v325
  %v327 = vpop.f32.mrb[0].mxu0
  %328 = vmatprep.mubr.f32.mxu0 0.0
  %329 = vmatmul.mubr.f32.gmra.mrb[0].mxu0 %v66
  %v330 = vpop.f32.mrb[0].mxu0
  %v331 = vadd.f32 %v122, %v330
  %v332 = vpop.f32.mrb[0].mxu0
  %333 = vmatprep.mubr.f32.mxu0 0.0
  %334 = vmatmul.mubr.f32.gmra.mrb[0].mxu0 %v67
  %v335 = vpop.f32.mrb[0].mxu0
  %v336 = vadd.f32 %v122, %v335
  %v337 = vpop.f32.mrb[0].mxu0
  %338 = vmatprep.mubr.f32.mxu0 0.0
  %339 = vmatmul.mubr.f32.gmra.mrb[0].mxu0 %v68
  %v340 = vpop.f32.mrb[0].mxu0
  %v341 = vadd.f32 %v122, %v340
  %v342 = vpop.f32.mrb[0].mxu0
  %343 = vmatprep.mubr.f32.mxu0 0.0
  %344 = vmatmul.mubr.f32.gmra.mrb[0].mxu0 %v69
  %v345 = vpop.f32.mrb[0].mxu0
  %v346 = vadd.f32 %v122, %v345
  %v347 = vpop.f32.mrb[0].mxu0
  %348 = vmatprep.mubr.f32.mxu0 0.0
  %349 = vmatmul.mubr.f32.gmra.mrb[0].mxu0 %v70
  %v350 = vpop.f32.mrb[0].mxu0
  %v351 = vadd.f32 %v122, %v350
  %v352 = vpop.f32.mrb[0].mxu0
  %353 = vmatprep.mubr.f32.mxu0 0.0
  %354 = vmatmul.mubr.f32.gmra.mrb[0].mxu0 %v71
  %v355 = vpop.f32.mrb[0].mxu0
  %v356 = vadd.f32 %v122, %v355
  %v357 = vpop.f32.mrb[0].mxu0
  %358 = vmatprep.mubr.f32.mxu0 0.0
  %359 = vmatmul.mubr.f32.gmra.mrb[0].mxu0 %v72
  %v360 = vpop.f32.mrb[0].mxu0
  %v361 = vadd.f32 %v122, %v360
  %v362 = vpop.f32.mrb[0].mxu0
  %363 = vmatprep.mubr.f32.mxu0 0.0
  %364 = vmatmul.mubr.f32.gmra.mrb[0].mxu0 %v73
  %v365 = vpop.f32.mrb[0].mxu0
  %v366 = vadd.f32 %v122, %v365
  %v367 = vpop.f32.mrb[0].mxu0
  %368 = vmatprep.mubr.f32.mxu0 0.0
  %369 = vmatmul.mubr.f32.gmra.mrb[0].mxu0 %v74
  %v370 = vpop.f32.mrb[0].mxu0
  %v371 = vadd.f32 %v122, %v370
  %v372 = vpop.f32.mrb[0].mxu0
  %373 = vmatprep.mubr.f32.mxu0 0.0
  %374 = vmatmul.mubr.f32.gmra.mrb[0].mxu0 %v75
  %v375 = vpop.f32.mrb[0].mxu0
  %v376 = vadd.f32 %v122, %v375
  %v377 = vpop.f32.mrb[0].mxu0
  %378 = vmatprep.mubr.f32.mxu0 0.0
  %379 = vmatmul.mubr.f32.gmra.mrb[0].mxu0 %v76
  %v380 = vpop.f32.mrb[0].mxu0
  %v381 = vadd.f32 %v122, %v380
  %v382 = vpop.f32.mrb[0].mxu0
  %383 = vmatprep.mubr.f32.mxu0 0.0
  %384 = vmatmul.mubr.f32.gmra.mrb[0].mxu0 %v77
  %v385 = vpop.f32.mrb[0].mxu0
  %v386 = vadd.f32 %v122, %v385
  %v387 = vpop.f32.mrb[0].mxu0
  %388 = vmatprep.mubr.f32.mxu0 0.0
  %389 = vmatmul.mubr.f32.gmra.mrb[0].mxu0 %v78
  %v390 = vpop.f32.mrb[0].mxu0
  %v391 = vadd.f32 %v122, %v390
  %v392 = vpop.f32.mrb[0].mxu0
  %393 = vmatprep.mubr.f32.mxu0 0.0
  %394 = vmatmul.mubr.f32.gmra.mrb[0].mxu0 %v79
  %v395 = vpop.f32.mrb[0].mxu0
  %v396 = vadd.f32 %v122, %v395
  %v397 = vpop.f32.mrb[0].mxu0
  %398 = vmatprep.mubr.f32.mxu0 0.0
  %399 = vmatmul.mubr.f32.gmra.mrb[0].mxu0 %v80
  %v400 = vpop.f32.mrb[0].mxu0
  %v401 = vadd.f32 %v122, %v400
  %v402 = vpop.f32.mrb[0].mxu0
  %403 = vmatprep.mubr.f32.mxu0 0.0
  %404 = vmatmul.mubr.f32.gmra.mrb[0].mxu0 %v81
  %v405 = vpop.f32.mrb[0].mxu0
  %v406 = vadd.f32 %v122, %v405
  %v407 = vpop.f32.mrb[0].mxu0
  %408 = vmatprep.mubr.f32.mxu0 0.0
  %409 = vmatmul.mubr.f32.gmra.mrb[0].mxu0 %v82
  %v410 = vpop.f32.mrb[0].mxu0
  %v411 = vadd.f32 %v122, %v410
  %v412 = vpop.f32.mrb[0].mxu0
  %413 = vmatprep.mubr.f32.mxu0 0.0
  %414 = vmatmul.mubr.f32.gmra.mrb[0].mxu0 %v83
  %v415 = vpop.f32.mrb[0].mxu0
  %v416 = vadd.f32 %v122, %v415
  %v417 = vpop.f32.mrb[0].mxu0
  %418 = vmatprep.mubr.f32.mxu0 0.0
  %419 = vmatmul.mubr.f32.gmra.mrb[0].mxu0 %v84
  %v420 = vpop.f32.mrb[0].mxu0
  %v421 = vadd.f32 %v122, %v420
  %v422 = vpop.f32.mrb[0].mxu0
  %423 = vmatprep.mubr.f32.mxu0 0.0
  %424 = vmatmul.mubr.f32.gmra.mrb[0].mxu0 %v85
  %v425 = vpop.f32.mrb[0].mxu0
  %v426 = vadd.f32 %v122, %v425
  %v427 = vpop.f32.mrb[0].mxu0
  %428 = vmatprep.mubr.f32.mxu0 0.0
  %429 = vmatmul.mubr.f32.gmra.mrb[0].mxu0 %v86
  %v430 = vpop.f32.mrb[0].mxu0
  %v431 = vadd.f32 %v122, %v430
  %v432 = vpop.f32.mrb[0].mxu0
  %433 = vmatprep.mubr.f32.mxu0 0.0
  %434 = vmatmul.mubr.f32.gmra.mrb[0].mxu0 %v87
  %v435 = vpop.f32.mrb[0].mxu0
  %v436 = vadd.f32 %v122, %v435
  %v437 = vpop.f32.mrb[0].mxu0
  %438 = vmatprep.mubr.f32.mxu0 0.0
  %439 = vmatmul.mubr.f32.gmra.mrb[0].mxu0 %v88
  %v440 = vpop.f32.mrb[0].mxu0
  %v441 = vadd.f32 %v122, %v440
  %v442 = vpop.f32.mrb[0].mxu0
  %443 = vmatprep.mubr.f32.mxu0 0.0
  %444 = vmatmul.mubr.f32.gmra.mrb[0].mxu0 %v89
  %v445 = vpop.f32.mrb[0].mxu0
  %v446 = vadd.f32 %v122, %v445
  %v447 = vpop.f32.mrb[0].mxu0
  %448 = vmatprep.mubr.f32.mxu0 0.0
  %449 = vmatmul.mubr.f32.gmra.mrb[0].mxu0 %v90
  %v450 = vpop.f32.mrb[0].mxu0
  %v451 = vadd.f32 %v122, %v450
  %v452 = vpop.f32.mrb[0].mxu0
  %453 = vmatprep.mubr.f32.mxu0 0.0
  %454 = vmatmul.mubr.f32.gmra.mrb[0].mxu0 %v91
  %v455 = vpop.f32.mrb[0].mxu0
  %v456 = vadd.f32 %v122, %v455
  %v457 = vpop.f32.mrb[0].mxu0
  %458 = vmatprep.mubr.f32.mxu0 0.0
  %459 = vmatmul.mubr.f32.gmra.mrb[0].mxu0 %v92
  %v460 = vpop.f32.mrb[0].mxu0
  %v461 = vadd.f32 %v122, %v460
  %v462 = vpop.f32.mrb[0].mxu0
  %463 = vmatprep.mubr.f32.mxu0 0.0
  %464 = vmatmul.mubr.f32.gmra.mrb[0].mxu0 %v93
  %v465 = vpop.f32.mrb[0].mxu0
  %v466 = vadd.f32 %v122, %v465
  %v467 = vpop.f32.mrb[0].mxu0
  %468 = vmatprep.mubr.f32.mxu0 0.0
  %469 = vmatmul.mubr.f32.gmra.mrb[0].mxu0 %v94
  %v470 = vpop.f32.mrb[0].mxu0
  %v471 = vadd.f32 %v122, %v470
  %v472 = vpop.f32.mrb[0].mxu0
  %473 = vmatprep.mubr.f32.mxu0 0.0
  %474 = vmatmul.mubr.f32.gmra.mrb[0].mxu0 %v95
  %v475 = vpop.f32.mrb[0].mxu0
  %v476 = vadd.f32 %v122, %v475
  %v477 = vpop.f32.mrb[0].mxu0
  %478 = vmatprep.mubr.f32.mxu0 0.0
  %479 = vmatmul.mubr.f32.gmra.mrb[0].mxu0 %v96
  %v480 = vpop.f32.mrb[0].mxu0
  %v481 = vadd.f32 %v122, %v480
  %v482 = vpop.f32.mrb[0].mxu0
  %483 = vmatprep.mubr.f32.mxu0 0.0
  %484 = vmatmul.mubr.f32.gmra.mrb[0].mxu0 %v97
  %v485 = vpop.f32.mrb[0].mxu0
  %v486 = vadd.f32 %v122, %v485
  %v487 = vpop.f32.mrb[0].mxu0
  %488 = vmatprep.mubr.f32.mxu0 0.0
  %489 = vmatmul.mubr.f32.gmra.mrb[0].mxu0 %v98
  %v490 = vpop.f32.mrb[0].mxu0
  %v491 = vadd.f32 %v122, %v490
  %v492 = vpop.f32.mrb[0].mxu0
  %493 = vmatprep.mubr.f32.mxu0 0.0
  %494 = vmatmul.mubr.f32.gmra.mrb[0].mxu0 %v99
  %v495 = vpop.f32.mrb[0].mxu0
  %v496 = vadd.f32 %v122, %v495
  %v497 = vpop.f32.mrb[0].mxu0
  %498 = vmatprep.mubr.f32.mxu0 0.0
  %499 = vmatmul.mubr.f32.gmra.mrb[0].mxu0 %v100
  %v500 = vpop.f32.mrb[0].mxu0
  %v501 = vadd.f32 %v122, %v500
  %v502 = vpop.f32.mrb[0].mxu0
  %503 = vdwg.mxu0
  %v504 = vmax.f32 %v191, 0.0
  %v505 = vmax.f32 %v196, 0.0
  %v506 = vmax.f32 %v201, 0.0
  %v507 = vmax.f32 %v206, 0.0
  %v508 = vmax.f32 %v211, 0.0
  %v509 = vmax.f32 %v216, 0.0
  %v510 = vmax.f32 %v221, 0.0
  %v511 = vmax.f32 %v226, 0.0
  %v512 = vmax.f32 %v231, 0.0
  %v513 = vmax.f32 %v236, 0.0
  %v514 = vmax.f32 %v241, 0.0
  %v515 = vmax.f32 %v246, 0.0
  %v516 = vmax.f32 %v251, 0.0
  %v517 = vmax.f32 %v256, 0.0
  %v518 = vmax.f32 %v261, 0.0
  %v519 = vmax.f32 %v266, 0.0
  %v520 = vmax.f32 %v271, 0.0
  %v521 = vmax.f32 %v276, 0.0
  %v522 = vmax.f32 %v281, 0.0
  %v523 = vmax.f32 %v286, 0.0
  %v524 = vmax.f32 %v291, 0.0
  %v525 = vmax.f32 %v296, 0.0
  %v526 = vmax.f32 %v301, 0.0
  %v527 = vmax.f32 %v306, 0.0
  %v528 = vmax.f32 %v311, 0.0
  %v529 = vmax.f32 %v316, 0.0
  %v530 = vmax.f32 %v321, 0.0
  %v531 = vmax.f32 %v326, 0.0
  %v532 = vmax.f32 %v331, 0.0
  %v533 = vmax.f32 %v336, 0.0
  %v534 = vmax.f32 %v341, 0.0
  %v535 = vmax.f32 %v346, 0.0
  %v536 = vmax.f32 %v351, 0.0
  %v537 = vmax.f32 %v356, 0.0
  %v538 = vmax.f32 %v361, 0.0
  %v539 = vmax.f32 %v366, 0.0
  %v540 = vmax.f32 %v371, 0.0
  %v541 = vmax.f32 %v376, 0.0
  %v542 = vmax.f32 %v381, 0.0
  %v543 = vmax.f32 %v386, 0.0
  %v544 = vmax.f32 %v391, 0.0
  %v545 = vmax.f32 %v396, 0.0
  %v546 = vmax.f32 %v401, 0.0
  %v547 = vmax.f32 %v406, 0.0
  %v548 = vmax.f32 %v411, 0.0
  %v549 = vmax.f32 %v416, 0.0
  %v550 = vmax.f32 %v421, 0.0
  %v551 = vmax.f32 %v426, 0.0
  %v552 = vmax.f32 %v431, 0.0
  %v553 = vmax.f32 %v436, 0.0
  %v554 = vmax.f32 %v441, 0.0
  %v555 = vmax.f32 %v446, 0.0
  %v556 = vmax.f32 %v451, 0.0
  %v557 = vmax.f32 %v456, 0.0
  %v558 = vmax.f32 %v461, 0.0
  %v559 = vmax.f32 %v466, 0.0
  %v560 = vmax.f32 %v471, 0.0
  %v561 = vmax.f32 %v476, 0.0
  %v562 = vmax.f32 %v481, 0.0
  %v563 = vmax.f32 %v486, 0.0
  %v564 = vmax.f32 %v491, 0.0
  %v565 = vmax.f32 %v496, 0.0
  %v566 = vmax.f32 %v501, 0.0
  %v567 = vld [vmem:[%s3] sm:$0xff]
  %v568 = vld [vmem:[%s3 + $0x8] sm:$0xff]
  %v569 = vld [vmem:[%s3 + $0x10] sm:$0xff]
  %v570 = vld [vmem:[%s3 + $0x18] sm:$0xff]
  %v571 = vld [vmem:[%s3 + $0x20] sm:$0xff]
  %v572 = vld [vmem:[%s3 + $0x28] sm:$0xff]
  %v573 = vld [vmem:[%s3 + $0x30] sm:$0xff]
  %v574 = vld [vmem:[%s3 + $0x38] sm:$0xff]
  %v575 = vld [vmem:[%s3 + $0x40] sm:$0xff]
  %v576 = vld [vmem:[%s3 + $0x48] sm:$0xff]
  %v577 = vld [vmem:[%s3 + $0x50] sm:$0xff]
  %v578 = vld [vmem:[%s3 + $0x58] sm:$0xff]
  %v579 = vld [vmem:[%s3 + $0x60] sm:$0xff]
  %v580 = vld [vmem:[%s3 + $0x68] sm:$0xff]
  %v581 = vld [vmem:[%s3 + $0x70] sm:$0xff]
  %v582 = vld [vmem:[%s3 + $0x78] sm:$0xff]
  %v583 = vld [vmem:[%s4] sm:$0x1]
  %v585 = vlaneseq
  %v586 = vshrl.u32 %v585, 7
  %v587 = vsub.s32 0, %v586
  %v588 = vrot.slane %v583, %v587
  %590 = vmatprep.subr.mxu0 0.0
  %591 = vmatpush1.msra.mxu0 %v567
  %592 = vmatprep.subr.mxu0 0.0
  %593 = vmatpush1.msra.mxu0 %v568
  %594 = vmatprep.subr.mxu0 0.0
  %595 = vmatpush1.msra.mxu0 %v569
  %596 = vmatprep.subr.mxu0 0.0
  %597 = vmatpush1.msra.mxu0 %v570
  %598 = vmatprep.subr.mxu0 0.0
  %599 = vmatpush1.msra.mxu0 %v571
  %600 = vmatprep.subr.mxu0 0.0
  %601 = vmatpush1.msra.mxu0 %v572
  %602 = vmatprep.subr.mxu0 0.0
  %603 = vmatpush1.msra.mxu0 %v573
  %604 = vmatprep.subr.mxu0 0.0
  %605 = vmatpush1.msra.mxu0 %v574
  %606 = vmatprep.subr.mxu0 0.0
  %607 = vmatpush1.msra.mxu0 %v575
  %608 = vmatprep.subr.mxu0 0.0
  %609 = vmatpush1.msra.mxu0 %v576
  %610 = vmatprep.subr.mxu0 0.0
  %611 = vmatpush1.msra.mxu0 %v577
  %612 = vmatprep.subr.mxu0 0.0
  %613 = vmatpush1.msra.mxu0 %v578
  %614 = vmatprep.subr.mxu0 0.0
  %615 = vmatpush1.msra.mxu0 %v579
  %616 = vmatprep.subr.mxu0 0.0
  %617 = vmatpush1.msra.mxu0 %v580
  %618 = vmatprep.subr.mxu0 0.0
  %619 = vmatpush1.msra.mxu0 %v581
  %620 = vmatprep.subr.mxu0 0.0
  %621 = vmatpush1.msra.mxu0 %v582
  %622 = vmatprep.subr.mxu0 0.0
  %623 = vmatpush1.msra.mxu0 0.0
  %624 = vmatprep.subr.mxu0 0.0
  %625 = vmatpush1.msra.mxu0 0.0
  %626 = vmatprep.subr.mxu0 0.0
  %627 = vmatpush1.msra.mxu0 0.0
  %628 = vmatprep.subr.mxu0 0.0
  %629 = vmatpush1.msra.mxu0 0.0
  %630 = vmatprep.subr.mxu0 0.0
  %631 = vmatpush1.msra.mxu0 0.0
  %632 = vmatprep.subr.mxu0 0.0
  %633 = vmatpush1.msra.mxu0 0.0
  %634 = vmatprep.subr.mxu0 0.0
  %635 = vmatpush1.msra.mxu0 0.0
  %636 = vmatprep.subr.mxu0 0.0
  %637 = vmatpush1.msra.mxu0 0.0
  %638 = vmatprep.subr.mxu0 0.0
  %639 = vmatpush1.msra.mxu0 0.0
  %640 = vmatprep.subr.mxu0 0.0
  %641 = vmatpush1.msra.mxu0 0.0
  %642 = vmatprep.subr.mxu0 0.0
  %643 = vmatpush1.msra.mxu0 0.0
  %644 = vmatprep.subr.mxu0 0.0
  %645 = vmatpush1.msra.mxu0 0.0
  %646 = vmatprep.subr.mxu0 0.0
  %647 = vmatpush1.msra.mxu0 0.0
  %648 = vmatprep.subr.mxu0 0.0
  %649 = vmatpush1.msra.mxu0 0.0
  %650 = vmatprep.subr.mxu0 0.0
  %651 = vmatpush1.msra.mxu0 0.0
  %652 = vmatprep.subr.mxu0 0.0
  %653 = vmatpush1.msra.mxu0 0.0
  %654 = vmatprep.mubr.f32.mxu0 0.0
  %655 = vmatmul.mubr.f32.gmra.mrb[0].mxu0 %v504
  %v656 = vpop.f32.mrb[0].mxu0
  %v657 = vadd.f32 %v588, %v656
  %v658 = vpop.f32.mrb[0].mxu0
  %659 = vmatprep.mubr.f32.mxu0 0.0
  %660 = vmatmul.mubr.f32.gmra.mrb[0].mxu0 %v505
  %v661 = vpop.f32.mrb[0].mxu0
  %v662 = vadd.f32 %v588, %v661
  %v663 = vpop.f32.mrb[0].mxu0
  %664 = vmatprep.mubr.f32.mxu0 0.0
  %665 = vmatmul.mubr.f32.gmra.mrb[0].mxu0 %v506
  %v666 = vpop.f32.mrb[0].mxu0
  %v667 = vadd.f32 %v588, %v666
  %v668 = vpop.f32.mrb[0].mxu0
  %669 = vmatprep.mubr.f32.mxu0 0.0
  %670 = vmatmul.mubr.f32.gmra.mrb[0].mxu0 %v507
  %v671 = vpop.f32.mrb[0].mxu0
  %v672 = vadd.f32 %v588, %v671
  %v673 = vpop.f32.mrb[0].mxu0
  %674 = vmatprep.mubr.f32.mxu0 0.0
  %675 = vmatmul.mubr.f32.gmra.mrb[0].mxu0 %v508
  %v676 = vpop.f32.mrb[0].mxu0
  %v677 = vadd.f32 %v588, %v676
  %v678 = vpop.f32.mrb[0].mxu0
  %679 = vmatprep.mubr.f32.mxu0 0.0
  %680 = vmatmul.mubr.f32.gmra.mrb[0].mxu0 %v509
  %v681 = vpop.f32.mrb[0].mxu0
  %v682 = vadd.f32 %v588, %v681
  %v683 = vpop.f32.mrb[0].mxu0
  %684 = vmatprep.mubr.f32.mxu0 0.0
  %685 = vmatmul.mubr.f32.gmra.mrb[0].mxu0 %v510
  %v686 = vpop.f32.mrb[0].mxu0
  %v687 = vadd.f32 %v588, %v686
  %v688 = vpop.f32.mrb[0].mxu0
  %689 = vmatprep.mubr.f32.mxu0 0.0
  %690 = vmatmul.mubr.f32.gmra.mrb[0].mxu0 %v511
  %v691 = vpop.f32.mrb[0].mxu0
  %v692 = vadd.f32 %v588, %v691
  %v693 = vpop.f32.mrb[0].mxu0
  %694 = vmatprep.mubr.f32.mxu0 0.0
  %695 = vmatmul.mubr.f32.gmra.mrb[0].mxu0 %v512
  %v696 = vpop.f32.mrb[0].mxu0
  %v697 = vadd.f32 %v588, %v696
  %v698 = vpop.f32.mrb[0].mxu0
  %699 = vmatprep.mubr.f32.mxu0 0.0
  %700 = vmatmul.mubr.f32.gmra.mrb[0].mxu0 %v513
  %v701 = vpop.f32.mrb[0].mxu0
  %v702 = vadd.f32 %v588, %v701
  %v703 = vpop.f32.mrb[0].mxu0
  %704 = vmatprep.mubr.f32.mxu0 0.0
  %705 = vmatmul.mubr.f32.gmra.mrb[0].mxu0 %v514
  %v706 = vpop.f32.mrb[0].mxu0
  %v707 = vadd.f32 %v588, %v706
  %v708 = vpop.f32.mrb[0].mxu0
  %709 = vmatprep.mubr.f32.mxu0 0.0
  %710 = vmatmul.mubr.f32.gmra.mrb[0].mxu0 %v515
  %v711 = vpop.f32.mrb[0].mxu0
  %v712 = vadd.f32 %v588, %v711
  %v713 = vpop.f32.mrb[0].mxu0
  %714 = vmatprep.mubr.f32.mxu0 0.0
  %715 = vmatmul.mubr.f32.gmra.mrb[0].mxu0 %v516
  %v716 = vpop.f32.mrb[0].mxu0
  %v717 = vadd.f32 %v588, %v716
  %v718 = vpop.f32.mrb[0].mxu0
  %719 = vmatprep.mubr.f32.mxu0 0.0
  %720 = vmatmul.mubr.f32.gmra.mrb[0].mxu0 %v517
  %v721 = vpop.f32.mrb[0].mxu0
  %v722 = vadd.f32 %v588, %v721
  %v723 = vpop.f32.mrb[0].mxu0
  %724 = vmatprep.mubr.f32.mxu0 0.0
  %725 = vmatmul.mubr.f32.gmra.mrb[0].mxu0 %v518
  %v726 = vpop.f32.mrb[0].mxu0
  %v727 = vadd.f32 %v588, %v726
  %v728 = vpop.f32.mrb[0].mxu0
  %729 = vmatprep.mubr.f32.mxu0 0.0
  %730 = vmatmul.mubr.f32.gmra.mrb[0].mxu0 %v519
  %v731 = vpop.f32.mrb[0].mxu0
  %v732 = vadd.f32 %v588, %v731
  %v733 = vpop.f32.mrb[0].mxu0
  %734 = vmatprep.mubr.f32.mxu0 0.0
  %735 = vmatmul.mubr.f32.gmra.mrb[0].mxu0 %v520
  %v736 = vpop.f32.mrb[0].mxu0
  %v737 = vadd.f32 %v588, %v736
  %v738 = vpop.f32.mrb[0].mxu0
  %739 = vmatprep.mubr.f32.mxu0 0.0
  %740 = vmatmul.mubr.f32.gmra.mrb[0].mxu0 %v521
  %v741 = vpop.f32.mrb[0].mxu0
  %v742 = vadd.f32 %v588, %v741
  %v743 = vpop.f32.mrb[0].mxu0
  %744 = vmatprep.mubr.f32.mxu0 0.0
  %745 = vmatmul.mubr.f32.gmra.mrb[0].mxu0 %v522
  %v746 = vpop.f32.mrb[0].mxu0
  %v747 = vadd.f32 %v588, %v746
  %v748 = vpop.f32.mrb[0].mxu0
  %749 = vmatprep.mubr.f32.mxu0 0.0
  %750 = vmatmul.mubr.f32.gmra.mrb[0].mxu0 %v523
  %v751 = vpop.f32.mrb[0].mxu0
  %v752 = vadd.f32 %v588, %v751
  %v753 = vpop.f32.mrb[0].mxu0
  %754 = vmatprep.mubr.f32.mxu0 0.0
  %755 = vmatmul.mubr.f32.gmra.mrb[0].mxu0 %v524
  %v756 = vpop.f32.mrb[0].mxu0
  %v757 = vadd.f32 %v588, %v756
  %v758 = vpop.f32.mrb[0].mxu0
  %759 = vmatprep.mubr.f32.mxu0 0.0
  %760 = vmatmul.mubr.f32.gmra.mrb[0].mxu0 %v525
  %v761 = vpop.f32.mrb[0].mxu0
  %v762 = vadd.f32 %v588, %v761
  %v763 = vpop.f32.mrb[0].mxu0
  %764 = vmatprep.mubr.f32.mxu0 0.0
  %765 = vmatmul.mubr.f32.gmra.mrb[0].mxu0 %v526
  %v766 = vpop.f32.mrb[0].mxu0
  %v767 = vadd.f32 %v588, %v766
  %v768 = vpop.f32.mrb[0].mxu0
  %769 = vmatprep.mubr.f32.mxu0 0.0
  %770 = vmatmul.mubr.f32.gmra.mrb[0].mxu0 %v527
  %v771 = vpop.f32.mrb[0].mxu0
  %v772 = vadd.f32 %v588, %v771
  %v773 = vpop.f32.mrb[0].mxu0
  %774 = vmatprep.mubr.f32.mxu0 0.0
  %775 = vmatmul.mubr.f32.gmra.mrb[0].mxu0 %v528
  %v776 = vpop.f32.mrb[0].mxu0
  %v777 = vadd.f32 %v588, %v776
  %v778 = vpop.f32.mrb[0].mxu0
  %779 = vmatprep.mubr.f32.mxu0 0.0
  %780 = vmatmul.mubr.f32.gmra.mrb[0].mxu0 %v529
  %v781 = vpop.f32.mrb[0].mxu0
  %v782 = vadd.f32 %v588, %v781
  %v783 = vpop.f32.mrb[0].mxu0
  %784 = vmatprep.mubr.f32.mxu0 0.0
  %785 = vmatmul.mubr.f32.gmra.mrb[0].mxu0 %v530
  %v786 = vpop.f32.mrb[0].mxu0
  %v787 = vadd.f32 %v588, %v786
  %v788 = vpop.f32.mrb[0].mxu0
  %789 = vmatprep.mubr.f32.mxu0 0.0
  %790 = vmatmul.mubr.f32.gmra.mrb[0].mxu0 %v531
  %v791 = vpop.f32.mrb[0].mxu0
  %v792 = vadd.f32 %v588, %v791
  %v793 = vpop.f32.mrb[0].mxu0
  %794 = vmatprep.mubr.f32.mxu0 0.0
  %795 = vmatmul.mubr.f32.gmra.mrb[0].mxu0 %v532
  %v796 = vpop.f32.mrb[0].mxu0
  %v797 = vadd.f32 %v588, %v796
  %v798 = vpop.f32.mrb[0].mxu0
  %799 = vmatprep.mubr.f32.mxu0 0.0
  %800 = vmatmul.mubr.f32.gmra.mrb[0].mxu0 %v533
  %v801 = vpop.f32.mrb[0].mxu0
  %v802 = vadd.f32 %v588, %v801
  %v803 = vpop.f32.mrb[0].mxu0
  %804 = vmatprep.mubr.f32.mxu0 0.0
  %805 = vmatmul.mubr.f32.gmra.mrb[0].mxu0 %v534
  %v806 = vpop.f32.mrb[0].mxu0
  %v807 = vadd.f32 %v588, %v806
  %v808 = vpop.f32.mrb[0].mxu0
  %809 = vmatprep.mubr.f32.mxu0 0.0
  %810 = vmatmul.mubr.f32.gmra.mrb[0].mxu0 %v535
  %v811 = vpop.f32.mrb[0].mxu0
  %v812 = vadd.f32 %v588, %v811
  %v813 = vpop.f32.mrb[0].mxu0
  %814 = vmatprep.mubr.f32.mxu0 0.0
  %815 = vmatmul.mubr.f32.gmra.mrb[0].mxu0 %v536
  %v816 = vpop.f32.mrb[0].mxu0
  %v817 = vadd.f32 %v588, %v816
  %v818 = vpop.f32.mrb[0].mxu0
  %819 = vmatprep.mubr.f32.mxu0 0.0
  %820 = vmatmul.mubr.f32.gmra.mrb[0].mxu0 %v537
  %v821 = vpop.f32.mrb[0].mxu0
  %v822 = vadd.f32 %v588, %v821
  %v823 = vpop.f32.mrb[0].mxu0
  %824 = vmatprep.mubr.f32.mxu0 0.0
  %825 = vmatmul.mubr.f32.gmra.mrb[0].mxu0 %v538
  %v826 = vpop.f32.mrb[0].mxu0
  %v827 = vadd.f32 %v588, %v826
  %v828 = vpop.f32.mrb[0].mxu0
  %829 = vmatprep.mubr.f32.mxu0 0.0
  %830 = vmatmul.mubr.f32.gmra.mrb[0].mxu0 %v539
  %v831 = vpop.f32.mrb[0].mxu0
  %v832 = vadd.f32 %v588, %v831
  %v833 = vpop.f32.mrb[0].mxu0
  %834 = vmatprep.mubr.f32.mxu0 0.0
  %835 = vmatmul.mubr.f32.gmra.mrb[0].mxu0 %v540
  %v836 = vpop.f32.mrb[0].mxu0
  %v837 = vadd.f32 %v588, %v836
  %v838 = vpop.f32.mrb[0].mxu0
  %839 = vmatprep.mubr.f32.mxu0 0.0
  %840 = vmatmul.mubr.f32.gmra.mrb[0].mxu0 %v541
  %v841 = vpop.f32.mrb[0].mxu0
  %v842 = vadd.f32 %v588, %v841
  %v843 = vpop.f32.mrb[0].mxu0
  %844 = vmatprep.mubr.f32.mxu0 0.0
  %845 = vmatmul.mubr.f32.gmra.mrb[0].mxu0 %v542
  %v846 = vpop.f32.mrb[0].mxu0
  %v847 = vadd.f32 %v588, %v846
  %v848 = vpop.f32.mrb[0].mxu0
  %849 = vmatprep.mubr.f32.mxu0 0.0
  %850 = vmatmul.mubr.f32.gmra.mrb[0].mxu0 %v543
  %v851 = vpop.f32.mrb[0].mxu0
  %v852 = vadd.f32 %v588, %v851
  %v853 = vpop.f32.mrb[0].mxu0
  %854 = vmatprep.mubr.f32.mxu0 0.0
  %855 = vmatmul.mubr.f32.gmra.mrb[0].mxu0 %v544
  %v856 = vpop.f32.mrb[0].mxu0
  %v857 = vadd.f32 %v588, %v856
  %v858 = vpop.f32.mrb[0].mxu0
  %859 = vmatprep.mubr.f32.mxu0 0.0
  %860 = vmatmul.mubr.f32.gmra.mrb[0].mxu0 %v545
  %v861 = vpop.f32.mrb[0].mxu0
  %v862 = vadd.f32 %v588, %v861
  %v863 = vpop.f32.mrb[0].mxu0
  %864 = vmatprep.mubr.f32.mxu0 0.0
  %865 = vmatmul.mubr.f32.gmra.mrb[0].mxu0 %v546
  %v866 = vpop.f32.mrb[0].mxu0
  %v867 = vadd.f32 %v588, %v866
  %v868 = vpop.f32.mrb[0].mxu0
  %869 = vmatprep.mubr.f32.mxu0 0.0
  %870 = vmatmul.mubr.f32.gmra.mrb[0].mxu0 %v547
  %v871 = vpop.f32.mrb[0].mxu0
  %v872 = vadd.f32 %v588, %v871
  %v873 = vpop.f32.mrb[0].mxu0
  %874 = vmatprep.mubr.f32.mxu0 0.0
  %875 = vmatmul.mubr.f32.gmra.mrb[0].mxu0 %v548
  %v876 = vpop.f32.mrb[0].mxu0
  %v877 = vadd.f32 %v588, %v876
  %v878 = vpop.f32.mrb[0].mxu0
  %879 = vmatprep.mubr.f32.mxu0 0.0
  %880 = vmatmul.mubr.f32.gmra.mrb[0].mxu0 %v549
  %v881 = vpop.f32.mrb[0].mxu0
  %v882 = vadd.f32 %v588, %v881
  %v883 = vpop.f32.mrb[0].mxu0
  %884 = vmatprep.mubr.f32.mxu0 0.0
  %885 = vmatmul.mubr.f32.gmra.mrb[0].mxu0 %v550
  %v886 = vpop.f32.mrb[0].mxu0
  %v887 = vadd.f32 %v588, %v886
  %v888 = vpop.f32.mrb[0].mxu0
  %889 = vmatprep.mubr.f32.mxu0 0.0
  %890 = vmatmul.mubr.f32.gmra.mrb[0].mxu0 %v551
  %v891 = vpop.f32.mrb[0].mxu0
  %v892 = vadd.f32 %v588, %v891
  %v893 = vpop.f32.mrb[0].mxu0
  %894 = vmatprep.mubr.f32.mxu0 0.0
  %895 = vmatmul.mubr.f32.gmra.mrb[0].mxu0 %v552
  %v896 = vpop.f32.mrb[0].mxu0
  %v897 = vadd.f32 %v588, %v896
  %v898 = vpop.f32.mrb[0].mxu0
  %899 = vmatprep.mubr.f32.mxu0 0.0
  %900 = vmatmul.mubr.f32.gmra.mrb[0].mxu0 %v553
  %v901 = vpop.f32.mrb[0].mxu0
  %v902 = vadd.f32 %v588, %v901
  %v903 = vpop.f32.mrb[0].mxu0
  %904 = vmatprep.mubr.f32.mxu0 0.0
  %905 = vmatmul.mubr.f32.gmra.mrb[0].mxu0 %v554
  %v906 = vpop.f32.mrb[0].mxu0
  %v907 = vadd.f32 %v588, %v906
  %v908 = vpop.f32.mrb[0].mxu0
  %909 = vmatprep.mubr.f32.mxu0 0.0
  %910 = vmatmul.mubr.f32.gmra.mrb[0].mxu0 %v555
  %v911 = vpop.f32.mrb[0].mxu0
  %v912 = vadd.f32 %v588, %v911
  %v913 = vpop.f32.mrb[0].mxu0
  %914 = vmatprep.mubr.f32.mxu0 0.0
  %915 = vmatmul.mubr.f32.gmra.mrb[0].mxu0 %v556
  %v916 = vpop.f32.mrb[0].mxu0
  %v917 = vadd.f32 %v588, %v916
  %v918 = vpop.f32.mrb[0].mxu0
  %919 = vmatprep.mubr.f32.mxu0 0.0
  %920 = vmatmul.mubr.f32.gmra.mrb[0].mxu0 %v557
  %v921 = vpop.f32.mrb[0].mxu0
  %v922 = vadd.f32 %v588, %v921
  %v923 = vpop.f32.mrb[0].mxu0
  %924 = vmatprep.mubr.f32.mxu0 0.0
  %925 = vmatmul.mubr.f32.gmra.mrb[0].mxu0 %v558
  %v926 = vpop.f32.mrb[0].mxu0
  %v927 = vadd.f32 %v588, %v926
  %v928 = vpop.f32.mrb[0].mxu0
  %929 = vmatprep.mubr.f32.mxu0 0.0
  %930 = vmatmul.mubr.f32.gmra.mrb[0].mxu0 %v559
  %v931 = vpop.f32.mrb[0].mxu0
  %v932 = vadd.f32 %v588, %v931
  %v933 = vpop.f32.mrb[0].mxu0
  %934 = vmatprep.mubr.f32.mxu0 0.0
  %935 = vmatmul.mubr.f32.gmra.mrb[0].mxu0 %v560
  %v936 = vpop.f32.mrb[0].mxu0
  %v937 = vadd.f32 %v588, %v936
  %v938 = vpop.f32.mrb[0].mxu0
  %939 = vmatprep.mubr.f32.mxu0 0.0
  %940 = vmatmul.mubr.f32.gmra.mrb[0].mxu0 %v561
  %v941 = vpop.f32.mrb[0].mxu0
  %v942 = vadd.f32 %v588, %v941
  %v943 = vpop.f32.mrb[0].mxu0
  %944 = vmatprep.mubr.f32.mxu0 0.0
  %945 = vmatmul.mubr.f32.gmra.mrb[0].mxu0 %v562
  %v946 = vpop.f32.mrb[0].mxu0
  %v947 = vadd.f32 %v588, %v946
  %v948 = vpop.f32.mrb[0].mxu0
  %949 = vmatprep.mubr.f32.mxu0 0.0
  %950 = vmatmul.mubr.f32.gmra.mrb[0].mxu0 %v563
  %v951 = vpop.f32.mrb[0].mxu0
  %v952 = vadd.f32 %v588, %v951
  %v953 = vpop.f32.mrb[0].mxu0
  %954 = vmatprep.mubr.f32.mxu0 0.0
  %955 = vmatmul.mubr.f32.gmra.mrb[0].mxu0 %v564
  %v956 = vpop.f32.mrb[0].mxu0
  %v957 = vadd.f32 %v588, %v956
  %v958 = vpop.f32.mrb[0].mxu0
  %959 = vmatprep.mubr.f32.mxu0 0.0
  %960 = vmatmul.mubr.f32.gmra.mrb[0].mxu0 %v565
  %v961 = vpop.f32.mrb[0].mxu0
  %v962 = vadd.f32 %v588, %v961
  %v963 = vpop.f32.mrb[0].mxu0
  %964 = vmatprep.mubr.f32.mxu0 0.0
  %965 = vmatmul.mubr.f32.gmra.mrb[0].mxu0 %v566
  %v966 = vpop.f32.mrb[0].mxu0
  %v967 = vadd.f32 %v588, %v966
  %v968 = vpop.f32.mrb[0].mxu0
  %969 = vdwg.mxu0
  %v970 = vmax.f32 %v657, 0.0
  %v971 = vmax.f32 %v662, 0.0
  %v972 = vmax.f32 %v667, 0.0
  %v973 = vmax.f32 %v672, 0.0
  %v974 = vmax.f32 %v677, 0.0
  %v975 = vmax.f32 %v682, 0.0
  %v976 = vmax.f32 %v687, 0.0
  %v977 = vmax.f32 %v692, 0.0
  %v978 = vmax.f32 %v697, 0.0
  %v979 = vmax.f32 %v702, 0.0
  %v980 = vmax.f32 %v707, 0.0
  %v981 = vmax.f32 %v712, 0.0
  %v982 = vmax.f32 %v717, 0.0
  %v983 = vmax.f32 %v722, 0.0
  %v984 = vmax.f32 %v727, 0.0
  %v985 = vmax.f32 %v732, 0.0
  %v986 = vmax.f32 %v737, 0.0
  %v987 = vmax.f32 %v742, 0.0
  %v988 = vmax.f32 %v747, 0.0
  %v989 = vmax.f32 %v752, 0.0
  %v990 = vmax.f32 %v757, 0.0
  %v991 = vmax.f32 %v762, 0.0
  %v992 = vmax.f32 %v767, 0.0
  %v993 = vmax.f32 %v772, 0.0
  %v994 = vmax.f32 %v777, 0.0
  %v995 = vmax.f32 %v782, 0.0
  %v996 = vmax.f32 %v787, 0.0
  %v997 = vmax.f32 %v792, 0.0
  %v998 = vmax.f32 %v797, 0.0
  %v999 = vmax.f32 %v802, 0.0
  %v1000 = vmax.f32 %v807, 0.0
  %v1001 = vmax.f32 %v812, 0.0
  %v1002 = vmax.f32 %v817, 0.0
  %v1003 = vmax.f32 %v822, 0.0
  %v1004 = vmax.f32 %v827, 0.0
  %v1005 = vmax.f32 %v832, 0.0
  %v1006 = vmax.f32 %v837, 0.0
  %v1007 = vmax.f32 %v842, 0.0
  %v1008 = vmax.f32 %v847, 0.0
  %v1009 = vmax.f32 %v852, 0.0
  %v1010 = vmax.f32 %v857, 0.0
  %v1011 = vmax.f32 %v862, 0.0
  %v1012 = vmax.f32 %v867, 0.0
  %v1013 = vmax.f32 %v872, 0.0
  %v1014 = vmax.f32 %v877, 0.0
  %v1015 = vmax.f32 %v882, 0.0
  %v1016 = vmax.f32 %v887, 0.0
  %v1017 = vmax.f32 %v892, 0.0
  %v1018 = vmax.f32 %v897, 0.0
  %v1019 = vmax.f32 %v902, 0.0
  %v1020 = vmax.f32 %v907, 0.0
  %v1021 = vmax.f32 %v912, 0.0
  %v1022 = vmax.f32 %v917, 0.0
  %v1023 = vmax.f32 %v922, 0.0
  %v1024 = vmax.f32 %v927, 0.0
  %v1025 = vmax.f32 %v932, 0.0
  %v1026 = vmax.f32 %v937, 0.0
  %v1027 = vmax.f32 %v942, 0.0
  %v1028 = vmax.f32 %v947, 0.0
  %v1029 = vmax.f32 %v952, 0.0
  %v1030 = vmax.f32 %v957, 0.0
  %v1031 = vmax.f32 %v962, 0.0
  %v1032 = vmax.f32 %v967, 0.0
  %v1033 = vld [vmem:[%s5] sm:$0xff]
  %v1034 = vld [vmem:[%s5 + $0x8] sm:$0xff]
  %v1035 = vld [vmem:[%s5 + $0x10] sm:$0xff]
  %v1036 = vld [vmem:[%s5 + $0x18] sm:$0xff]
  %v1037 = vld [vmem:[%s5 + $0x20] sm:$0xff]
  %v1038 = vld [vmem:[%s5 + $0x28] sm:$0xff]
  %v1039 = vld [vmem:[%s5 + $0x30] sm:$0xff]
  %v1040 = vld [vmem:[%s5 + $0x38] sm:$0xff]
  %v1041 = vld [vmem:[%s5 + $0x40] sm:$0xff]
  %v1042 = vld [vmem:[%s5 + $0x48] sm:$0xff]
  %v1043 = vld [vmem:[%s5 + $0x50] sm:$0xff]
  %v1044 = vld [vmem:[%s5 + $0x58] sm:$0xff]
  %v1045 = vld [vmem:[%s5 + $0x60] sm:$0xff]
  %v1046 = vld [vmem:[%s5 + $0x68] sm:$0xff]
  %v1047 = vld [vmem:[%s5 + $0x70] sm:$0xff]
  %v1048 = vld [vmem:[%s5 + $0x78] sm:$0xff]
  %v1049 = vld [vmem:[%s6] sm:$0x1]
  %v1051 = vlaneseq
  %v1052 = vshrl.u32 %v1051, 7
  %v1053 = vsub.s32 0, %v1052
  %v1054 = vrot.slane %v1049, %v1053
  %1056 = vmatprep.subr.mxu0 0.0
  %1057 = vmatpush1.msra.mxu0 %v1033
  %1058 = vmatprep.subr.mxu0 0.0
  %1059 = vmatpush1.msra.mxu0 %v1034
  %1060 = vmatprep.subr.mxu0 0.0
  %1061 = vmatpush1.msra.mxu0 %v1035
  %1062 = vmatprep.subr.mxu0 0.0
  %1063 = vmatpush1.msra.mxu0 %v1036
  %1064 = vmatprep.subr.mxu0 0.0
  %1065 = vmatpush1.msra.mxu0 %v1037
  %1066 = vmatprep.subr.mxu0 0.0
  %1067 = vmatpush1.msra.mxu0 %v1038
  %1068 = vmatprep.subr.mxu0 0.0
  %1069 = vmatpush1.msra.mxu0 %v1039
  %1070 = vmatprep.subr.mxu0 0.0
  %1071 = vmatpush1.msra.mxu0 %v1040
  %1072 = vmatprep.subr.mxu0 0.0
  %1073 = vmatpush1.msra.mxu0 %v1041
  %1074 = vmatprep.subr.mxu0 0.0
  %1075 = vmatpush1.msra.mxu0 %v1042
  %1076 = vmatprep.subr.mxu0 0.0
  %1077 = vmatpush1.msra.mxu0 %v1043
  %1078 = vmatprep.subr.mxu0 0.0
  %1079 = vmatpush1.msra.mxu0 %v1044
  %1080 = vmatprep.subr.mxu0 0.0
  %1081 = vmatpush1.msra.mxu0 %v1045
  %1082 = vmatprep.subr.mxu0 0.0
  %1083 = vmatpush1.msra.mxu0 %v1046
  %1084 = vmatprep.subr.mxu0 0.0
  %1085 = vmatpush1.msra.mxu0 %v1047
  %1086 = vmatprep.subr.mxu0 0.0
  %1087 = vmatpush1.msra.mxu0 %v1048
  %1088 = vmatprep.subr.mxu0 0.0
  %1089 = vmatpush1.msra.mxu0 0.0
  %1090 = vmatprep.subr.mxu0 0.0
  %1091 = vmatpush1.msra.mxu0 0.0
  %1092 = vmatprep.subr.mxu0 0.0
  %1093 = vmatpush1.msra.mxu0 0.0
  %1094 = vmatprep.subr.mxu0 0.0
  %1095 = vmatpush1.msra.mxu0 0.0
  %1096 = vmatprep.subr.mxu0 0.0
  %1097 = vmatpush1.msra.mxu0 0.0
  %1098 = vmatprep.subr.mxu0 0.0
  %1099 = vmatpush1.msra.mxu0 0.0
  %1100 = vmatprep.subr.mxu0 0.0
  %1101 = vmatpush1.msra.mxu0 0.0
  %1102 = vmatprep.subr.mxu0 0.0
  %1103 = vmatpush1.msra.mxu0 0.0
  %1104 = vmatprep.subr.mxu0 0.0
  %1105 = vmatpush1.msra.mxu0 0.0
  %1106 = vmatprep.subr.mxu0 0.0
  %1107 = vmatpush1.msra.mxu0 0.0
  %1108 = vmatprep.subr.mxu0 0.0
  %1109 = vmatpush1.msra.mxu0 0.0
  %1110 = vmatprep.subr.mxu0 0.0
  %1111 = vmatpush1.msra.mxu0 0.0
  %1112 = vmatprep.subr.mxu0 0.0
  %1113 = vmatpush1.msra.mxu0 0.0
  %1114 = vmatprep.subr.mxu0 0.0
  %1115 = vmatpush1.msra.mxu0 0.0
  %1116 = vmatprep.subr.mxu0 0.0
  %1117 = vmatpush1.msra.mxu0 0.0
  %1118 = vmatprep.subr.mxu0 0.0
  %1119 = vmatpush1.msra.mxu0 0.0
  %1120 = vmatprep.mubr.f32.mxu0 0.0
  %1121 = vmatmul.mubr.f32.gmra.mrb[0].mxu0 %v970
  %v1122 = vpop.f32.mrb[0].mxu0
  %v1123 = vadd.f32 %v1054, %v1122
  %v1124 = vpop.f32.mrb[0].mxu0
  %1125 = vmatprep.mubr.f32.mxu0 0.0
  %1126 = vmatmul.mubr.f32.gmra.mrb[0].mxu0 %v971
  %v1127 = vpop.f32.mrb[0].mxu0
  %v1128 = vadd.f32 %v1054, %v1127
  %v1129 = vpop.f32.mrb[0].mxu0
  %1130 = vmatprep.mubr.f32.mxu0 0.0
  %1131 = vmatmul.mubr.f32.gmra.mrb[0].mxu0 %v972
  %v1132 = vpop.f32.mrb[0].mxu0
  %v1133 = vadd.f32 %v1054, %v1132
  %v1134 = vpop.f32.mrb[0].mxu0
  %1135 = vmatprep.mubr.f32.mxu0 0.0
  %1136 = vmatmul.mubr.f32.gmra.mrb[0].mxu0 %v973
  %v1137 = vpop.f32.mrb[0].mxu0
  %v1138 = vadd.f32 %v1054, %v1137
  %v1139 = vpop.f32.mrb[0].mxu0
  %1140 = vmatprep.mubr.f32.mxu0 0.0
  %1141 = vmatmul.mubr.f32.gmra.mrb[0].mxu0 %v974
  %v1142 = vpop.f32.mrb[0].mxu0
  %v1143 = vadd.f32 %v1054, %v1142
  %v1144 = vpop.f32.mrb[0].mxu0
  %1145 = vmatprep.mubr.f32.mxu0 0.0
  %1146 = vmatmul.mubr.f32.gmra.mrb[0].mxu0 %v975
  %v1147 = vpop.f32.mrb[0].mxu0
  %v1148 = vadd.f32 %v1054, %v1147
  %v1149 = vpop.f32.mrb[0].mxu0
  %1150 = vmatprep.mubr.f32.mxu0 0.0
  %1151 = vmatmul.mubr.f32.gmra.mrb[0].mxu0 %v976
  %v1152 = vpop.f32.mrb[0].mxu0
  %v1153 = vadd.f32 %v1054, %v1152
  %v1154 = vpop.f32.mrb[0].mxu0
  %1155 = vmatprep.mubr.f32.mxu0 0.0
  %1156 = vmatmul.mubr.f32.gmra.mrb[0].mxu0 %v977
  %v1157 = vpop.f32.mrb[0].mxu0
  %v1158 = vadd.f32 %v1054, %v1157
  %v1159 = vpop.f32.mrb[0].mxu0
  %1160 = vmatprep.mubr.f32.mxu0 0.0
  %1161 = vmatmul.mubr.f32.gmra.mrb[0].mxu0 %v978
  %v1162 = vpop.f32.mrb[0].mxu0
  %v1163 = vadd.f32 %v1054, %v1162
  %v1164 = vpop.f32.mrb[0].mxu0
  %1165 = vmatprep.mubr.f32.mxu0 0.0
  %1166 = vmatmul.mubr.f32.gmra.mrb[0].mxu0 %v979
  %v1167 = vpop.f32.mrb[0].mxu0
  %v1168 = vadd.f32 %v1054, %v1167
  %v1169 = vpop.f32.mrb[0].mxu0
  %1170 = vmatprep.mubr.f32.mxu0 0.0
  %1171 = vmatmul.mubr.f32.gmra.mrb[0].mxu0 %v980
  %v1172 = vpop.f32.mrb[0].mxu0
  %v1173 = vadd.f32 %v1054, %v1172
  %v1174 = vpop.f32.mrb[0].mxu0
  %1175 = vmatprep.mubr.f32.mxu0 0.0
  %1176 = vmatmul.mubr.f32.gmra.mrb[0].mxu0 %v981
  %v1177 = vpop.f32.mrb[0].mxu0
  %v1178 = vadd.f32 %v1054, %v1177
  %v1179 = vpop.f32.mrb[0].mxu0
  %1180 = vmatprep.mubr.f32.mxu0 0.0
  %1181 = vmatmul.mubr.f32.gmra.mrb[0].mxu0 %v982
  %v1182 = vpop.f32.mrb[0].mxu0
  %v1183 = vadd.f32 %v1054, %v1182
  %v1184 = vpop.f32.mrb[0].mxu0
  %1185 = vmatprep.mubr.f32.mxu0 0.0
  %1186 = vmatmul.mubr.f32.gmra.mrb[0].mxu0 %v983
  %v1187 = vpop.f32.mrb[0].mxu0
  %v1188 = vadd.f32 %v1054, %v1187
  %v1189 = vpop.f32.mrb[0].mxu0
  %1190 = vmatprep.mubr.f32.mxu0 0.0
  %1191 = vmatmul.mubr.f32.gmra.mrb[0].mxu0 %v984
  %v1192 = vpop.f32.mrb[0].mxu0
  %v1193 = vadd.f32 %v1054, %v1192
  %v1194 = vpop.f32.mrb[0].mxu0
  %1195 = vmatprep.mubr.f32.mxu0 0.0
  %1196 = vmatmul.mubr.f32.gmra.mrb[0].mxu0 %v985
  %v1197 = vpop.f32.mrb[0].mxu0
  %v1198 = vadd.f32 %v1054, %v1197
  %v1199 = vpop.f32.mrb[0].mxu0
  %1200 = vmatprep.mubr.f32.mxu0 0.0
  %1201 = vmatmul.mubr.f32.gmra.mrb[0].mxu0 %v986
  %v1202 = vpop.f32.mrb[0].mxu0
  %v1203 = vadd.f32 %v1054, %v1202
  %v1204 = vpop.f32.mrb[0].mxu0
  %1205 = vmatprep.mubr.f32.mxu0 0.0
  %1206 = vmatmul.mubr.f32.gmra.mrb[0].mxu0 %v987
  %v1207 = vpop.f32.mrb[0].mxu0
  %v1208 = vadd.f32 %v1054, %v1207
  %v1209 = vpop.f32.mrb[0].mxu0
  %1210 = vmatprep.mubr.f32.mxu0 0.0
  %1211 = vmatmul.mubr.f32.gmra.mrb[0].mxu0 %v988
  %v1212 = vpop.f32.mrb[0].mxu0
  %v1213 = vadd.f32 %v1054, %v1212
  %v1214 = vpop.f32.mrb[0].mxu0
  %1215 = vmatprep.mubr.f32.mxu0 0.0
  %1216 = vmatmul.mubr.f32.gmra.mrb[0].mxu0 %v989
  %v1217 = vpop.f32.mrb[0].mxu0
  %v1218 = vadd.f32 %v1054, %v1217
  %v1219 = vpop.f32.mrb[0].mxu0
  %1220 = vmatprep.mubr.f32.mxu0 0.0
  %1221 = vmatmul.mubr.f32.gmra.mrb[0].mxu0 %v990
  %v1222 = vpop.f32.mrb[0].mxu0
  %v1223 = vadd.f32 %v1054, %v1222
  %v1224 = vpop.f32.mrb[0].mxu0
  %1225 = vmatprep.mubr.f32.mxu0 0.0
  %1226 = vmatmul.mubr.f32.gmra.mrb[0].mxu0 %v991
  %v1227 = vpop.f32.mrb[0].mxu0
  %v1228 = vadd.f32 %v1054, %v1227
  %v1229 = vpop.f32.mrb[0].mxu0
  %1230 = vmatprep.mubr.f32.mxu0 0.0
  %1231 = vmatmul.mubr.f32.gmra.mrb[0].mxu0 %v992
  %v1232 = vpop.f32.mrb[0].mxu0
  %v1233 = vadd.f32 %v1054, %v1232
  %v1234 = vpop.f32.mrb[0].mxu0
  %1235 = vmatprep.mubr.f32.mxu0 0.0
  %1236 = vmatmul.mubr.f32.gmra.mrb[0].mxu0 %v993
  %v1237 = vpop.f32.mrb[0].mxu0
  %v1238 = vadd.f32 %v1054, %v1237
  %v1239 = vpop.f32.mrb[0].mxu0
  %1240 = vmatprep.mubr.f32.mxu0 0.0
  %1241 = vmatmul.mubr.f32.gmra.mrb[0].mxu0 %v994
  %v1242 = vpop.f32.mrb[0].mxu0
  %v1243 = vadd.f32 %v1054, %v1242
  %v1244 = vpop.f32.mrb[0].mxu0
  %1245 = vmatprep.mubr.f32.mxu0 0.0
  %1246 = vmatmul.mubr.f32.gmra.mrb[0].mxu0 %v995
  %v1247 = vpop.f32.mrb[0].mxu0
  %v1248 = vadd.f32 %v1054, %v1247
  %v1249 = vpop.f32.mrb[0].mxu0
  %1250 = vmatprep.mubr.f32.mxu0 0.0
  %1251 = vmatmul.mubr.f32.gmra.mrb[0].mxu0 %v996
  %v1252 = vpop.f32.mrb[0].mxu0
  %v1253 = vadd.f32 %v1054, %v1252
  %v1254 = vpop.f32.mrb[0].mxu0
  %1255 = vmatprep.mubr.f32.mxu0 0.0
  %1256 = vmatmul.mubr.f32.gmra.mrb[0].mxu0 %v997
  %v1257 = vpop.f32.mrb[0].mxu0
  %v1258 = vadd.f32 %v1054, %v1257
  %v1259 = vpop.f32.mrb[0].mxu0
  %1260 = vmatprep.mubr.f32.mxu0 0.0
  %1261 = vmatmul.mubr.f32.gmra.mrb[0].mxu0 %v998
  %v1262 = vpop.f32.mrb[0].mxu0
  %v1263 = vadd.f32 %v1054, %v1262
  %v1264 = vpop.f32.mrb[0].mxu0
  %1265 = vmatprep.mubr.f32.mxu0 0.0
  %1266 = vmatmul.mubr.f32.gmra.mrb[0].mxu0 %v999
  %v1267 = vpop.f32.mrb[0].mxu0
  %v1268 = vadd.f32 %v1054, %v1267
  %v1269 = vpop.f32.mrb[0].mxu0
  %1270 = vmatprep.mubr.f32.mxu0 0.0
  %1271 = vmatmul.mubr.f32.gmra.mrb[0].mxu0 %v1000
  %v1272 = vpop.f32.mrb[0].mxu0
  %v1273 = vadd.f32 %v1054, %v1272
  %v1274 = vpop.f32.mrb[0].mxu0
  %1275 = vmatprep.mubr.f32.mxu0 0.0
  %1276 = vmatmul.mubr.f32.gmra.mrb[0].mxu0 %v1001
  %v1277 = vpop.f32.mrb[0].mxu0
  %v1278 = vadd.f32 %v1054, %v1277
  %v1279 = vpop.f32.mrb[0].mxu0
  %1280 = vmatprep.mubr.f32.mxu0 0.0
  %1281 = vmatmul.mubr.f32.gmra.mrb[0].mxu0 %v1002
  %v1282 = vpop.f32.mrb[0].mxu0
  %v1283 = vadd.f32 %v1054, %v1282
  %v1284 = vpop.f32.mrb[0].mxu0
  %1285 = vmatprep.mubr.f32.mxu0 0.0
  %1286 = vmatmul.mubr.f32.gmra.mrb[0].mxu0 %v1003
  %v1287 = vpop.f32.mrb[0].mxu0
  %v1288 = vadd.f32 %v1054, %v1287
  %v1289 = vpop.f32.mrb[0].mxu0
  %1290 = vmatprep.mubr.f32.mxu0 0.0
  %1291 = vmatmul.mubr.f32.gmra.mrb[0].mxu0 %v1004
  %v1292 = vpop.f32.mrb[0].mxu0
  %v1293 = vadd.f32 %v1054, %v1292
  %v1294 = vpop.f32.mrb[0].mxu0
  %1295 = vmatprep.mubr.f32.mxu0 0.0
  %1296 = vmatmul.mubr.f32.gmra.mrb[0].mxu0 %v1005
  %v1297 = vpop.f32.mrb[0].mxu0
  %v1298 = vadd.f32 %v1054, %v1297
  %v1299 = vpop.f32.mrb[0].mxu0
  %1300 = vmatprep.mubr.f32.mxu0 0.0
  %1301 = vmatmul.mubr.f32.gmra.mrb[0].mxu0 %v1006
  %v1302 = vpop.f32.mrb[0].mxu0
  %v1303 = vadd.f32 %v1054, %v1302
  %v1304 = vpop.f32.mrb[0].mxu0
  %1305 = vmatprep.mubr.f32.mxu0 0.0
  %1306 = vmatmul.mubr.f32.gmra.mrb[0].mxu0 %v1007
  %v1307 = vpop.f32.mrb[0].mxu0
  %v1308 = vadd.f32 %v1054, %v1307
  %v1309 = vpop.f32.mrb[0].mxu0
  %1310 = vmatprep.mubr.f32.mxu0 0.0
  %1311 = vmatmul.mubr.f32.gmra.mrb[0].mxu0 %v1008
  %v1312 = vpop.f32.mrb[0].mxu0
  %v1313 = vadd.f32 %v1054, %v1312
  %v1314 = vpop.f32.mrb[0].mxu0
  %1315 = vmatprep.mubr.f32.mxu0 0.0
  %1316 = vmatmul.mubr.f32.gmra.mrb[0].mxu0 %v1009
  %v1317 = vpop.f32.mrb[0].mxu0
  %v1318 = vadd.f32 %v1054, %v1317
  %v1319 = vpop.f32.mrb[0].mxu0
  %1320 = vmatprep.mubr.f32.mxu0 0.0
  %1321 = vmatmul.mubr.f32.gmra.mrb[0].mxu0 %v1010
  %v1322 = vpop.f32.mrb[0].mxu0
  %v1323 = vadd.f32 %v1054, %v1322
  %v1324 = vpop.f32.mrb[0].mxu0
  %1325 = vmatprep.mubr.f32.mxu0 0.0
  %1326 = vmatmul.mubr.f32.gmra.mrb[0].mxu0 %v1011
  %v1327 = vpop.f32.mrb[0].mxu0
  %v1328 = vadd.f32 %v1054, %v1327
  %v1329 = vpop.f32.mrb[0].mxu0
  %1330 = vmatprep.mubr.f32.mxu0 0.0
  %1331 = vmatmul.mubr.f32.gmra.mrb[0].mxu0 %v1012
  %v1332 = vpop.f32.mrb[0].mxu0
  %v1333 = vadd.f32 %v1054, %v1332
  %v1334 = vpop.f32.mrb[0].mxu0
  %1335 = vmatprep.mubr.f32.mxu0 0.0
  %1336 = vmatmul.mubr.f32.gmra.mrb[0].mxu0 %v1013
  %v1337 = vpop.f32.mrb[0].mxu0
  %v1338 = vadd.f32 %v1054, %v1337
  %v1339 = vpop.f32.mrb[0].mxu0
  %1340 = vmatprep.mubr.f32.mxu0 0.0
  %1341 = vmatmul.mubr.f32.gmra.mrb[0].mxu0 %v1014
  %v1342 = vpop.f32.mrb[0].mxu0
  %v1343 = vadd.f32 %v1054, %v1342
  %v1344 = vpop.f32.mrb[0].mxu0
  %1345 = vmatprep.mubr.f32.mxu0 0.0
  %1346 = vmatmul.mubr.f32.gmra.mrb[0].mxu0 %v1015
  %v1347 = vpop.f32.mrb[0].mxu0
  %v1348 = vadd.f32 %v1054, %v1347
  %v1349 = vpop.f32.mrb[0].mxu0
  %1350 = vmatprep.mubr.f32.mxu0 0.0
  %1351 = vmatmul.mubr.f32.gmra.mrb[0].mxu0 %v1016
  %v1352 = vpop.f32.mrb[0].mxu0
  %v1353 = vadd.f32 %v1054, %v1352
  %v1354 = vpop.f32.mrb[0].mxu0
  %1355 = vmatprep.mubr.f32.mxu0 0.0
  %1356 = vmatmul.mubr.f32.gmra.mrb[0].mxu0 %v1017
  %v1357 = vpop.f32.mrb[0].mxu0
  %v1358 = vadd.f32 %v1054, %v1357
  %v1359 = vpop.f32.mrb[0].mxu0
  %1360 = vmatprep.mubr.f32.mxu0 0.0
  %1361 = vmatmul.mubr.f32.gmra.mrb[0].mxu0 %v1018
  %v1362 = vpop.f32.mrb[0].mxu0
  %v1363 = vadd.f32 %v1054, %v1362
  %v1364 = vpop.f32.mrb[0].mxu0
  %1365 = vmatprep.mubr.f32.mxu0 0.0
  %1366 = vmatmul.mubr.f32.gmra.mrb[0].mxu0 %v1019
  %v1367 = vpop.f32.mrb[0].mxu0
  %v1368 = vadd.f32 %v1054, %v1367
  %v1369 = vpop.f32.mrb[0].mxu0
  %1370 = vmatprep.mubr.f32.mxu0 0.0
  %1371 = vmatmul.mubr.f32.gmra.mrb[0].mxu0 %v1020
  %v1372 = vpop.f32.mrb[0].mxu0
  %v1373 = vadd.f32 %v1054, %v1372
  %v1374 = vpop.f32.mrb[0].mxu0
  %1375 = vmatprep.mubr.f32.mxu0 0.0
  %1376 = vmatmul.mubr.f32.gmra.mrb[0].mxu0 %v1021
  %v1377 = vpop.f32.mrb[0].mxu0
  %v1378 = vadd.f32 %v1054, %v1377
  %v1379 = vpop.f32.mrb[0].mxu0
  %1380 = vmatprep.mubr.f32.mxu0 0.0
  %1381 = vmatmul.mubr.f32.gmra.mrb[0].mxu0 %v1022
  %v1382 = vpop.f32.mrb[0].mxu0
  %v1383 = vadd.f32 %v1054, %v1382
  %v1384 = vpop.f32.mrb[0].mxu0
  %1385 = vmatprep.mubr.f32.mxu0 0.0
  %1386 = vmatmul.mubr.f32.gmra.mrb[0].mxu0 %v1023
  %v1387 = vpop.f32.mrb[0].mxu0
  %v1388 = vadd.f32 %v1054, %v1387
  %v1389 = vpop.f32.mrb[0].mxu0
  %1390 = vmatprep.mubr.f32.mxu0 0.0
  %1391 = vmatmul.mubr.f32.gmra.mrb[0].mxu0 %v1024
  %v1392 = vpop.f32.mrb[0].mxu0
  %v1393 = vadd.f32 %v1054, %v1392
  %v1394 = vpop.f32.mrb[0].mxu0
  %1395 = vmatprep.mubr.f32.mxu0 0.0
  %1396 = vmatmul.mubr.f32.gmra.mrb[0].mxu0 %v1025
  %v1397 = vpop.f32.mrb[0].mxu0
  %v1398 = vadd.f32 %v1054, %v1397
  %v1399 = vpop.f32.mrb[0].mxu0
  %1400 = vmatprep.mubr.f32.mxu0 0.0
  %1401 = vmatmul.mubr.f32.gmra.mrb[0].mxu0 %v1026
  %v1402 = vpop.f32.mrb[0].mxu0
  %v1403 = vadd.f32 %v1054, %v1402
  %v1404 = vpop.f32.mrb[0].mxu0
  %1405 = vmatprep.mubr.f32.mxu0 0.0
  %1406 = vmatmul.mubr.f32.gmra.mrb[0].mxu0 %v1027
  %v1407 = vpop.f32.mrb[0].mxu0
  %v1408 = vadd.f32 %v1054, %v1407
  %v1409 = vpop.f32.mrb[0].mxu0
  %1410 = vmatprep.mubr.f32.mxu0 0.0
  %1411 = vmatmul.mubr.f32.gmra.mrb[0].mxu0 %v1028
  %v1412 = vpop.f32.mrb[0].mxu0
  %v1413 = vadd.f32 %v1054, %v1412
  %v1414 = vpop.f32.mrb[0].mxu0
  %1415 = vmatprep.mubr.f32.mxu0 0.0
  %1416 = vmatmul.mubr.f32.gmra.mrb[0].mxu0 %v1029
  %v1417 = vpop.f32.mrb[0].mxu0
  %v1418 = vadd.f32 %v1054, %v1417
  %v1419 = vpop.f32.mrb[0].mxu0
  %1420 = vmatprep.mubr.f32.mxu0 0.0
  %1421 = vmatmul.mubr.f32.gmra.mrb[0].mxu0 %v1030
  %v1422 = vpop.f32.mrb[0].mxu0
  %v1423 = vadd.f32 %v1054, %v1422
  %v1424 = vpop.f32.mrb[0].mxu0
  %1425 = vmatprep.mubr.f32.mxu0 0.0
  %1426 = vmatmul.mubr.f32.gmra.mrb[0].mxu0 %v1031
  %v1427 = vpop.f32.mrb[0].mxu0
  %v1428 = vadd.f32 %v1054, %v1427
  %v1429 = vpop.f32.mrb[0].mxu0
  %1430 = vmatprep.mubr.f32.mxu0 0.0
  %1431 = vmatmul.mubr.f32.gmra.mrb[0].mxu0 %v1032
  %v1432 = vpop.f32.mrb[0].mxu0
  %v1433 = vadd.f32 %v1054, %v1432
  %v1434 = vpop.f32.mrb[0].mxu0
  %1435 = vdwg.mxu0
  %v1436 = vmax.f32 %v1123, 0.0
  %v1437 = vmax.f32 %v1128, 0.0
  %v1438 = vmax.f32 %v1133, 0.0
  %v1439 = vmax.f32 %v1138, 0.0
  %v1440 = vmax.f32 %v1143, 0.0
  %v1441 = vmax.f32 %v1148, 0.0
  %v1442 = vmax.f32 %v1153, 0.0
  %v1443 = vmax.f32 %v1158, 0.0
  %v1444 = vmax.f32 %v1163, 0.0
  %v1445 = vmax.f32 %v1168, 0.0
  %v1446 = vmax.f32 %v1173, 0.0
  %v1447 = vmax.f32 %v1178, 0.0
  %v1448 = vmax.f32 %v1183, 0.0
  %v1449 = vmax.f32 %v1188, 0.0
  %v1450 = vmax.f32 %v1193, 0.0
  %v1451 = vmax.f32 %v1198, 0.0
  %v1452 = vmax.f32 %v1203, 0.0
  %v1453 = vmax.f32 %v1208, 0.0
  %v1454 = vmax.f32 %v1213, 0.0
  %v1455 = vmax.f32 %v1218, 0.0
  %v1456 = vmax.f32 %v1223, 0.0
  %v1457 = vmax.f32 %v1228, 0.0
  %v1458 = vmax.f32 %v1233, 0.0
  %v1459 = vmax.f32 %v1238, 0.0
  %v1460 = vmax.f32 %v1243, 0.0
  %v1461 = vmax.f32 %v1248, 0.0
  %v1462 = vmax.f32 %v1253, 0.0
  %v1463 = vmax.f32 %v1258, 0.0
  %v1464 = vmax.f32 %v1263, 0.0
  %v1465 = vmax.f32 %v1268, 0.0
  %v1466 = vmax.f32 %v1273, 0.0
  %v1467 = vmax.f32 %v1278, 0.0
  %v1468 = vmax.f32 %v1283, 0.0
  %v1469 = vmax.f32 %v1288, 0.0
  %v1470 = vmax.f32 %v1293, 0.0
  %v1471 = vmax.f32 %v1298, 0.0
  %v1472 = vmax.f32 %v1303, 0.0
  %v1473 = vmax.f32 %v1308, 0.0
  %v1474 = vmax.f32 %v1313, 0.0
  %v1475 = vmax.f32 %v1318, 0.0
  %v1476 = vmax.f32 %v1323, 0.0
  %v1477 = vmax.f32 %v1328, 0.0
  %v1478 = vmax.f32 %v1333, 0.0
  %v1479 = vmax.f32 %v1338, 0.0
  %v1480 = vmax.f32 %v1343, 0.0
  %v1481 = vmax.f32 %v1348, 0.0
  %v1482 = vmax.f32 %v1353, 0.0
  %v1483 = vmax.f32 %v1358, 0.0
  %v1484 = vmax.f32 %v1363, 0.0
  %v1485 = vmax.f32 %v1368, 0.0
  %v1486 = vmax.f32 %v1373, 0.0
  %v1487 = vmax.f32 %v1378, 0.0
  %v1488 = vmax.f32 %v1383, 0.0
  %v1489 = vmax.f32 %v1388, 0.0
  %v1490 = vmax.f32 %v1393, 0.0
  %v1491 = vmax.f32 %v1398, 0.0
  %v1492 = vmax.f32 %v1403, 0.0
  %v1493 = vmax.f32 %v1408, 0.0
  %v1494 = vmax.f32 %v1413, 0.0
  %v1495 = vmax.f32 %v1418, 0.0
  %v1496 = vmax.f32 %v1423, 0.0
  %v1497 = vmax.f32 %v1428, 0.0
  %v1498 = vmax.f32 %v1433, 0.0
  %v1499 = vld [vmem:[%s7] sm:$0xff]
  %v1500 = vld [vmem:[%s7 + $0x8] sm:$0xff]
  %v1501 = vld [vmem:[%s7 + $0x10] sm:$0xff]
  %v1502 = vld [vmem:[%s7 + $0x18] sm:$0xff]
  %v1503 = vld [vmem:[%s7 + $0x20] sm:$0xff]
  %v1504 = vld [vmem:[%s7 + $0x28] sm:$0xff]
  %v1505 = vld [vmem:[%s7 + $0x30] sm:$0xff]
  %v1506 = vld [vmem:[%s7 + $0x38] sm:$0xff]
  %v1507 = vld [vmem:[%s7 + $0x40] sm:$0xff]
  %v1508 = vld [vmem:[%s7 + $0x48] sm:$0xff]
  %v1509 = vld [vmem:[%s7 + $0x50] sm:$0xff]
  %v1510 = vld [vmem:[%s7 + $0x58] sm:$0xff]
  %v1511 = vld [vmem:[%s7 + $0x60] sm:$0xff]
  %v1512 = vld [vmem:[%s7 + $0x68] sm:$0xff]
  %v1513 = vld [vmem:[%s7 + $0x70] sm:$0xff]
  %v1514 = vld [vmem:[%s7 + $0x78] sm:$0xff]
  %v1515 = vld [vmem:[%s8] sm:$0x1]
  %v1517 = vlaneseq
  %v1518 = vshrl.u32 %v1517, 7
  %v1519 = vsub.s32 0, %v1518
  %v1520 = vrot.slane %v1515, %v1519
  %1522 = vmatprep.subr.mxu0 0.0
  %1523 = vmatpush1.msra.mxu0 %v1499
  %1524 = vmatprep.subr.mxu0 0.0
  %1525 = vmatpush1.msra.mxu0 %v1500
  %1526 = vmatprep.subr.mxu0 0.0
  %1527 = vmatpush1.msra.mxu0 %v1501
  %1528 = vmatprep.subr.mxu0 0.0
  %1529 = vmatpush1.msra.mxu0 %v1502
  %1530 = vmatprep.subr.mxu0 0.0
  %1531 = vmatpush1.msra.mxu0 %v1503
  %1532 = vmatprep.subr.mxu0 0.0
  %1533 = vmatpush1.msra.mxu0 %v1504
  %1534 = vmatprep.subr.mxu0 0.0
  %1535 = vmatpush1.msra.mxu0 %v1505
  %1536 = vmatprep.subr.mxu0 0.0
  %1537 = vmatpush1.msra.mxu0 %v1506
  %1538 = vmatprep.subr.mxu0 0.0
  %1539 = vmatpush1.msra.mxu0 %v1507
  %1540 = vmatprep.subr.mxu0 0.0
  %1541 = vmatpush1.msra.mxu0 %v1508
  %1542 = vmatprep.subr.mxu0 0.0
  %1543 = vmatpush1.msra.mxu0 %v1509
  %1544 = vmatprep.subr.mxu0 0.0
  %1545 = vmatpush1.msra.mxu0 %v1510
  %1546 = vmatprep.subr.mxu0 0.0
  %1547 = vmatpush1.msra.mxu0 %v1511
  %1548 = vmatprep.subr.mxu0 0.0
  %1549 = vmatpush1.msra.mxu0 %v1512
  %1550 = vmatprep.subr.mxu0 0.0
  %1551 = vmatpush1.msra.mxu0 %v1513
  %1552 = vmatprep.subr.mxu0 0.0
  %1553 = vmatpush1.msra.mxu0 %v1514
  %1554 = vmatprep.subr.mxu0 0.0
  %1555 = vmatpush1.msra.mxu0 0.0
  %1556 = vmatprep.subr.mxu0 0.0
  %1557 = vmatpush1.msra.mxu0 0.0
  %1558 = vmatprep.subr.mxu0 0.0
  %1559 = vmatpush1.msra.mxu0 0.0
  %1560 = vmatprep.subr.mxu0 0.0
  %1561 = vmatpush1.msra.mxu0 0.0
  %1562 = vmatprep.subr.mxu0 0.0
  %1563 = vmatpush1.msra.mxu0 0.0
  %1564 = vmatprep.subr.mxu0 0.0
  %1565 = vmatpush1.msra.mxu0 0.0
  %1566 = vmatprep.subr.mxu0 0.0
  %1567 = vmatpush1.msra.mxu0 0.0
  %1568 = vmatprep.subr.mxu0 0.0
  %1569 = vmatpush1.msra.mxu0 0.0
  %1570 = vmatprep.subr.mxu0 0.0
  %1571 = vmatpush1.msra.mxu0 0.0
  %1572 = vmatprep.subr.mxu0 0.0
  %1573 = vmatpush1.msra.mxu0 0.0
  %1574 = vmatprep.subr.mxu0 0.0
  %1575 = vmatpush1.msra.mxu0 0.0
  %1576 = vmatprep.subr.mxu0 0.0
  %1577 = vmatpush1.msra.mxu0 0.0
  %1578 = vmatprep.subr.mxu0 0.0
  %1579 = vmatpush1.msra.mxu0 0.0
  %1580 = vmatprep.subr.mxu0 0.0
  %1581 = vmatpush1.msra.mxu0 0.0
  %1582 = vmatprep.subr.mxu0 0.0
  %1583 = vmatpush1.msra.mxu0 0.0
  %1584 = vmatprep.subr.mxu0 0.0
  %1585 = vmatpush1.msra.mxu0 0.0
  %1586 = vmatprep.mubr.f32.mxu0 0.0
  %1587 = vmatmul.mubr.f32.gmra.mrb[0].mxu0 %v1436
  %v1588 = vpop.f32.mrb[0].mxu0
  %v1589 = vadd.f32 %v1520, %v1588
  %v1590 = vpop.f32.mrb[0].mxu0
  %1591 = vmatprep.mubr.f32.mxu0 0.0
  %1592 = vmatmul.mubr.f32.gmra.mrb[0].mxu0 %v1437
  %v1593 = vpop.f32.mrb[0].mxu0
  %v1594 = vadd.f32 %v1520, %v1593
  %v1595 = vpop.f32.mrb[0].mxu0
  %1596 = vmatprep.mubr.f32.mxu0 0.0
  %1597 = vmatmul.mubr.f32.gmra.mrb[0].mxu0 %v1438
  %v1598 = vpop.f32.mrb[0].mxu0
  %v1599 = vadd.f32 %v1520, %v1598
  %v1600 = vpop.f32.mrb[0].mxu0
  %1601 = vmatprep.mubr.f32.mxu0 0.0
  %1602 = vmatmul.mubr.f32.gmra.mrb[0].mxu0 %v1439
  %v1603 = vpop.f32.mrb[0].mxu0
  %v1604 = vadd.f32 %v1520, %v1603
  %v1605 = vpop.f32.mrb[0].mxu0
  %1606 = vmatprep.mubr.f32.mxu0 0.0
  %1607 = vmatmul.mubr.f32.gmra.mrb[0].mxu0 %v1440
  %v1608 = vpop.f32.mrb[0].mxu0
  %v1609 = vadd.f32 %v1520, %v1608
  %v1610 = vpop.f32.mrb[0].mxu0
  %1611 = vmatprep.mubr.f32.mxu0 0.0
  %1612 = vmatmul.mubr.f32.gmra.mrb[0].mxu0 %v1441
  %v1613 = vpop.f32.mrb[0].mxu0
  %v1614 = vadd.f32 %v1520, %v1613
  %v1615 = vpop.f32.mrb[0].mxu0
  %1616 = vmatprep.mubr.f32.mxu0 0.0
  %1617 = vmatmul.mubr.f32.gmra.mrb[0].mxu0 %v1442
  %v1618 = vpop.f32.mrb[0].mxu0
  %v1619 = vadd.f32 %v1520, %v1618
  %v1620 = vpop.f32.mrb[0].mxu0
  %1621 = vmatprep.mubr.f32.mxu0 0.0
  %1622 = vmatmul.mubr.f32.gmra.mrb[0].mxu0 %v1443
  %v1623 = vpop.f32.mrb[0].mxu0
  %v1624 = vadd.f32 %v1520, %v1623
  %v1625 = vpop.f32.mrb[0].mxu0
  %1626 = vmatprep.mubr.f32.mxu0 0.0
  %1627 = vmatmul.mubr.f32.gmra.mrb[0].mxu0 %v1444
  %v1628 = vpop.f32.mrb[0].mxu0
  %v1629 = vadd.f32 %v1520, %v1628
  %v1630 = vpop.f32.mrb[0].mxu0
  %1631 = vmatprep.mubr.f32.mxu0 0.0
  %1632 = vmatmul.mubr.f32.gmra.mrb[0].mxu0 %v1445
  %v1633 = vpop.f32.mrb[0].mxu0
  %v1634 = vadd.f32 %v1520, %v1633
  %v1635 = vpop.f32.mrb[0].mxu0
  %1636 = vmatprep.mubr.f32.mxu0 0.0
  %1637 = vmatmul.mubr.f32.gmra.mrb[0].mxu0 %v1446
  %v1638 = vpop.f32.mrb[0].mxu0
  %v1639 = vadd.f32 %v1520, %v1638
  %v1640 = vpop.f32.mrb[0].mxu0
  %1641 = vmatprep.mubr.f32.mxu0 0.0
  %1642 = vmatmul.mubr.f32.gmra.mrb[0].mxu0 %v1447
  %v1643 = vpop.f32.mrb[0].mxu0
  %v1644 = vadd.f32 %v1520, %v1643
  %v1645 = vpop.f32.mrb[0].mxu0
  %1646 = vmatprep.mubr.f32.mxu0 0.0
  %1647 = vmatmul.mubr.f32.gmra.mrb[0].mxu0 %v1448
  %v1648 = vpop.f32.mrb[0].mxu0
  %v1649 = vadd.f32 %v1520, %v1648
  %v1650 = vpop.f32.mrb[0].mxu0
  %1651 = vmatprep.mubr.f32.mxu0 0.0
  %1652 = vmatmul.mubr.f32.gmra.mrb[0].mxu0 %v1449
  %v1653 = vpop.f32.mrb[0].mxu0
  %v1654 = vadd.f32 %v1520, %v1653
  %v1655 = vpop.f32.mrb[0].mxu0
  %1656 = vmatprep.mubr.f32.mxu0 0.0
  %1657 = vmatmul.mubr.f32.gmra.mrb[0].mxu0 %v1450
  %v1658 = vpop.f32.mrb[0].mxu0
  %v1659 = vadd.f32 %v1520, %v1658
  %v1660 = vpop.f32.mrb[0].mxu0
  %1661 = vmatprep.mubr.f32.mxu0 0.0
  %1662 = vmatmul.mubr.f32.gmra.mrb[0].mxu0 %v1451
  %v1663 = vpop.f32.mrb[0].mxu0
  %v1664 = vadd.f32 %v1520, %v1663
  %v1665 = vpop.f32.mrb[0].mxu0
  %1666 = vmatprep.mubr.f32.mxu0 0.0
  %1667 = vmatmul.mubr.f32.gmra.mrb[0].mxu0 %v1452
  %v1668 = vpop.f32.mrb[0].mxu0
  %v1669 = vadd.f32 %v1520, %v1668
  %v1670 = vpop.f32.mrb[0].mxu0
  %1671 = vmatprep.mubr.f32.mxu0 0.0
  %1672 = vmatmul.mubr.f32.gmra.mrb[0].mxu0 %v1453
  %v1673 = vpop.f32.mrb[0].mxu0
  %v1674 = vadd.f32 %v1520, %v1673
  %v1675 = vpop.f32.mrb[0].mxu0
  %1676 = vmatprep.mubr.f32.mxu0 0.0
  %1677 = vmatmul.mubr.f32.gmra.mrb[0].mxu0 %v1454
  %v1678 = vpop.f32.mrb[0].mxu0
  %v1679 = vadd.f32 %v1520, %v1678
  %v1680 = vpop.f32.mrb[0].mxu0
  %1681 = vmatprep.mubr.f32.mxu0 0.0
  %1682 = vmatmul.mubr.f32.gmra.mrb[0].mxu0 %v1455
  %v1683 = vpop.f32.mrb[0].mxu0
  %v1684 = vadd.f32 %v1520, %v1683
  %v1685 = vpop.f32.mrb[0].mxu0
  %1686 = vmatprep.mubr.f32.mxu0 0.0
  %1687 = vmatmul.mubr.f32.gmra.mrb[0].mxu0 %v1456
  %v1688 = vpop.f32.mrb[0].mxu0
  %v1689 = vadd.f32 %v1520, %v1688
  %v1690 = vpop.f32.mrb[0].mxu0
  %1691 = vmatprep.mubr.f32.mxu0 0.0
  %1692 = vmatmul.mubr.f32.gmra.mrb[0].mxu0 %v1457
  %v1693 = vpop.f32.mrb[0].mxu0
  %v1694 = vadd.f32 %v1520, %v1693
  %v1695 = vpop.f32.mrb[0].mxu0
  %1696 = vmatprep.mubr.f32.mxu0 0.0
  %1697 = vmatmul.mubr.f32.gmra.mrb[0].mxu0 %v1458
  %v1698 = vpop.f32.mrb[0].mxu0
  %v1699 = vadd.f32 %v1520, %v1698
  %v1700 = vpop.f32.mrb[0].mxu0
  %1701 = vmatprep.mubr.f32.mxu0 0.0
  %1702 = vmatmul.mubr.f32.gmra.mrb[0].mxu0 %v1459
  %v1703 = vpop.f32.mrb[0].mxu0
  %v1704 = vadd.f32 %v1520, %v1703
  %v1705 = vpop.f32.mrb[0].mxu0
  %1706 = vmatprep.mubr.f32.mxu0 0.0
  %1707 = vmatmul.mubr.f32.gmra.mrb[0].mxu0 %v1460
  %v1708 = vpop.f32.mrb[0].mxu0
  %v1709 = vadd.f32 %v1520, %v1708
  %v1710 = vpop.f32.mrb[0].mxu0
  %1711 = vmatprep.mubr.f32.mxu0 0.0
  %1712 = vmatmul.mubr.f32.gmra.mrb[0].mxu0 %v1461
  %v1713 = vpop.f32.mrb[0].mxu0
  %v1714 = vadd.f32 %v1520, %v1713
  %v1715 = vpop.f32.mrb[0].mxu0
  %1716 = vmatprep.mubr.f32.mxu0 0.0
  %1717 = vmatmul.mubr.f32.gmra.mrb[0].mxu0 %v1462
  %v1718 = vpop.f32.mrb[0].mxu0
  %v1719 = vadd.f32 %v1520, %v1718
  %v1720 = vpop.f32.mrb[0].mxu0
  %1721 = vmatprep.mubr.f32.mxu0 0.0
  %1722 = vmatmul.mubr.f32.gmra.mrb[0].mxu0 %v1463
  %v1723 = vpop.f32.mrb[0].mxu0
  %v1724 = vadd.f32 %v1520, %v1723
  %v1725 = vpop.f32.mrb[0].mxu0
  %1726 = vmatprep.mubr.f32.mxu0 0.0
  %1727 = vmatmul.mubr.f32.gmra.mrb[0].mxu0 %v1464
  %v1728 = vpop.f32.mrb[0].mxu0
  %v1729 = vadd.f32 %v1520, %v1728
  %v1730 = vpop.f32.mrb[0].mxu0
  %1731 = vmatprep.mubr.f32.mxu0 0.0
  %1732 = vmatmul.mubr.f32.gmra.mrb[0].mxu0 %v1465
  %v1733 = vpop.f32.mrb[0].mxu0
  %v1734 = vadd.f32 %v1520, %v1733
  %v1735 = vpop.f32.mrb[0].mxu0
  %1736 = vmatprep.mubr.f32.mxu0 0.0
  %1737 = vmatmul.mubr.f32.gmra.mrb[0].mxu0 %v1466
  %v1738 = vpop.f32.mrb[0].mxu0
  %v1739 = vadd.f32 %v1520, %v1738
  %v1740 = vpop.f32.mrb[0].mxu0
  %1741 = vmatprep.mubr.f32.mxu0 0.0
  %1742 = vmatmul.mubr.f32.gmra.mrb[0].mxu0 %v1467
  %v1743 = vpop.f32.mrb[0].mxu0
  %v1744 = vadd.f32 %v1520, %v1743
  %v1745 = vpop.f32.mrb[0].mxu0
  %1746 = vmatprep.mubr.f32.mxu0 0.0
  %1747 = vmatmul.mubr.f32.gmra.mrb[0].mxu0 %v1468
  %v1748 = vpop.f32.mrb[0].mxu0
  %v1749 = vadd.f32 %v1520, %v1748
  %v1750 = vpop.f32.mrb[0].mxu0
  %1751 = vmatprep.mubr.f32.mxu0 0.0
  %1752 = vmatmul.mubr.f32.gmra.mrb[0].mxu0 %v1469
  %v1753 = vpop.f32.mrb[0].mxu0
  %v1754 = vadd.f32 %v1520, %v1753
  %v1755 = vpop.f32.mrb[0].mxu0
  %1756 = vmatprep.mubr.f32.mxu0 0.0
  %1757 = vmatmul.mubr.f32.gmra.mrb[0].mxu0 %v1470
  %v1758 = vpop.f32.mrb[0].mxu0
  %v1759 = vadd.f32 %v1520, %v1758
  %v1760 = vpop.f32.mrb[0].mxu0
  %1761 = vmatprep.mubr.f32.mxu0 0.0
  %1762 = vmatmul.mubr.f32.gmra.mrb[0].mxu0 %v1471
  %v1763 = vpop.f32.mrb[0].mxu0
  %v1764 = vadd.f32 %v1520, %v1763
  %v1765 = vpop.f32.mrb[0].mxu0
  %1766 = vmatprep.mubr.f32.mxu0 0.0
  %1767 = vmatmul.mubr.f32.gmra.mrb[0].mxu0 %v1472
  %v1768 = vpop.f32.mrb[0].mxu0
  %v1769 = vadd.f32 %v1520, %v1768
  %v1770 = vpop.f32.mrb[0].mxu0
  %1771 = vmatprep.mubr.f32.mxu0 0.0
  %1772 = vmatmul.mubr.f32.gmra.mrb[0].mxu0 %v1473
  %v1773 = vpop.f32.mrb[0].mxu0
  %v1774 = vadd.f32 %v1520, %v1773
  %v1775 = vpop.f32.mrb[0].mxu0
  %1776 = vmatprep.mubr.f32.mxu0 0.0
  %1777 = vmatmul.mubr.f32.gmra.mrb[0].mxu0 %v1474
  %v1778 = vpop.f32.mrb[0].mxu0
  %v1779 = vadd.f32 %v1520, %v1778
  %v1780 = vpop.f32.mrb[0].mxu0
  %1781 = vmatprep.mubr.f32.mxu0 0.0
  %1782 = vmatmul.mubr.f32.gmra.mrb[0].mxu0 %v1475
  %v1783 = vpop.f32.mrb[0].mxu0
  %v1784 = vadd.f32 %v1520, %v1783
  %v1785 = vpop.f32.mrb[0].mxu0
  %1786 = vmatprep.mubr.f32.mxu0 0.0
  %1787 = vmatmul.mubr.f32.gmra.mrb[0].mxu0 %v1476
  %v1788 = vpop.f32.mrb[0].mxu0
  %v1789 = vadd.f32 %v1520, %v1788
  %v1790 = vpop.f32.mrb[0].mxu0
  %1791 = vmatprep.mubr.f32.mxu0 0.0
  %1792 = vmatmul.mubr.f32.gmra.mrb[0].mxu0 %v1477
  %v1793 = vpop.f32.mrb[0].mxu0
  %v1794 = vadd.f32 %v1520, %v1793
  %v1795 = vpop.f32.mrb[0].mxu0
  %1796 = vmatprep.mubr.f32.mxu0 0.0
  %1797 = vmatmul.mubr.f32.gmra.mrb[0].mxu0 %v1478
  %v1798 = vpop.f32.mrb[0].mxu0
  %v1799 = vadd.f32 %v1520, %v1798
  %v1800 = vpop.f32.mrb[0].mxu0
  %1801 = vmatprep.mubr.f32.mxu0 0.0
  %1802 = vmatmul.mubr.f32.gmra.mrb[0].mxu0 %v1479
  %v1803 = vpop.f32.mrb[0].mxu0
  %v1804 = vadd.f32 %v1520, %v1803
  %v1805 = vpop.f32.mrb[0].mxu0
  %1806 = vmatprep.mubr.f32.mxu0 0.0
  %1807 = vmatmul.mubr.f32.gmra.mrb[0].mxu0 %v1480
  %v1808 = vpop.f32.mrb[0].mxu0
  %v1809 = vadd.f32 %v1520, %v1808
  %v1810 = vpop.f32.mrb[0].mxu0
  %1811 = vmatprep.mubr.f32.mxu0 0.0
  %1812 = vmatmul.mubr.f32.gmra.mrb[0].mxu0 %v1481
  %v1813 = vpop.f32.mrb[0].mxu0
  %v1814 = vadd.f32 %v1520, %v1813
  %v1815 = vpop.f32.mrb[0].mxu0
  %1816 = vmatprep.mubr.f32.mxu0 0.0
  %1817 = vmatmul.mubr.f32.gmra.mrb[0].mxu0 %v1482
  %v1818 = vpop.f32.mrb[0].mxu0
  %v1819 = vadd.f32 %v1520, %v1818
  %v1820 = vpop.f32.mrb[0].mxu0
  %1821 = vmatprep.mubr.f32.mxu0 0.0
  %1822 = vmatmul.mubr.f32.gmra.mrb[0].mxu0 %v1483
  %v1823 = vpop.f32.mrb[0].mxu0
  %v1824 = vadd.f32 %v1520, %v1823
  %v1825 = vpop.f32.mrb[0].mxu0
  %1826 = vmatprep.mubr.f32.mxu0 0.0
  %1827 = vmatmul.mubr.f32.gmra.mrb[0].mxu0 %v1484
  %v1828 = vpop.f32.mrb[0].mxu0
  %v1829 = vadd.f32 %v1520, %v1828
  %v1830 = vpop.f32.mrb[0].mxu0
  %1831 = vmatprep.mubr.f32.mxu0 0.0
  %1832 = vmatmul.mubr.f32.gmra.mrb[0].mxu0 %v1485
  %v1833 = vpop.f32.mrb[0].mxu0
  %v1834 = vadd.f32 %v1520, %v1833
  %v1835 = vpop.f32.mrb[0].mxu0
  %1836 = vmatprep.mubr.f32.mxu0 0.0
  %1837 = vmatmul.mubr.f32.gmra.mrb[0].mxu0 %v1486
  %v1838 = vpop.f32.mrb[0].mxu0
  %v1839 = vadd.f32 %v1520, %v1838
  %v1840 = vpop.f32.mrb[0].mxu0
  %1841 = vmatprep.mubr.f32.mxu0 0.0
  %1842 = vmatmul.mubr.f32.gmra.mrb[0].mxu0 %v1487
  %v1843 = vpop.f32.mrb[0].mxu0
  %v1844 = vadd.f32 %v1520, %v1843
  %v1845 = vpop.f32.mrb[0].mxu0
  %1846 = vmatprep.mubr.f32.mxu0 0.0
  %1847 = vmatmul.mubr.f32.gmra.mrb[0].mxu0 %v1488
  %v1848 = vpop.f32.mrb[0].mxu0
  %v1849 = vadd.f32 %v1520, %v1848
  %v1850 = vpop.f32.mrb[0].mxu0
  %1851 = vmatprep.mubr.f32.mxu0 0.0
  %1852 = vmatmul.mubr.f32.gmra.mrb[0].mxu0 %v1489
  %v1853 = vpop.f32.mrb[0].mxu0
  %v1854 = vadd.f32 %v1520, %v1853
  %v1855 = vpop.f32.mrb[0].mxu0
  %1856 = vmatprep.mubr.f32.mxu0 0.0
  %1857 = vmatmul.mubr.f32.gmra.mrb[0].mxu0 %v1490
  %v1858 = vpop.f32.mrb[0].mxu0
  %v1859 = vadd.f32 %v1520, %v1858
  %v1860 = vpop.f32.mrb[0].mxu0
  %1861 = vmatprep.mubr.f32.mxu0 0.0
  %1862 = vmatmul.mubr.f32.gmra.mrb[0].mxu0 %v1491
  %v1863 = vpop.f32.mrb[0].mxu0
  %v1864 = vadd.f32 %v1520, %v1863
  %v1865 = vpop.f32.mrb[0].mxu0
  %1866 = vmatprep.mubr.f32.mxu0 0.0
  %1867 = vmatmul.mubr.f32.gmra.mrb[0].mxu0 %v1492
  %v1868 = vpop.f32.mrb[0].mxu0
  %v1869 = vadd.f32 %v1520, %v1868
  %v1870 = vpop.f32.mrb[0].mxu0
  %1871 = vmatprep.mubr.f32.mxu0 0.0
  %1872 = vmatmul.mubr.f32.gmra.mrb[0].mxu0 %v1493
  %v1873 = vpop.f32.mrb[0].mxu0
  %v1874 = vadd.f32 %v1520, %v1873
  %v1875 = vpop.f32.mrb[0].mxu0
  %1876 = vmatprep.mubr.f32.mxu0 0.0
  %1877 = vmatmul.mubr.f32.gmra.mrb[0].mxu0 %v1494
  %v1878 = vpop.f32.mrb[0].mxu0
  %v1879 = vadd.f32 %v1520, %v1878
  %v1880 = vpop.f32.mrb[0].mxu0
  %1881 = vmatprep.mubr.f32.mxu0 0.0
  %1882 = vmatmul.mubr.f32.gmra.mrb[0].mxu0 %v1495
  %v1883 = vpop.f32.mrb[0].mxu0
  %v1884 = vadd.f32 %v1520, %v1883
  %v1885 = vpop.f32.mrb[0].mxu0
  %1886 = vmatprep.mubr.f32.mxu0 0.0
  %1887 = vmatmul.mubr.f32.gmra.mrb[0].mxu0 %v1496
  %v1888 = vpop.f32.mrb[0].mxu0
  %v1889 = vadd.f32 %v1520, %v1888
  %v1890 = vpop.f32.mrb[0].mxu0
  %1891 = vmatprep.mubr.f32.mxu0 0.0
  %1892 = vmatmul.mubr.f32.gmra.mrb[0].mxu0 %v1497
  %v1893 = vpop.f32.mrb[0].mxu0
  %v1894 = vadd.f32 %v1520, %v1893
  %v1895 = vpop.f32.mrb[0].mxu0
  %1896 = vmatprep.mubr.f32.mxu0 0.0
  %1897 = vmatmul.mubr.f32.gmra.mrb[0].mxu0 %v1498
  %v1898 = vpop.f32.mrb[0].mxu0
  %v1899 = vadd.f32 %v1520, %v1898
  %v1900 = vpop.f32.mrb[0].mxu0
  %1901 = vdwg.mxu0
  %v1902 = vmax.f32 %v1589, 0.0
  %v1903 = vmax.f32 %v1594, 0.0
  %v1904 = vmax.f32 %v1599, 0.0
  %v1905 = vmax.f32 %v1604, 0.0
  %v1906 = vmax.f32 %v1609, 0.0
  %v1907 = vmax.f32 %v1614, 0.0
  %v1908 = vmax.f32 %v1619, 0.0
  %v1909 = vmax.f32 %v1624, 0.0
  %v1910 = vmax.f32 %v1629, 0.0
  %v1911 = vmax.f32 %v1634, 0.0
  %v1912 = vmax.f32 %v1639, 0.0
  %v1913 = vmax.f32 %v1644, 0.0
  %v1914 = vmax.f32 %v1649, 0.0
  %v1915 = vmax.f32 %v1654, 0.0
  %v1916 = vmax.f32 %v1659, 0.0
  %v1917 = vmax.f32 %v1664, 0.0
  %v1918 = vmax.f32 %v1669, 0.0
  %v1919 = vmax.f32 %v1674, 0.0
  %v1920 = vmax.f32 %v1679, 0.0
  %v1921 = vmax.f32 %v1684, 0.0
  %v1922 = vmax.f32 %v1689, 0.0
  %v1923 = vmax.f32 %v1694, 0.0
  %v1924 = vmax.f32 %v1699, 0.0
  %v1925 = vmax.f32 %v1704, 0.0
  %v1926 = vmax.f32 %v1709, 0.0
  %v1927 = vmax.f32 %v1714, 0.0
  %v1928 = vmax.f32 %v1719, 0.0
  %v1929 = vmax.f32 %v1724, 0.0
  %v1930 = vmax.f32 %v1729, 0.0
  %v1931 = vmax.f32 %v1734, 0.0
  %v1932 = vmax.f32 %v1739, 0.0
  %v1933 = vmax.f32 %v1744, 0.0
  %v1934 = vmax.f32 %v1749, 0.0
  %v1935 = vmax.f32 %v1754, 0.0
  %v1936 = vmax.f32 %v1759, 0.0
  %v1937 = vmax.f32 %v1764, 0.0
  %v1938 = vmax.f32 %v1769, 0.0
  %v1939 = vmax.f32 %v1774, 0.0
  %v1940 = vmax.f32 %v1779, 0.0
  %v1941 = vmax.f32 %v1784, 0.0
  %v1942 = vmax.f32 %v1789, 0.0
  %v1943 = vmax.f32 %v1794, 0.0
  %v1944 = vmax.f32 %v1799, 0.0
  %v1945 = vmax.f32 %v1804, 0.0
  %v1946 = vmax.f32 %v1809, 0.0
  %v1947 = vmax.f32 %v1814, 0.0
  %v1948 = vmax.f32 %v1819, 0.0
  %v1949 = vmax.f32 %v1824, 0.0
  %v1950 = vmax.f32 %v1829, 0.0
  %v1951 = vmax.f32 %v1834, 0.0
  %v1952 = vmax.f32 %v1839, 0.0
  %v1953 = vmax.f32 %v1844, 0.0
  %v1954 = vmax.f32 %v1849, 0.0
  %v1955 = vmax.f32 %v1854, 0.0
  %v1956 = vmax.f32 %v1859, 0.0
  %v1957 = vmax.f32 %v1864, 0.0
  %v1958 = vmax.f32 %v1869, 0.0
  %v1959 = vmax.f32 %v1874, 0.0
  %v1960 = vmax.f32 %v1879, 0.0
  %v1961 = vmax.f32 %v1884, 0.0
  %v1962 = vmax.f32 %v1889, 0.0
  %v1963 = vmax.f32 %v1894, 0.0
  %v1964 = vmax.f32 %v1899, 0.0
  %v1965 = vld [vmem:[%s9] sm:$0xff]
  %v1966 = vld [vmem:[%s9 + $0x8] sm:$0xff]
  %v1967 = vld [vmem:[%s9 + $0x10] sm:$0xff]
  %v1968 = vld [vmem:[%s9 + $0x18] sm:$0xff]
  %v1969 = vld [vmem:[%s9 + $0x20] sm:$0xff]
  %v1970 = vld [vmem:[%s9 + $0x28] sm:$0xff]
  %v1971 = vld [vmem:[%s9 + $0x30] sm:$0xff]
  %v1972 = vld [vmem:[%s9 + $0x38] sm:$0xff]
  %v1973 = vld [vmem:[%s9 + $0x40] sm:$0xff]
  %v1974 = vld [vmem:[%s9 + $0x48] sm:$0xff]
  %v1975 = vld [vmem:[%s9 + $0x50] sm:$0xff]
  %v1976 = vld [vmem:[%s9 + $0x58] sm:$0xff]
  %v1977 = vld [vmem:[%s9 + $0x60] sm:$0xff]
  %v1978 = vld [vmem:[%s9 + $0x68] sm:$0xff]
  %v1979 = vld [vmem:[%s9 + $0x70] sm:$0xff]
  %v1980 = vld [vmem:[%s9 + $0x78] sm:$0xff]
  %v1981 = vld [vmem:[%s10] sm:$0x1]
  %v1983 = vlaneseq
  %v1984 = vshrl.u32 %v1983, 7
  %v1985 = vsub.s32 0, %v1984
  %v1986 = vrot.slane %v1981, %v1985
  %1988 = vmatprep.subr.mxu0 0.0
  %1989 = vmatpush1.msra.mxu0 %v1965
  %1990 = vmatprep.subr.mxu0 0.0
  %1991 = vmatpush1.msra.mxu0 %v1966
  %1992 = vmatprep.subr.mxu0 0.0
  %1993 = vmatpush1.msra.mxu0 %v1967
  %1994 = vmatprep.subr.mxu0 0.0
  %1995 = vmatpush1.msra.mxu0 %v1968
  %1996 = vmatprep.subr.mxu0 0.0
  %1997 = vmatpush1.msra.mxu0 %v1969
  %1998 = vmatprep.subr.mxu0 0.0
  %1999 = vmatpush1.msra.mxu0 %v1970
  %2000 = vmatprep.subr.mxu0 0.0
  %2001 = vmatpush1.msra.mxu0 %v1971
  %2002 = vmatprep.subr.mxu0 0.0
  %2003 = vmatpush1.msra.mxu0 %v1972
  %2004 = vmatprep.subr.mxu0 0.0
  %2005 = vmatpush1.msra.mxu0 %v1973
  %2006 = vmatprep.subr.mxu0 0.0
  %2007 = vmatpush1.msra.mxu0 %v1974
  %2008 = vmatprep.subr.mxu0 0.0
  %2009 = vmatpush1.msra.mxu0 %v1975
  %2010 = vmatprep.subr.mxu0 0.0
  %2011 = vmatpush1.msra.mxu0 %v1976
  %2012 = vmatprep.subr.mxu0 0.0
  %2013 = vmatpush1.msra.mxu0 %v1977
  %2014 = vmatprep.subr.mxu0 0.0
  %2015 = vmatpush1.msra.mxu0 %v1978
  %2016 = vmatprep.subr.mxu0 0.0
  %2017 = vmatpush1.msra.mxu0 %v1979
  %2018 = vmatprep.subr.mxu0 0.0
  %2019 = vmatpush1.msra.mxu0 %v1980
  %2020 = vmatprep.subr.mxu0 0.0
  %2021 = vmatpush1.msra.mxu0 0.0
  %2022 = vmatprep.subr.mxu0 0.0
  %2023 = vmatpush1.msra.mxu0 0.0
  %2024 = vmatprep.subr.mxu0 0.0
  %2025 = vmatpush1.msra.mxu0 0.0
  %2026 = vmatprep.subr.mxu0 0.0
  %2027 = vmatpush1.msra.mxu0 0.0
  %2028 = vmatprep.subr.mxu0 0.0
  %2029 = vmatpush1.msra.mxu0 0.0
  %2030 = vmatprep.subr.mxu0 0.0
  %2031 = vmatpush1.msra.mxu0 0.0
  %2032 = vmatprep.subr.mxu0 0.0
  %2033 = vmatpush1.msra.mxu0 0.0
  %2034 = vmatprep.subr.mxu0 0.0
  %2035 = vmatpush1.msra.mxu0 0.0
  %2036 = vmatprep.subr.mxu0 0.0
  %2037 = vmatpush1.msra.mxu0 0.0
  %2038 = vmatprep.subr.mxu0 0.0
  %2039 = vmatpush1.msra.mxu0 0.0
  %2040 = vmatprep.subr.mxu0 0.0
  %2041 = vmatpush1.msra.mxu0 0.0
  %2042 = vmatprep.subr.mxu0 0.0
  %2043 = vmatpush1.msra.mxu0 0.0
  %2044 = vmatprep.subr.mxu0 0.0
  %2045 = vmatpush1.msra.mxu0 0.0
  %2046 = vmatprep.subr.mxu0 0.0
  %2047 = vmatpush1.msra.mxu0 0.0
  %2048 = vmatprep.subr.mxu0 0.0
  %2049 = vmatpush1.msra.mxu0 0.0
  %2050 = vmatprep.subr.mxu0 0.0
  %2051 = vmatpush1.msra.mxu0 0.0
  %2052 = vmatprep.mubr.f32.mxu0 0.0
  %2053 = vmatmul.mubr.f32.gmra.mrb[0].mxu0 %v1902
  %v2054 = vpop.f32.mrb[0].mxu0
  %v2055 = vadd.f32 %v1986, %v2054
  %v2056 = vpop.f32.mrb[0].mxu0
  %2057 = vmatprep.mubr.f32.mxu0 0.0
  %2058 = vmatmul.mubr.f32.gmra.mrb[0].mxu0 %v1903
  %v2059 = vpop.f32.mrb[0].mxu0
  %v2060 = vadd.f32 %v1986, %v2059
  %v2061 = vpop.f32.mrb[0].mxu0
  %2062 = vmatprep.mubr.f32.mxu0 0.0
  %2063 = vmatmul.mubr.f32.gmra.mrb[0].mxu0 %v1904
  %v2064 = vpop.f32.mrb[0].mxu0
  %v2065 = vadd.f32 %v1986, %v2064
  %v2066 = vpop.f32.mrb[0].mxu0
  %2067 = vmatprep.mubr.f32.mxu0 0.0
  %2068 = vmatmul.mubr.f32.gmra.mrb[0].mxu0 %v1905
  %v2069 = vpop.f32.mrb[0].mxu0
  %v2070 = vadd.f32 %v1986, %v2069
  %v2071 = vpop.f32.mrb[0].mxu0
  %2072 = vmatprep.mubr.f32.mxu0 0.0
  %2073 = vmatmul.mubr.f32.gmra.mrb[0].mxu0 %v1906
  %v2074 = vpop.f32.mrb[0].mxu0
  %v2075 = vadd.f32 %v1986, %v2074
  %v2076 = vpop.f32.mrb[0].mxu0
  %2077 = vmatprep.mubr.f32.mxu0 0.0
  %2078 = vmatmul.mubr.f32.gmra.mrb[0].mxu0 %v1907
  %v2079 = vpop.f32.mrb[0].mxu0
  %v2080 = vadd.f32 %v1986, %v2079
  %v2081 = vpop.f32.mrb[0].mxu0
  %2082 = vmatprep.mubr.f32.mxu0 0.0
  %2083 = vmatmul.mubr.f32.gmra.mrb[0].mxu0 %v1908
  %v2084 = vpop.f32.mrb[0].mxu0
  %v2085 = vadd.f32 %v1986, %v2084
  %v2086 = vpop.f32.mrb[0].mxu0
  %2087 = vmatprep.mubr.f32.mxu0 0.0
  %2088 = vmatmul.mubr.f32.gmra.mrb[0].mxu0 %v1909
  %v2089 = vpop.f32.mrb[0].mxu0
  %v2090 = vadd.f32 %v1986, %v2089
  %v2091 = vpop.f32.mrb[0].mxu0
  %2092 = vmatprep.mubr.f32.mxu0 0.0
  %2093 = vmatmul.mubr.f32.gmra.mrb[0].mxu0 %v1910
  %v2094 = vpop.f32.mrb[0].mxu0
  %v2095 = vadd.f32 %v1986, %v2094
  %v2096 = vpop.f32.mrb[0].mxu0
  %2097 = vmatprep.mubr.f32.mxu0 0.0
  %2098 = vmatmul.mubr.f32.gmra.mrb[0].mxu0 %v1911
  %v2099 = vpop.f32.mrb[0].mxu0
  %v2100 = vadd.f32 %v1986, %v2099
  %v2101 = vpop.f32.mrb[0].mxu0
  %2102 = vmatprep.mubr.f32.mxu0 0.0
  %2103 = vmatmul.mubr.f32.gmra.mrb[0].mxu0 %v1912
  %v2104 = vpop.f32.mrb[0].mxu0
  %v2105 = vadd.f32 %v1986, %v2104
  %v2106 = vpop.f32.mrb[0].mxu0
  %2107 = vmatprep.mubr.f32.mxu0 0.0
  %2108 = vmatmul.mubr.f32.gmra.mrb[0].mxu0 %v1913
  %v2109 = vpop.f32.mrb[0].mxu0
  %v2110 = vadd.f32 %v1986, %v2109
  %v2111 = vpop.f32.mrb[0].mxu0
  %2112 = vmatprep.mubr.f32.mxu0 0.0
  %2113 = vmatmul.mubr.f32.gmra.mrb[0].mxu0 %v1914
  %v2114 = vpop.f32.mrb[0].mxu0
  %v2115 = vadd.f32 %v1986, %v2114
  %v2116 = vpop.f32.mrb[0].mxu0
  %2117 = vmatprep.mubr.f32.mxu0 0.0
  %2118 = vmatmul.mubr.f32.gmra.mrb[0].mxu0 %v1915
  %v2119 = vpop.f32.mrb[0].mxu0
  %v2120 = vadd.f32 %v1986, %v2119
  %v2121 = vpop.f32.mrb[0].mxu0
  %2122 = vmatprep.mubr.f32.mxu0 0.0
  %2123 = vmatmul.mubr.f32.gmra.mrb[0].mxu0 %v1916
  %v2124 = vpop.f32.mrb[0].mxu0
  %v2125 = vadd.f32 %v1986, %v2124
  %v2126 = vpop.f32.mrb[0].mxu0
  %2127 = vmatprep.mubr.f32.mxu0 0.0
  %2128 = vmatmul.mubr.f32.gmra.mrb[0].mxu0 %v1917
  %v2129 = vpop.f32.mrb[0].mxu0
  %v2130 = vadd.f32 %v1986, %v2129
  %v2131 = vpop.f32.mrb[0].mxu0
  %2132 = vmatprep.mubr.f32.mxu0 0.0
  %2133 = vmatmul.mubr.f32.gmra.mrb[0].mxu0 %v1918
  %v2134 = vpop.f32.mrb[0].mxu0
  %v2135 = vadd.f32 %v1986, %v2134
  %v2136 = vpop.f32.mrb[0].mxu0
  %2137 = vmatprep.mubr.f32.mxu0 0.0
  %2138 = vmatmul.mubr.f32.gmra.mrb[0].mxu0 %v1919
  %v2139 = vpop.f32.mrb[0].mxu0
  %v2140 = vadd.f32 %v1986, %v2139
  %v2141 = vpop.f32.mrb[0].mxu0
  %2142 = vmatprep.mubr.f32.mxu0 0.0
  %2143 = vmatmul.mubr.f32.gmra.mrb[0].mxu0 %v1920
  %v2144 = vpop.f32.mrb[0].mxu0
  %v2145 = vadd.f32 %v1986, %v2144
  %v2146 = vpop.f32.mrb[0].mxu0
  %2147 = vmatprep.mubr.f32.mxu0 0.0
  %2148 = vmatmul.mubr.f32.gmra.mrb[0].mxu0 %v1921
  %v2149 = vpop.f32.mrb[0].mxu0
  %v2150 = vadd.f32 %v1986, %v2149
  %v2151 = vpop.f32.mrb[0].mxu0
  %2152 = vmatprep.mubr.f32.mxu0 0.0
  %2153 = vmatmul.mubr.f32.gmra.mrb[0].mxu0 %v1922
  %v2154 = vpop.f32.mrb[0].mxu0
  %v2155 = vadd.f32 %v1986, %v2154
  %v2156 = vpop.f32.mrb[0].mxu0
  %2157 = vmatprep.mubr.f32.mxu0 0.0
  %2158 = vmatmul.mubr.f32.gmra.mrb[0].mxu0 %v1923
  %v2159 = vpop.f32.mrb[0].mxu0
  %v2160 = vadd.f32 %v1986, %v2159
  %v2161 = vpop.f32.mrb[0].mxu0
  %2162 = vmatprep.mubr.f32.mxu0 0.0
  %2163 = vmatmul.mubr.f32.gmra.mrb[0].mxu0 %v1924
  %v2164 = vpop.f32.mrb[0].mxu0
  %v2165 = vadd.f32 %v1986, %v2164
  %v2166 = vpop.f32.mrb[0].mxu0
  %2167 = vmatprep.mubr.f32.mxu0 0.0
  %2168 = vmatmul.mubr.f32.gmra.mrb[0].mxu0 %v1925
  %v2169 = vpop.f32.mrb[0].mxu0
  %v2170 = vadd.f32 %v1986, %v2169
  %v2171 = vpop.f32.mrb[0].mxu0
  %2172 = vmatprep.mubr.f32.mxu0 0.0
  %2173 = vmatmul.mubr.f32.gmra.mrb[0].mxu0 %v1926
  %v2174 = vpop.f32.mrb[0].mxu0
  %v2175 = vadd.f32 %v1986, %v2174
  %v2176 = vpop.f32.mrb[0].mxu0
  %2177 = vmatprep.mubr.f32.mxu0 0.0
  %2178 = vmatmul.mubr.f32.gmra.mrb[0].mxu0 %v1927
  %v2179 = vpop.f32.mrb[0].mxu0
  %v2180 = vadd.f32 %v1986, %v2179
  %v2181 = vpop.f32.mrb[0].mxu0
  %2182 = vmatprep.mubr.f32.mxu0 0.0
  %2183 = vmatmul.mubr.f32.gmra.mrb[0].mxu0 %v1928
  %v2184 = vpop.f32.mrb[0].mxu0
  %v2185 = vadd.f32 %v1986, %v2184
  %v2186 = vpop.f32.mrb[0].mxu0
  %2187 = vmatprep.mubr.f32.mxu0 0.0
  %2188 = vmatmul.mubr.f32.gmra.mrb[0].mxu0 %v1929
  %v2189 = vpop.f32.mrb[0].mxu0
  %v2190 = vadd.f32 %v1986, %v2189
  %v2191 = vpop.f32.mrb[0].mxu0
  %2192 = vmatprep.mubr.f32.mxu0 0.0
  %2193 = vmatmul.mubr.f32.gmra.mrb[0].mxu0 %v1930
  %v2194 = vpop.f32.mrb[0].mxu0
  %v2195 = vadd.f32 %v1986, %v2194
  %v2196 = vpop.f32.mrb[0].mxu0
  %2197 = vmatprep.mubr.f32.mxu0 0.0
  %2198 = vmatmul.mubr.f32.gmra.mrb[0].mxu0 %v1931
  %v2199 = vpop.f32.mrb[0].mxu0
  %v2200 = vadd.f32 %v1986, %v2199
  %v2201 = vpop.f32.mrb[0].mxu0
  %2202 = vmatprep.mubr.f32.mxu0 0.0
  %2203 = vmatmul.mubr.f32.gmra.mrb[0].mxu0 %v1932
  %v2204 = vpop.f32.mrb[0].mxu0
  %v2205 = vadd.f32 %v1986, %v2204
  %v2206 = vpop.f32.mrb[0].mxu0
  %2207 = vmatprep.mubr.f32.mxu0 0.0
  %2208 = vmatmul.mubr.f32.gmra.mrb[0].mxu0 %v1933
  %v2209 = vpop.f32.mrb[0].mxu0
  %v2210 = vadd.f32 %v1986, %v2209
  %v2211 = vpop.f32.mrb[0].mxu0
  %2212 = vmatprep.mubr.f32.mxu0 0.0
  %2213 = vmatmul.mubr.f32.gmra.mrb[0].mxu0 %v1934
  %v2214 = vpop.f32.mrb[0].mxu0
  %v2215 = vadd.f32 %v1986, %v2214
  %v2216 = vpop.f32.mrb[0].mxu0
  %2217 = vmatprep.mubr.f32.mxu0 0.0
  %2218 = vmatmul.mubr.f32.gmra.mrb[0].mxu0 %v1935
  %v2219 = vpop.f32.mrb[0].mxu0
  %v2220 = vadd.f32 %v1986, %v2219
  %v2221 = vpop.f32.mrb[0].mxu0
  %2222 = vmatprep.mubr.f32.mxu0 0.0
  %2223 = vmatmul.mubr.f32.gmra.mrb[0].mxu0 %v1936
  %v2224 = vpop.f32.mrb[0].mxu0
  %v2225 = vadd.f32 %v1986, %v2224
  %v2226 = vpop.f32.mrb[0].mxu0
  %2227 = vmatprep.mubr.f32.mxu0 0.0
  %2228 = vmatmul.mubr.f32.gmra.mrb[0].mxu0 %v1937
  %v2229 = vpop.f32.mrb[0].mxu0
  %v2230 = vadd.f32 %v1986, %v2229
  %v2231 = vpop.f32.mrb[0].mxu0
  %2232 = vmatprep.mubr.f32.mxu0 0.0
  %2233 = vmatmul.mubr.f32.gmra.mrb[0].mxu0 %v1938
  %v2234 = vpop.f32.mrb[0].mxu0
  %v2235 = vadd.f32 %v1986, %v2234
  %v2236 = vpop.f32.mrb[0].mxu0
  %2237 = vmatprep.mubr.f32.mxu0 0.0
  %2238 = vmatmul.mubr.f32.gmra.mrb[0].mxu0 %v1939
  %v2239 = vpop.f32.mrb[0].mxu0
  %v2240 = vadd.f32 %v1986, %v2239
  %v2241 = vpop.f32.mrb[0].mxu0
  %2242 = vmatprep.mubr.f32.mxu0 0.0
  %2243 = vmatmul.mubr.f32.gmra.mrb[0].mxu0 %v1940
  %v2244 = vpop.f32.mrb[0].mxu0
  %v2245 = vadd.f32 %v1986, %v2244
  %v2246 = vpop.f32.mrb[0].mxu0
  %2247 = vmatprep.mubr.f32.mxu0 0.0
  %2248 = vmatmul.mubr.f32.gmra.mrb[0].mxu0 %v1941
  %v2249 = vpop.f32.mrb[0].mxu0
  %v2250 = vadd.f32 %v1986, %v2249
  %v2251 = vpop.f32.mrb[0].mxu0
  %2252 = vmatprep.mubr.f32.mxu0 0.0
  %2253 = vmatmul.mubr.f32.gmra.mrb[0].mxu0 %v1942
  %v2254 = vpop.f32.mrb[0].mxu0
  %v2255 = vadd.f32 %v1986, %v2254
  %v2256 = vpop.f32.mrb[0].mxu0
  %2257 = vmatprep.mubr.f32.mxu0 0.0
  %2258 = vmatmul.mubr.f32.gmra.mrb[0].mxu0 %v1943
  %v2259 = vpop.f32.mrb[0].mxu0
  %v2260 = vadd.f32 %v1986, %v2259
  %v2261 = vpop.f32.mrb[0].mxu0
  %2262 = vmatprep.mubr.f32.mxu0 0.0
  %2263 = vmatmul.mubr.f32.gmra.mrb[0].mxu0 %v1944
  %v2264 = vpop.f32.mrb[0].mxu0
  %v2265 = vadd.f32 %v1986, %v2264
  %v2266 = vpop.f32.mrb[0].mxu0
  %2267 = vmatprep.mubr.f32.mxu0 0.0
  %2268 = vmatmul.mubr.f32.gmra.mrb[0].mxu0 %v1945
  %v2269 = vpop.f32.mrb[0].mxu0
  %v2270 = vadd.f32 %v1986, %v2269
  %v2271 = vpop.f32.mrb[0].mxu0
  %2272 = vmatprep.mubr.f32.mxu0 0.0
  %2273 = vmatmul.mubr.f32.gmra.mrb[0].mxu0 %v1946
  %v2274 = vpop.f32.mrb[0].mxu0
  %v2275 = vadd.f32 %v1986, %v2274
  %v2276 = vpop.f32.mrb[0].mxu0
  %2277 = vmatprep.mubr.f32.mxu0 0.0
  %2278 = vmatmul.mubr.f32.gmra.mrb[0].mxu0 %v1947
  %v2279 = vpop.f32.mrb[0].mxu0
  %v2280 = vadd.f32 %v1986, %v2279
  %v2281 = vpop.f32.mrb[0].mxu0
  %2282 = vmatprep.mubr.f32.mxu0 0.0
  %2283 = vmatmul.mubr.f32.gmra.mrb[0].mxu0 %v1948
  %v2284 = vpop.f32.mrb[0].mxu0
  %v2285 = vadd.f32 %v1986, %v2284
  %v2286 = vpop.f32.mrb[0].mxu0
  %2287 = vmatprep.mubr.f32.mxu0 0.0
  %2288 = vmatmul.mubr.f32.gmra.mrb[0].mxu0 %v1949
  %v2289 = vpop.f32.mrb[0].mxu0
  %v2290 = vadd.f32 %v1986, %v2289
  %v2291 = vpop.f32.mrb[0].mxu0
  %2292 = vmatprep.mubr.f32.mxu0 0.0
  %2293 = vmatmul.mubr.f32.gmra.mrb[0].mxu0 %v1950
  %v2294 = vpop.f32.mrb[0].mxu0
  %v2295 = vadd.f32 %v1986, %v2294
  %v2296 = vpop.f32.mrb[0].mxu0
  %2297 = vmatprep.mubr.f32.mxu0 0.0
  %2298 = vmatmul.mubr.f32.gmra.mrb[0].mxu0 %v1951
  %v2299 = vpop.f32.mrb[0].mxu0
  %v2300 = vadd.f32 %v1986, %v2299
  %v2301 = vpop.f32.mrb[0].mxu0
  %2302 = vmatprep.mubr.f32.mxu0 0.0
  %2303 = vmatmul.mubr.f32.gmra.mrb[0].mxu0 %v1952
  %v2304 = vpop.f32.mrb[0].mxu0
  %v2305 = vadd.f32 %v1986, %v2304
  %v2306 = vpop.f32.mrb[0].mxu0
  %2307 = vmatprep.mubr.f32.mxu0 0.0
  %2308 = vmatmul.mubr.f32.gmra.mrb[0].mxu0 %v1953
  %v2309 = vpop.f32.mrb[0].mxu0
  %v2310 = vadd.f32 %v1986, %v2309
  %v2311 = vpop.f32.mrb[0].mxu0
  %2312 = vmatprep.mubr.f32.mxu0 0.0
  %2313 = vmatmul.mubr.f32.gmra.mrb[0].mxu0 %v1954
  %v2314 = vpop.f32.mrb[0].mxu0
  %v2315 = vadd.f32 %v1986, %v2314
  %v2316 = vpop.f32.mrb[0].mxu0
  %2317 = vmatprep.mubr.f32.mxu0 0.0
  %2318 = vmatmul.mubr.f32.gmra.mrb[0].mxu0 %v1955
  %v2319 = vpop.f32.mrb[0].mxu0
  %v2320 = vadd.f32 %v1986, %v2319
  %v2321 = vpop.f32.mrb[0].mxu0
  %2322 = vmatprep.mubr.f32.mxu0 0.0
  %2323 = vmatmul.mubr.f32.gmra.mrb[0].mxu0 %v1956
  %v2324 = vpop.f32.mrb[0].mxu0
  %v2325 = vadd.f32 %v1986, %v2324
  %v2326 = vpop.f32.mrb[0].mxu0
  %2327 = vmatprep.mubr.f32.mxu0 0.0
  %2328 = vmatmul.mubr.f32.gmra.mrb[0].mxu0 %v1957
  %v2329 = vpop.f32.mrb[0].mxu0
  %v2330 = vadd.f32 %v1986, %v2329
  %v2331 = vpop.f32.mrb[0].mxu0
  %2332 = vmatprep.mubr.f32.mxu0 0.0
  %2333 = vmatmul.mubr.f32.gmra.mrb[0].mxu0 %v1958
  %v2334 = vpop.f32.mrb[0].mxu0
  %v2335 = vadd.f32 %v1986, %v2334
  %v2336 = vpop.f32.mrb[0].mxu0
  %2337 = vmatprep.mubr.f32.mxu0 0.0
  %2338 = vmatmul.mubr.f32.gmra.mrb[0].mxu0 %v1959
  %v2339 = vpop.f32.mrb[0].mxu0
  %v2340 = vadd.f32 %v1986, %v2339
  %v2341 = vpop.f32.mrb[0].mxu0
  %2342 = vmatprep.mubr.f32.mxu0 0.0
  %2343 = vmatmul.mubr.f32.gmra.mrb[0].mxu0 %v1960
  %v2344 = vpop.f32.mrb[0].mxu0
  %v2345 = vadd.f32 %v1986, %v2344
  %v2346 = vpop.f32.mrb[0].mxu0
  %2347 = vmatprep.mubr.f32.mxu0 0.0
  %2348 = vmatmul.mubr.f32.gmra.mrb[0].mxu0 %v1961
  %v2349 = vpop.f32.mrb[0].mxu0
  %v2350 = vadd.f32 %v1986, %v2349
  %v2351 = vpop.f32.mrb[0].mxu0
  %2352 = vmatprep.mubr.f32.mxu0 0.0
  %2353 = vmatmul.mubr.f32.gmra.mrb[0].mxu0 %v1962
  %v2354 = vpop.f32.mrb[0].mxu0
  %v2355 = vadd.f32 %v1986, %v2354
  %v2356 = vpop.f32.mrb[0].mxu0
  %2357 = vmatprep.mubr.f32.mxu0 0.0
  %2358 = vmatmul.mubr.f32.gmra.mrb[0].mxu0 %v1963
  %v2359 = vpop.f32.mrb[0].mxu0
  %v2360 = vadd.f32 %v1986, %v2359
  %v2361 = vpop.f32.mrb[0].mxu0
  %2362 = vmatprep.mubr.f32.mxu0 0.0
  %2363 = vmatmul.mubr.f32.gmra.mrb[0].mxu0 %v1964
  %v2364 = vpop.f32.mrb[0].mxu0
  %v2365 = vadd.f32 %v1986, %v2364
  %v2366 = vpop.f32.mrb[0].mxu0
  %2367 = vdwg.mxu0
  %v2368 = vsub.f32 0.0, %v2055
  %v2369 = vsub.f32 0.0, %v2060
  %v2370 = vsub.f32 0.0, %v2065
  %v2371 = vsub.f32 0.0, %v2070
  %v2372 = vsub.f32 0.0, %v2075
  %v2373 = vsub.f32 0.0, %v2080
  %v2374 = vsub.f32 0.0, %v2085
  %v2375 = vsub.f32 0.0, %v2090
  %v2376 = vsub.f32 0.0, %v2095
  %v2377 = vsub.f32 0.0, %v2100
  %v2378 = vsub.f32 0.0, %v2105
  %v2379 = vsub.f32 0.0, %v2110
  %v2380 = vsub.f32 0.0, %v2115
  %v2381 = vsub.f32 0.0, %v2120
  %v2382 = vsub.f32 0.0, %v2125
  %v2383 = vsub.f32 0.0, %v2130
  %v2384 = vsub.f32 0.0, %v2135
  %v2385 = vsub.f32 0.0, %v2140
  %v2386 = vsub.f32 0.0, %v2145
  %v2387 = vsub.f32 0.0, %v2150
  %v2388 = vsub.f32 0.0, %v2155
  %v2389 = vsub.f32 0.0, %v2160
  %v2390 = vsub.f32 0.0, %v2165
  %v2391 = vsub.f32 0.0, %v2170
  %v2392 = vsub.f32 0.0, %v2175
  %v2393 = vsub.f32 0.0, %v2180
  %v2394 = vsub.f32 0.0, %v2185
  %v2395 = vsub.f32 0.0, %v2190
  %v2396 = vsub.f32 0.0, %v2195
  %v2397 = vsub.f32 0.0, %v2200
  %v2398 = vsub.f32 0.0, %v2205
  %v2399 = vsub.f32 0.0, %v2210
  %v2400 = vsub.f32 0.0, %v2215
  %v2401 = vsub.f32 0.0, %v2220
  %v2402 = vsub.f32 0.0, %v2225
  %v2403 = vsub.f32 0.0, %v2230
  %v2404 = vsub.f32 0.0, %v2235
  %v2405 = vsub.f32 0.0, %v2240
  %v2406 = vsub.f32 0.0, %v2245
  %v2407 = vsub.f32 0.0, %v2250
  %v2408 = vsub.f32 0.0, %v2255
  %v2409 = vsub.f32 0.0, %v2260
  %v2410 = vsub.f32 0.0, %v2265
  %v2411 = vsub.f32 0.0, %v2270
  %v2412 = vsub.f32 0.0, %v2275
  %v2413 = vsub.f32 0.0, %v2280
  %v2414 = vsub.f32 0.0, %v2285
  %v2415 = vsub.f32 0.0, %v2290
  %v2416 = vsub.f32 0.0, %v2295
  %v2417 = vsub.f32 0.0, %v2300
  %v2418 = vsub.f32 0.0, %v2305
  %v2419 = vsub.f32 0.0, %v2310
  %v2420 = vsub.f32 0.0, %v2315
  %v2421 = vsub.f32 0.0, %v2320
  %v2422 = vsub.f32 0.0, %v2325
  %v2423 = vsub.f32 0.0, %v2330
  %v2424 = vsub.f32 0.0, %v2335
  %v2425 = vsub.f32 0.0, %v2340
  %v2426 = vsub.f32 0.0, %v2345
  %v2427 = vsub.f32 0.0, %v2350
  %v2428 = vsub.f32 0.0, %v2355
  %v2429 = vsub.f32 0.0, %v2360
  %v2430 = vsub.f32 0.0, %v2365
  %v2431 = vmul.f32 %v2368, 1.442695
  %v2432 = vpow.pop %v2431
  %v2433 = vmul.f32 %v2369, 1.442695
  %v2434 = vpow.pop %v2433
  %v2435 = vmul.f32 %v2370, 1.442695
  %v2436 = vpow.pop %v2435
  %v2437 = vmul.f32 %v2371, 1.442695
  %v2438 = vpow.pop %v2437
  %v2439 = vmul.f32 %v2372, 1.442695
  %v2440 = vpow.pop %v2439
  %v2441 = vmul.f32 %v2373, 1.442695
  %v2442 = vpow.pop %v2441
  %v2443 = vmul.f32 %v2374, 1.442695
  %v2444 = vpow.pop %v2443
  %v2445 = vmul.f32 %v2375, 1.442695
  %v2446 = vpow.pop %v2445
  %v2447 = vmul.f32 %v2376, 1.442695
  %v2448 = vpow.pop %v2447
  %v2449 = vmul.f32 %v2377, 1.442695
  %v2450 = vpow.pop %v2449
  %v2451 = vmul.f32 %v2378, 1.442695
  %v2452 = vpow.pop %v2451
  %v2453 = vmul.f32 %v2379, 1.442695
  %v2454 = vpow.pop %v2453
  %v2455 = vmul.f32 %v2380, 1.442695
  %v2456 = vpow.pop %v2455
  %v2457 = vmul.f32 %v2381, 1.442695
  %v2458 = vpow.pop %v2457
  %v2459 = vmul.f32 %v2382, 1.442695
  %v2460 = vpow.pop %v2459
  %v2461 = vmul.f32 %v2383, 1.442695
  %v2462 = vpow.pop %v2461
  %v2463 = vmul.f32 %v2384, 1.442695
  %v2464 = vpow.pop %v2463
  %v2465 = vmul.f32 %v2385, 1.442695
  %v2466 = vpow.pop %v2465
  %v2467 = vmul.f32 %v2386, 1.442695
  %v2468 = vpow.pop %v2467
  %v2469 = vmul.f32 %v2387, 1.442695
  %v2470 = vpow.pop %v2469
  %v2471 = vmul.f32 %v2388, 1.442695
  %v2472 = vpow.pop %v2471
  %v2473 = vmul.f32 %v2389, 1.442695
  %v2474 = vpow.pop %v2473
  %v2475 = vmul.f32 %v2390, 1.442695
  %v2476 = vpow.pop %v2475
  %v2477 = vmul.f32 %v2391, 1.442695
  %v2478 = vpow.pop %v2477
  %v2479 = vmul.f32 %v2392, 1.442695
  %v2480 = vpow.pop %v2479
  %v2481 = vmul.f32 %v2393, 1.442695
  %v2482 = vpow.pop %v2481
  %v2483 = vmul.f32 %v2394, 1.442695
  %v2484 = vpow.pop %v2483
  %v2485 = vmul.f32 %v2395, 1.442695
  %v2486 = vpow.pop %v2485
  %v2487 = vmul.f32 %v2396, 1.442695
  %v2488 = vpow.pop %v2487
  %v2489 = vmul.f32 %v2397, 1.442695
  %v2490 = vpow.pop %v2489
  %v2491 = vmul.f32 %v2398, 1.442695
  %v2492 = vpow.pop %v2491
  %v2493 = vmul.f32 %v2399, 1.442695
  %v2494 = vpow.pop %v2493
  %v2495 = vmul.f32 %v2400, 1.442695
  %v2496 = vpow.pop %v2495
  %v2497 = vmul.f32 %v2401, 1.442695
  %v2498 = vpow.pop %v2497
  %v2499 = vmul.f32 %v2402, 1.442695
  %v2500 = vpow.pop %v2499
  %v2501 = vmul.f32 %v2403, 1.442695
  %v2502 = vpow.pop %v2501
  %v2503 = vmul.f32 %v2404, 1.442695
  %v2504 = vpow.pop %v2503
  %v2505 = vmul.f32 %v2405, 1.442695
  %v2506 = vpow.pop %v2505
  %v2507 = vmul.f32 %v2406, 1.442695
  %v2508 = vpow.pop %v2507
  %v2509 = vmul.f32 %v2407, 1.442695
  %v2510 = vpow.pop %v2509
  %v2511 = vmul.f32 %v2408, 1.442695
  %v2512 = vpow.pop %v2511
  %v2513 = vmul.f32 %v2409, 1.442695
  %v2514 = vpow.pop %v2513
  %v2515 = vmul.f32 %v2410, 1.442695
  %v2516 = vpow.pop %v2515
  %v2517 = vmul.f32 %v2411, 1.442695
  %v2518 = vpow.pop %v2517
  %v2519 = vmul.f32 %v2412, 1.442695
  %v2520 = vpow.pop %v2519
  %v2521 = vmul.f32 %v2413, 1.442695
  %v2522 = vpow.pop %v2521
  %v2523 = vmul.f32 %v2414, 1.442695
  %v2524 = vpow.pop %v2523
  %v2525 = vmul.f32 %v2415, 1.442695
  %v2526 = vpow.pop %v2525
  %v2527 = vmul.f32 %v2416, 1.442695
  %v2528 = vpow.pop %v2527
  %v2529 = vmul.f32 %v2417, 1.442695
  %v2530 = vpow.pop %v2529
  %v2531 = vmul.f32 %v2418, 1.442695
  %v2532 = vpow.pop %v2531
  %v2533 = vmul.f32 %v2419, 1.442695
  %v2534 = vpow.pop %v2533
  %v2535 = vmul.f32 %v2420, 1.442695
  %v2536 = vpow.pop %v2535
  %v2537 = vmul.f32 %v2421, 1.442695
  %v2538 = vpow.pop %v2537
  %v2539 = vmul.f32 %v2422, 1.442695
  %v2540 = vpow.pop %v2539
  %v2541 = vmul.f32 %v2423, 1.442695
  %v2542 = vpow.pop %v2541
  %v2543 = vmul.f32 %v2424, 1.442695
  %v2544 = vpow.pop %v2543
  %v2545 = vmul.f32 %v2425, 1.442695
  %v2546 = vpow.pop %v2545
  %v2547 = vmul.f32 %v2426, 1.442695
  %v2548 = vpow.pop %v2547
  %v2549 = vmul.f32 %v2427, 1.442695
  %v2550 = vpow.pop %v2549
  %v2551 = vmul.f32 %v2428, 1.442695
  %v2552 = vpow.pop %v2551
  %v2553 = vmul.f32 %v2429, 1.442695
  %v2554 = vpow.pop %v2553
  %v2555 = vmul.f32 %v2430, 1.442695
  %v2556 = vpow.pop %v2555
  %v2557 = vadd.f32 %v2432, 1.0
  %v2558 = vadd.f32 %v2434, 1.0
  %v2559 = vadd.f32 %v2436, 1.0
  %v2560 = vadd.f32 %v2438, 1.0
  %v2561 = vadd.f32 %v2440, 1.0
  %v2562 = vadd.f32 %v2442, 1.0
  %v2563 = vadd.f32 %v2444, 1.0
  %v2564 = vadd.f32 %v2446, 1.0
  %v2565 = vadd.f32 %v2448, 1.0
  %v2566 = vadd.f32 %v2450, 1.0
  %v2567 = vadd.f32 %v2452, 1.0
  %v2568 = vadd.f32 %v2454, 1.0
  %v2569 = vadd.f32 %v2456, 1.0
  %v2570 = vadd.f32 %v2458, 1.0
  %v2571 = vadd.f32 %v2460, 1.0
  %v2572 = vadd.f32 %v2462, 1.0
  %v2573 = vadd.f32 %v2464, 1.0
  %v2574 = vadd.f32 %v2466, 1.0
  %v2575 = vadd.f32 %v2468, 1.0
  %v2576 = vadd.f32 %v2470, 1.0
  %v2577 = vadd.f32 %v2472, 1.0
  %v2578 = vadd.f32 %v2474, 1.0
  %v2579 = vadd.f32 %v2476, 1.0
  %v2580 = vadd.f32 %v2478, 1.0
  %v2581 = vadd.f32 %v2480, 1.0
  %v2582 = vadd.f32 %v2482, 1.0
  %v2583 = vadd.f32 %v2484, 1.0
  %v2584 = vadd.f32 %v2486, 1.0
  %v2585 = vadd.f32 %v2488, 1.0
  %v2586 = vadd.f32 %v2490, 1.0
  %v2587 = vadd.f32 %v2492, 1.0
  %v2588 = vadd.f32 %v2494, 1.0
  %v2589 = vadd.f32 %v2496, 1.0
  %v2590 = vadd.f32 %v2498, 1.0
  %v2591 = vadd.f32 %v2500, 1.0
  %v2592 = vadd.f32 %v2502, 1.0
  %v2593 = vadd.f32 %v2504, 1.0
  %v2594 = vadd.f32 %v2506, 1.0
  %v2595 = vadd.f32 %v2508, 1.0
  %v2596 = vadd.f32 %v2510, 1.0
  %v2597 = vadd.f32 %v2512, 1.0
  %v2598 = vadd.f32 %v2514, 1.0
  %v2599 = vadd.f32 %v2516, 1.0
  %v2600 = vadd.f32 %v2518, 1.0
  %v2601 = vadd.f32 %v2520, 1.0
  %v2602 = vadd.f32 %v2522, 1.0
  %v2603 = vadd.f32 %v2524, 1.0
  %v2604 = vadd.f32 %v2526, 1.0
  %v2605 = vadd.f32 %v2528, 1.0
  %v2606 = vadd.f32 %v2530, 1.0
  %v2607 = vadd.f32 %v2532, 1.0
  %v2608 = vadd.f32 %v2534, 1.0
  %v2609 = vadd.f32 %v2536, 1.0
  %v2610 = vadd.f32 %v2538, 1.0
  %v2611 = vadd.f32 %v2540, 1.0
  %v2612 = vadd.f32 %v2542, 1.0
  %v2613 = vadd.f32 %v2544, 1.0
  %v2614 = vadd.f32 %v2546, 1.0
  %v2615 = vadd.f32 %v2548, 1.0
  %v2616 = vadd.f32 %v2550, 1.0
  %v2617 = vadd.f32 %v2552, 1.0
  %v2618 = vadd.f32 %v2554, 1.0
  %v2619 = vadd.f32 %v2556, 1.0
  %v2620 = vrcp.pop %v2557
  %v2621 = vmul.f32 1.0, %v2620
  %v2622 = vrcp.pop %v2558
  %v2623 = vmul.f32 1.0, %v2622
  %v2624 = vrcp.pop %v2559
  %v2625 = vmul.f32 1.0, %v2624
  %v2626 = vrcp.pop %v2560
  %v2627 = vmul.f32 1.0, %v2626
  %v2628 = vrcp.pop %v2561
  %v2629 = vmul.f32 1.0, %v2628
  %v2630 = vrcp.pop %v2562
  %v2631 = vmul.f32 1.0, %v2630
  %v2632 = vrcp.pop %v2563
  %v2633 = vmul.f32 1.0, %v2632
  %v2634 = vrcp.pop %v2564
  %v2635 = vmul.f32 1.0, %v2634
  %v2636 = vrcp.pop %v2565
  %v2637 = vmul.f32 1.0, %v2636
  %v2638 = vrcp.pop %v2566
  %v2639 = vmul.f32 1.0, %v2638
  %v2640 = vrcp.pop %v2567
  %v2641 = vmul.f32 1.0, %v2640
  %v2642 = vrcp.pop %v2568
  %v2643 = vmul.f32 1.0, %v2642
  %v2644 = vrcp.pop %v2569
  %v2645 = vmul.f32 1.0, %v2644
  %v2646 = vrcp.pop %v2570
  %v2647 = vmul.f32 1.0, %v2646
  %v2648 = vrcp.pop %v2571
  %v2649 = vmul.f32 1.0, %v2648
  %v2650 = vrcp.pop %v2572
  %v2651 = vmul.f32 1.0, %v2650
  %v2652 = vrcp.pop %v2573
  %v2653 = vmul.f32 1.0, %v2652
  %v2654 = vrcp.pop %v2574
  %v2655 = vmul.f32 1.0, %v2654
  %v2656 = vrcp.pop %v2575
  %v2657 = vmul.f32 1.0, %v2656
  %v2658 = vrcp.pop %v2576
  %v2659 = vmul.f32 1.0, %v2658
  %v2660 = vrcp.pop %v2577
  %v2661 = vmul.f32 1.0, %v2660
  %v2662 = vrcp.pop %v2578
  %v2663 = vmul.f32 1.0, %v2662
  %v2664 = vrcp.pop %v2579
  %v2665 = vmul.f32 1.0, %v2664
  %v2666 = vrcp.pop %v2580
  %v2667 = vmul.f32 1.0, %v2666
  %v2668 = vrcp.pop %v2581
  %v2669 = vmul.f32 1.0, %v2668
  %v2670 = vrcp.pop %v2582
  %v2671 = vmul.f32 1.0, %v2670
  %v2672 = vrcp.pop %v2583
  %v2673 = vmul.f32 1.0, %v2672
  %v2674 = vrcp.pop %v2584
  %v2675 = vmul.f32 1.0, %v2674
  %v2676 = vrcp.pop %v2585
  %v2677 = vmul.f32 1.0, %v2676
  %v2678 = vrcp.pop %v2586
  %v2679 = vmul.f32 1.0, %v2678
  %v2680 = vrcp.pop %v2587
  %v2681 = vmul.f32 1.0, %v2680
  %v2682 = vrcp.pop %v2588
  %v2683 = vmul.f32 1.0, %v2682
  %v2684 = vrcp.pop %v2589
  %v2685 = vmul.f32 1.0, %v2684
  %v2686 = vrcp.pop %v2590
  %v2687 = vmul.f32 1.0, %v2686
  %v2688 = vrcp.pop %v2591
  %v2689 = vmul.f32 1.0, %v2688
  %v2690 = vrcp.pop %v2592
  %v2691 = vmul.f32 1.0, %v2690
  %v2692 = vrcp.pop %v2593
  %v2693 = vmul.f32 1.0, %v2692
  %v2694 = vrcp.pop %v2594
  %v2695 = vmul.f32 1.0, %v2694
  %v2696 = vrcp.pop %v2595
  %v2697 = vmul.f32 1.0, %v2696
  %v2698 = vrcp.pop %v2596
  %v2699 = vmul.f32 1.0, %v2698
  %v2700 = vrcp.pop %v2597
  %v2701 = vmul.f32 1.0, %v2700
  %v2702 = vrcp.pop %v2598
  %v2703 = vmul.f32 1.0, %v2702
  %v2704 = vrcp.pop %v2599
  %v2705 = vmul.f32 1.0, %v2704
  %v2706 = vrcp.pop %v2600
  %v2707 = vmul.f32 1.0, %v2706
  %v2708 = vrcp.pop %v2601
  %v2709 = vmul.f32 1.0, %v2708
  %v2710 = vrcp.pop %v2602
  %v2711 = vmul.f32 1.0, %v2710
  %v2712 = vrcp.pop %v2603
  %v2713 = vmul.f32 1.0, %v2712
  %v2714 = vrcp.pop %v2604
  %v2715 = vmul.f32 1.0, %v2714
  %v2716 = vrcp.pop %v2605
  %v2717 = vmul.f32 1.0, %v2716
  %v2718 = vrcp.pop %v2606
  %v2719 = vmul.f32 1.0, %v2718
  %v2720 = vrcp.pop %v2607
  %v2721 = vmul.f32 1.0, %v2720
  %v2722 = vrcp.pop %v2608
  %v2723 = vmul.f32 1.0, %v2722
  %v2724 = vrcp.pop %v2609
  %v2725 = vmul.f32 1.0, %v2724
  %v2726 = vrcp.pop %v2610
  %v2727 = vmul.f32 1.0, %v2726
  %v2728 = vrcp.pop %v2611
  %v2729 = vmul.f32 1.0, %v2728
  %v2730 = vrcp.pop %v2612
  %v2731 = vmul.f32 1.0, %v2730
  %v2732 = vrcp.pop %v2613
  %v2733 = vmul.f32 1.0, %v2732
  %v2734 = vrcp.pop %v2614
  %v2735 = vmul.f32 1.0, %v2734
  %v2736 = vrcp.pop %v2615
  %v2737 = vmul.f32 1.0, %v2736
  %v2738 = vrcp.pop %v2616
  %v2739 = vmul.f32 1.0, %v2738
  %v2740 = vrcp.pop %v2617
  %v2741 = vmul.f32 1.0, %v2740
  %v2742 = vrcp.pop %v2618
  %v2743 = vmul.f32 1.0, %v2742
  %v2744 = vrcp.pop %v2619
  %v2745 = vmul.f32 1.0, %v2744
  %2746 = vst [vmem:[%s11] sm:$0xff] %v2621
  %2747 = vst [vmem:[%s11 + $0x8] sm:$0xff] %v2623
  %2748 = vst [vmem:[%s11 + $0x10] sm:$0xff] %v2625
  %2749 = vst [vmem:[%s11 + $0x18] sm:$0xff] %v2627
  %2750 = vst [vmem:[%s11 + $0x20] sm:$0xff] %v2629
  %2751 = vst [vmem:[%s11 + $0x28] sm:$0xff] %v2631
  %2752 = vst [vmem:[%s11 + $0x30] sm:$0xff] %v2633
  %2753 = vst [vmem:[%s11 + $0x38] sm:$0xff] %v2635
  %2754 = vst [vmem:[%s11 + $0x40] sm:$0xff] %v2637
  %2755 = vst [vmem:[%s11 + $0x48] sm:$0xff] %v2639
  %2756 = vst [vmem:[%s11 + $0x50] sm:$0xff] %v2641
  %2757 = vst [vmem:[%s11 + $0x58] sm:$0xff] %v2643
  %2758 = vst [vmem:[%s11 + $0x60] sm:$0xff] %v2645
  %2759 = vst [vmem:[%s11 + $0x68] sm:$0xff] %v2647
  %2760 = vst [vmem:[%s11 + $0x70] sm:$0xff] %v2649
  %2761 = vst [vmem:[%s11 + $0x78] sm:$0xff] %v2651
  %2762 = vst [vmem:[%s11 + $0x80] sm:$0xff] %v2653
  %2763 = vst [vmem:[%s11 + $0x88] sm:$0xff] %v2655
  %2764 = vst [vmem:[%s11 + $0x90] sm:$0xff] %v2657
  %2765 = vst [vmem:[%s11 + $0x98] sm:$0xff] %v2659
  %2766 = vst [vmem:[%s11 + $0xa0] sm:$0xff] %v2661
  %2767 = vst [vmem:[%s11 + $0xa8] sm:$0xff] %v2663
  %2768 = vst [vmem:[%s11 + $0xb0] sm:$0xff] %v2665
  %2769 = vst [vmem:[%s11 + $0xb8] sm:$0xff] %v2667
  %2770 = vst [vmem:[%s11 + $0xc0] sm:$0xff] %v2669
  %2771 = vst [vmem:[%s11 + $0xc8] sm:$0xff] %v2671
  %2772 = vst [vmem:[%s11 + $0xd0] sm:$0xff] %v2673
  %2773 = vst [vmem:[%s11 + $0xd8] sm:$0xff] %v2675
  %2774 = vst [vmem:[%s11 + $0xe0] sm:$0xff] %v2677
  %2775 = vst [vmem:[%s11 + $0xe8] sm:$0xff] %v2679
  %2776 = vst [vmem:[%s11 + $0xf0] sm:$0xff] %v2681
  %2777 = vst [vmem:[%s11 + $0xf8] sm:$0xff] %v2683
  %2778 = vst [vmem:[%s11 + $0x100] sm:$0xff] %v2685
  %2779 = vst [vmem:[%s11 + $0x108] sm:$0xff] %v2687
  %2780 = vst [vmem:[%s11 + $0x110] sm:$0xff] %v2689
  %2781 = vst [vmem:[%s11 + $0x118] sm:$0xff] %v2691
  %2782 = vst [vmem:[%s11 + $0x120] sm:$0xff] %v2693
  %2783 = vst [vmem:[%s11 + $0x128] sm:$0xff] %v2695
  %2784 = vst [vmem:[%s11 + $0x130] sm:$0xff] %v2697
  %2785 = vst [vmem:[%s11 + $0x138] sm:$0xff] %v2699
  %2786 = vst [vmem:[%s11 + $0x140] sm:$0xff] %v2701
  %2787 = vst [vmem:[%s11 + $0x148] sm:$0xff] %v2703
  %2788 = vst [vmem:[%s11 + $0x150] sm:$0xff] %v2705
  %2789 = vst [vmem:[%s11 + $0x158] sm:$0xff] %v2707
  %2790 = vst [vmem:[%s11 + $0x160] sm:$0xff] %v2709
  %2791 = vst [vmem:[%s11 + $0x168] sm:$0xff] %v2711
  %2792 = vst [vmem:[%s11 + $0x170] sm:$0xff] %v2713
  %2793 = vst [vmem:[%s11 + $0x178] sm:$0xff] %v2715
  %2794 = vst [vmem:[%s11 + $0x180] sm:$0xff] %v2717
  %2795 = vst [vmem:[%s11 + $0x188] sm:$0xff] %v2719
  %2796 = vst [vmem:[%s11 + $0x190] sm:$0xff] %v2721
  %2797 = vst [vmem:[%s11 + $0x198] sm:$0xff] %v2723
  %2798 = vst [vmem:[%s11 + $0x1a0] sm:$0xff] %v2725
  %2799 = vst [vmem:[%s11 + $0x1a8] sm:$0xff] %v2727
  %2800 = vst [vmem:[%s11 + $0x1b0] sm:$0xff] %v2729
  %2801 = vst [vmem:[%s11 + $0x1b8] sm:$0xff] %v2731
  %2802 = vst [vmem:[%s11 + $0x1c0] sm:$0xff] %v2733
  %2803 = vst [vmem:[%s11 + $0x1c8] sm:$0xff] %v2735
  %2804 = vst [vmem:[%s11 + $0x1d0] sm:$0xff] %v2737
  %2805 = vst [vmem:[%s11 + $0x1d8] sm:$0xff] %v2739
  %2806 = vst [vmem:[%s11 + $0x1e0] sm:$0xff] %v2741
  %2807 = vst [vmem:[%s11 + $0x1e8] sm:$0xff] %v2743
  %2808 = vst [vmem:[%s11 + $0x1f0] sm:$0xff] %v2745
  // Predicated region
  $region46: #{forward.1} parent=0 // pred_check
    _
  $region47: #{forward.1} parent=0 // pred_check_branch
    %2810 = sbr.rel (0) target = $region49
  $region48: #{forward.1} parent=0 // pred_region
    _
  $region49: #{forward.1} parent=0 // pred_fallthru
    _
  // Predicated region
  $region50: #{forward.1} parent=0 // pred_check
    _
  $region51: #{forward.1} parent=0 // pred_check_branch
    %2812 = sbr.rel (0) target = $region53
  $region52: #{forward.1} parent=0 // pred_region
    _
  $region53: #{forward.1} parent=0 // pred_fallthru
    _

</llo_original>
